<compile_context>
chip_gen: v6e
topology: v6e:2x2x1
jax: 0.10.0
libtpu: 0.0.40
codegen_flags: <defaults>
</compile_context>

<pallas_src>
import jax
import jax.numpy as jnp
from jax.experimental import pallas as pl
from jax.experimental.pallas import tpu as pltpu

# ----------------------------- model dims -----------------------------------
IMG_BACKBONE_DIM = 2048   # inception_v3 fc.in_features
IMG_FEATURES_DIM = 512    # replaced inception fc output
BERT_HIDDEN      = 384    # ernie-3.0-mini-zh hidden_size
FC1_DIM          = 256
NUM_LABELS       = 8
OUT_PAD          = 128    # lane-dense padded logits width
BATCH            = 8


# ----------------------------- Pallas kernel --------------------------------
def fused_head_kernel(img_feats_ref, cls_ref,
                      w_img_ref, b_img_ref,
                      w_pool_ref, b_pool_ref,
                      w1_pool_ref, w1_img_ref, b_fc1_ref,
                      w_fc2_ref, b_fc2_ref,
                      out_ref):
    bf16 = jnp.bfloat16

    # image head: Linear(2048 -> 512) + ReLU   (bf16 weights, f32 accumulate)
    img = jnp.dot(img_feats_ref[...].astype(bf16), w_img_ref[...],
                  preferred_element_type=jnp.float32) + b_img_ref[...]
    img = jnp.maximum(img, 0.0)

    # BERT pooler: Linear(384 -> 384) + tanh  (pooler_output)
    pooled = jnp.tanh(jnp.dot(cls_ref[...].astype(bf16), w_pool_ref[...],
                              preferred_element_type=jnp.float32)
                      + b_pool_ref[...])

    # fc1 on concat(pooled, img):
    #   concat([pooled, img]) @ W1 == pooled @ W1[:384] + img @ W1[384:]
    h = (jnp.dot(pooled.astype(bf16), w1_pool_ref[...],
                 preferred_element_type=jnp.float32)
         + jnp.dot(img.astype(bf16), w1_img_ref[...],
                   preferred_element_type=jnp.float32)
         + b_fc1_ref[...])
    h = jnp.maximum(h, 0.0)

    # fc2 -> logits, emitted into a lane-dense (B, 128) slab
    out_ref[...] = (jnp.dot(h.astype(bf16), w_fc2_ref[...],
                            preferred_element_type=jnp.float32)
                    + b_fc2_ref[...])


def fused_head(img_feats, cls_hidden, params):
    """img_feats: (B, 2048) f32, cls_hidden: (B, 384) f32 -> (B, NUM_LABELS) f32."""
    b = img_feats.shape[0]
    vmem = pl.BlockSpec(memory_space=pltpu.MemorySpace.VMEM)
    inputs = (
        img_feats, cls_hidden,
        params["w_img"], params["b_img"],
        params["w_pool"], params["b_pool"],
        params["w1_pool"], params["w1_img"], params["b_fc1"],
        params["w_fc2"], params["b_fc2"],
    )
    out_padded = pl.pallas_call(
        fused_head_kernel,
        out_shape=jax.ShapeDtypeStruct((b, OUT_PAD), jnp.float32),
        in_specs=[vmem] * len(inputs),
        out_specs=vmem,
    )(*inputs)
    return out_padded[:, :NUM_LABELS]


# ----------------------------- params / reference ---------------------------
def _orthogonal(key, shape):
    # deterministic orthogonal-ish init (matches nn.init.orthogonal_ semantics
    # closely enough for a synthetic kernel): QR of a gaussian matrix.
    a = jax.random.normal(key, shape, dtype=jnp.float32)
    q, _ = jnp.linalg.qr(a if shape[0] >= shape[1] else a.T)
    q = q if shape[0] >= shape[1] else q.T
    return q[: shape[0], : shape[1]].astype(jnp.float32)


def make_params(key):
    ks = jax.random.split(key, 6)
    w_img  = _orthogonal(ks[0], (IMG_BACKBONE_DIM, IMG_FEATURES_DIM))
    w_pool = _orthogonal(ks[1], (BERT_HIDDEN, BERT_HIDDEN))
    w_fc1  = _orthogonal(ks[2], (BERT_HIDDEN + IMG_FEATURES_DIM, FC1_DIM))
    w_fc2  = _orthogonal(ks[3], (FC1_DIM, NUM_LABELS))
    # pad fc2 weight/bias to a lane-dense 128-wide output slab
    w_fc2_pad = jnp.zeros((FC1_DIM, OUT_PAD), jnp.float32).at[:, :NUM_LABELS].set(w_fc2)
    bf16 = jnp.bfloat16
    return {
        # weights streamed as bf16 (halves the dominant HBM->VMEM DMA)
        "w_img":   w_img.astype(bf16),
        "b_img":   jnp.zeros((1, IMG_FEATURES_DIM), jnp.float32),
        "w_pool":  w_pool.astype(bf16),
        "b_pool":  jax.random.normal(ks[4], (1, BERT_HIDDEN), jnp.float32) * 0.02,
        "w1_pool": w_fc1[:BERT_HIDDEN, :].astype(bf16),   # rows matching pooled_output
        "w1_img":  w_fc1[BERT_HIDDEN:, :].astype(bf16),   # rows matching img_output
        "b_fc1":   jnp.zeros((1, FC1_DIM), jnp.float32),
        "w_fc2":   w_fc2_pad.astype(bf16),
        "b_fc2":   jnp.zeros((1, OUT_PAD), jnp.float32),
    }


def reference_head(img_feats, cls_hidden, p):
    # quant-aware f32 reference: same bf16-rounded operands, f32 matmuls.
    def bf(x):
        return x.astype(jnp.bfloat16).astype(jnp.float32)

    img = jnp.maximum(bf(img_feats) @ bf(p["w_img"]) + p["b_img"], 0.0)
    pooled = jnp.tanh(bf(cls_hidden) @ bf(p["w_pool"]) + p["b_pool"])
    h = jnp.maximum(bf(pooled) @ bf(p["w1_pool"])
                    + bf(img) @ bf(p["w1_img"]) + p["b_fc1"], 0.0)
    logits = bf(h) @ bf(p["w_fc2"]) + p["b_fc2"]
    return logits[:, :NUM_LABELS]


# ----------------------------- main ------------------------------------------
if __name__ == "__main__":
    key = jax.random.PRNGKey(0)
    k_img, k_cls, k_params = jax.random.split(key, 3)

    # synthetic backbone outputs (inception penultimate feats, BERT CLS hidden)
    img_feats = jax.random.normal(k_img, (BATCH, IMG_BACKBONE_DIM), jnp.float32)
    cls_hidden = jax.random.normal(k_cls, (BATCH, BERT_HIDDEN), jnp.float32)
    params = make_params(k_params)

    logits = fused_head(img_feats, cls_hidden, params)
    logits = jax.block_until_ready(logits)

    ref = reference_head(img_feats, cls_hidden, params)
    assert logits.shape == (BATCH, NUM_LABELS)
    assert jnp.allclose(logits, ref, atol=1e-2, rtol=1e-2)

    print("KERNEL_OK")
</pallas_src>

<mosaic_0001>
module attributes {stable_mosaic.version = 11 : i64} {
  func.func @fused_head_kernel(%arg0: memref<8x2048xf32, #tpu.memory_space<vmem>>, %arg1: memref<8x384xf32, #tpu.memory_space<vmem>>, %arg2: memref<2048x512xbf16, #tpu.memory_space<vmem>>, %arg3: memref<1x512xf32, #tpu.memory_space<vmem>>, %arg4: memref<384x384xbf16, #tpu.memory_space<vmem>>, %arg5: memref<1x384xf32, #tpu.memory_space<vmem>>, %arg6: memref<384x256xbf16, #tpu.memory_space<vmem>>, %arg7: memref<512x256xbf16, #tpu.memory_space<vmem>>, %arg8: memref<1x256xf32, #tpu.memory_space<vmem>>, %arg9: memref<256x128xbf16, #tpu.memory_space<vmem>>, %arg10: memref<1x128xf32, #tpu.memory_space<vmem>>, %arg11: memref<8x128xf32, #tpu.memory_space<vmem>>) attributes {dimension_semantics = [], scalar_prefetch = 0 : i64, scratch_operands = 0 : i64, tpu.core_type = #tpu.core_type<tc>} {
    %c0 = arith.constant 0 : index
    %c0_0 = arith.constant 0 : index
    %0 = vector.load %arg0[%c0, %c0_0] : memref<8x2048xf32, #tpu.memory_space<vmem>>, vector<8x2048xf32>
    %1 = arith.truncf %0 : vector<8x2048xf32> to vector<8x2048xbf16>
    %c0_1 = arith.constant 0 : index
    %c0_2 = arith.constant 0 : index
    %2 = vector.load %arg2[%c0_1, %c0_2] : memref<2048x512xbf16, #tpu.memory_space<vmem>>, vector<2048x512xbf16>
    %cst = arith.constant dense<0.000000e+00> : vector<8x512xf32>
    %3 = tpu.matmul %1, %2, %cst {dimension_numbers = #tpu.dot_dimension_numbers<[1], [0], [0], [1], [0, 0, 1, 1], [], []>} : vector<8x2048xbf16>, vector<2048x512xbf16>, vector<8x512xf32> -> vector<8x512xf32>
    %c0_3 = arith.constant 0 : index
    %c0_4 = arith.constant 0 : index
    %4 = vector.load %arg3[%c0_3, %c0_4] : memref<1x512xf32, #tpu.memory_space<vmem>>, vector<1x512xf32>
    %5 = vector.broadcast %4 : vector<1x512xf32> to vector<8x512xf32>
    %6 = arith.addf %3, %5 : vector<8x512xf32>
    %cst_5 = arith.constant 0.000000e+00 : f32
    %7 = vector.broadcast %cst_5 : f32 to vector<8x512xf32>
    %8 = arith.maximumf %6, %7 : vector<8x512xf32>
    %c0_6 = arith.constant 0 : index
    %c0_7 = arith.constant 0 : index
    %9 = vector.load %arg1[%c0_6, %c0_7] : memref<8x384xf32, #tpu.memory_space<vmem>>, vector<8x384xf32>
    %10 = arith.truncf %9 : vector<8x384xf32> to vector<8x384xbf16>
    %c0_8 = arith.constant 0 : index
    %c0_9 = arith.constant 0 : index
    %11 = vector.load %arg4[%c0_8, %c0_9] : memref<384x384xbf16, #tpu.memory_space<vmem>>, vector<384x384xbf16>
    %cst_10 = arith.constant dense<0.000000e+00> : vector<8x384xf32>
    %12 = tpu.matmul %10, %11, %cst_10 {dimension_numbers = #tpu.dot_dimension_numbers<[1], [0], [0], [1], [0, 0, 1, 1], [], []>} : vector<8x384xbf16>, vector<384x384xbf16>, vector<8x384xf32> -> vector<8x384xf32>
    %c0_11 = arith.constant 0 : index
    %c0_12 = arith.constant 0 : index
    %13 = vector.load %arg5[%c0_11, %c0_12] : memref<1x384xf32, #tpu.memory_space<vmem>>, vector<1x384xf32>
    %14 = vector.broadcast %13 : vector<1x384xf32> to vector<8x384xf32>
    %15 = arith.addf %12, %14 : vector<8x384xf32>
    %16 = math.tanh %15 : vector<8x384xf32>
    %17 = arith.truncf %16 : vector<8x384xf32> to vector<8x384xbf16>
    %c0_13 = arith.constant 0 : index
    %c0_14 = arith.constant 0 : index
    %18 = vector.load %arg6[%c0_13, %c0_14] : memref<384x256xbf16, #tpu.memory_space<vmem>>, vector<384x256xbf16>
    %cst_15 = arith.constant dense<0.000000e+00> : vector<8x256xf32>
    %19 = tpu.matmul %17, %18, %cst_15 {dimension_numbers = #tpu.dot_dimension_numbers<[1], [0], [0], [1], [0, 0, 1, 1], [], []>} : vector<8x384xbf16>, vector<384x256xbf16>, vector<8x256xf32> -> vector<8x256xf32>
    %20 = arith.truncf %8 : vector<8x512xf32> to vector<8x512xbf16>
    %c0_16 = arith.constant 0 : index
    %c0_17 = arith.constant 0 : index
    %21 = vector.load %arg7[%c0_16, %c0_17] : memref<512x256xbf16, #tpu.memory_space<vmem>>, vector<512x256xbf16>
    %cst_18 = arith.constant dense<0.000000e+00> : vector<8x256xf32>
    %22 = tpu.matmul %20, %21, %cst_18 {dimension_numbers = #tpu.dot_dimension_numbers<[1], [0], [0], [1], [0, 0, 1, 1], [], []>} : vector<8x512xbf16>, vector<512x256xbf16>, vector<8x256xf32> -> vector<8x256xf32>
    %23 = arith.addf %19, %22 : vector<8x256xf32>
    %c0_19 = arith.constant 0 : index
    %c0_20 = arith.constant 0 : index
    %24 = vector.load %arg8[%c0_19, %c0_20] : memref<1x256xf32, #tpu.memory_space<vmem>>, vector<1x256xf32>
    %25 = vector.broadcast %24 : vector<1x256xf32> to vector<8x256xf32>
    %26 = arith.addf %23, %25 : vector<8x256xf32>
    %cst_21 = arith.constant 0.000000e+00 : f32
    %27 = vector.broadcast %cst_21 : f32 to vector<8x256xf32>
    %28 = arith.maximumf %26, %27 : vector<8x256xf32>
    %29 = arith.truncf %28 : vector<8x256xf32> to vector<8x256xbf16>
    %c0_22 = arith.constant 0 : index
    %c0_23 = arith.constant 0 : index
    %30 = vector.load %arg9[%c0_22, %c0_23] : memref<256x128xbf16, #tpu.memory_space<vmem>>, vector<256x128xbf16>
    %cst_24 = arith.constant dense<0.000000e+00> : vector<8x128xf32>
    %31 = tpu.matmul %29, %30, %cst_24 {dimension_numbers = #tpu.dot_dimension_numbers<[1], [0], [0], [1], [0, 0, 1, 1], [], []>} : vector<8x256xbf16>, vector<256x128xbf16>, vector<8x128xf32> -> vector<8x128xf32>
    %c0_25 = arith.constant 0 : index
    %c0_26 = arith.constant 0 : index
    %32 = vector.load %arg10[%c0_25, %c0_26] : memref<1x128xf32, #tpu.memory_space<vmem>>, vector<1x128xf32>
    %33 = vector.broadcast %32 : vector<1x128xf32> to vector<8x128xf32>
    %34 = arith.addf %31, %33 : vector<8x128xf32>
    %c0_27 = arith.constant 0 : index
    %c0_28 = arith.constant 0 : index
    %35 = vector.load %arg11[%c0_27, %c0_28] : memref<8x128xf32, #tpu.memory_space<vmem>>, vector<8x128xf32>
    tpu.vector_store %arg11[%c0_27, %c0_28], %34 {strides = array<i32>} : memref<8x128xf32, #tpu.memory_space<vmem>>, vector<8x128xf32>,
    return
  }
}

</mosaic_0001>

<llo_original>
// kernel: tpu_custom_call.1
$region0: #{tpu_custom_call.1}
  #allocation0 [shape = 'u32[]', space=smem, size = 0x4, offset = 0x4, fixed_abs, tag = 'smem constant byte address 0x4 - core index']
  #allocation1 [shape = 'u32[144,128]{1,0:T(1,128)}', space=vmem, size = 0x12000, scoped, tag = 'internal scratch']
  %s0 = inlined_call_operand.hbm [shape: f32[8,2048], index: 0, kind: input, shape index: {}]
  %s1 = inlined_call_operand.hbm [shape: f32[8,384], index: 1, kind: input, shape index: {}]
  %s2 = inlined_call_operand.hbm [shape: bf16[2048,512], index: 2, kind: input, shape index: {}]
  %s3 = inlined_call_operand.hbm [shape: f32[1,512], index: 3, kind: input, shape index: {}]
  %s4 = inlined_call_operand.hbm [shape: bf16[384,384], index: 4, kind: input, shape index: {}]
  %s5 = inlined_call_operand.hbm [shape: f32[1,384], index: 5, kind: input, shape index: {}]
  %s6 = inlined_call_operand.hbm [shape: bf16[384,256], index: 6, kind: input, shape index: {}]
  %s7 = inlined_call_operand.hbm [shape: bf16[512,256], index: 7, kind: input, shape index: {}]
  %s8 = inlined_call_operand.hbm [shape: f32[1,256], index: 8, kind: input, shape index: {}]
  %s9 = inlined_call_operand.hbm [shape: bf16[256,128], index: 9, kind: input, shape index: {}]
  %s10 = inlined_call_operand.hbm [shape: f32[1,128], index: 10, kind: input, shape index: {}]
  %s11 = inlined_call_operand.hbm [shape: f32[8,128], index: 11, kind: output, shape index: {}]
  %s12 = sld [smem:[#allocation0]]
  $region98: #{tpu_custom_call.1} parent=0
    _
  %s14 = ssub.s32 1, %s12
  %s15 = scalar_select 0, %s14, %s12
  $region1: #{tpu_custom_call.1} parent=0
    #allocation2 [shape = 'u8[65536]{0}', space=vmem, size = 0x10000, scoped, tag = 'input window, operand 0, single buffered']
    #allocation3 [shape = 's32[1]{0}', space=sflag, size = 0x4, scoped, tag = 'scoped memory for tpu_custom_call.1']
    #allocation4 [shape = 's32[1]{0}', space=sflag, size = 0x4, scoped, tag = 'scoped memory for tpu_custom_call.1']
    #allocation5 [shape = 'u8[12288]{0}', space=vmem, size = 0x3000, scoped, tag = 'input window, operand 1, single buffered']
    #allocation6 [shape = 's32[1]{0}', space=sflag, size = 0x4, scoped, tag = 'scoped memory for tpu_custom_call.1']
    #allocation7 [shape = 'u8[2097152]{0}', space=vmem, size = 0x200000, scoped, tag = 'input window, operand 2, single buffered']
    #allocation8 [shape = 'u8[2048]{0}', space=vmem, size = 0x800, scoped, tag = 'input window, operand 3, single buffered']
    #allocation9 [shape = 's32[1]{0}', space=sflag, size = 0x4, scoped, tag = 'scoped memory for tpu_custom_call.1']
    #allocation10 [shape = 'u8[294912]{0}', space=vmem, size = 0x48000, scoped, tag = 'input window, operand 4, single buffered']
    #allocation11 [shape = 'u8[1536]{0}', space=vmem, size = 0x800, scoped, tag = 'input window, operand 5, single buffered']
    #allocation12 [shape = 's32[1]{0}', space=sflag, size = 0x4, scoped, tag = 'scoped memory for tpu_custom_call.1']
    #allocation13 [shape = 'u8[196608]{0}', space=vmem, size = 0x30000, scoped, tag = 'input window, operand 6, single buffered']
    #allocation14 [shape = 'u8[262144]{0}', space=vmem, size = 0x40000, scoped, tag = 'input window, operand 7, single buffered']
    #allocation15 [shape = 's32[1]{0}', space=sflag, size = 0x4, scoped, tag = 'scoped memory for tpu_custom_call.1']
    #allocation16 [shape = 'u8[1024]{0}', space=vmem, size = 0x400, scoped, tag = 'input window, operand 8, single buffered']
    #allocation17 [shape = 'u8[65536]{0}', space=vmem, size = 0x10000, scoped, tag = 'input window, operand 9, single buffered']
    #allocation18 [shape = 's32[1]{0}', space=sflag, size = 0x4, scoped, tag = 'scoped memory for tpu_custom_call.1']
    #allocation19 [shape = 'u8[512]{0}', space=vmem, size = 0x400, scoped, tag = 'input window, operand 10, single buffered']
    #allocation20 [shape = 'u8[4096]{0}', space=vmem, size = 0x1000, scoped, tag = 'output window, operand 0, single buffered']
    %16 = vsyncpa [#allocation3], 0
    %17 = vsyncpa [#allocation6], 0
    %18 = vsyncpa [#allocation9], 0
    %19 = vsyncpa [#allocation12], 0
    %20 = vsyncpa [#allocation15], 0
    %21 = vsyncpa [#allocation18], 0
    %22 = vsyncpa [#allocation4], 0
    // Predicated region
    $region2: #{tpu_custom_call.1} parent=1 // pred_check
      _
    $region3: #{tpu_custom_call.1} parent=1 // pred_check_branch
      %24 = sbr.rel (0) target = $region5
    $region4: #{tpu_custom_call.1} parent=1 // pred_region
      %s26 = ssub.s32 2048, 2048
      %27 = vsyncadd [#allocation3], %s26
      %s29 = sshll.u32 [#allocation2], 4
      %s30 = int_to_ptr.vmem [resolvable:$true] %s29
      %32 = dma.hbm_to_vmem [thread:$0]  %s0, 2048, %s30, [#allocation3]
    $region5: #{tpu_custom_call.1} parent=1 // pred_fallthru
      _
    // Predicated region
    $region6: #{tpu_custom_call.1} parent=1 // pred_check
      _
    $region7: #{tpu_custom_call.1} parent=1 // pred_check_branch
      %34 = sbr.rel (0) target = $region9
    $region8: #{tpu_custom_call.1} parent=1 // pred_region
      %s36 = ssub.s32 384, 384
      %37 = vsyncadd [#allocation6], %s36
      %s39 = sshll.u32 [#allocation5], 4
      %s40 = int_to_ptr.vmem [resolvable:$true] %s39
      %42 = dma.hbm_to_vmem [thread:$0]  %s1, 384, %s40, [#allocation6]
    $region9: #{tpu_custom_call.1} parent=1 // pred_fallthru
      _
    // Predicated region
    $region10: #{tpu_custom_call.1} parent=1 // pred_check
      _
    $region11: #{tpu_custom_call.1} parent=1 // pred_check_branch
      %44 = sbr.rel (0) target = $region13
    $region12: #{tpu_custom_call.1} parent=1 // pred_region
      %s46 = ssub.s32 65536, 65536
      %47 = vsyncadd [#allocation6], %s46
      %s48 = sshll.u32 [#allocation7], 4
      %s49 = int_to_ptr.vmem [resolvable:$true] %s48
      %54 = dma.hbm_to_vmem [thread:$0]  %s2, 65536, %s49, [#allocation6], 256, 256, 16
    $region13: #{tpu_custom_call.1} parent=1 // pred_fallthru
      _
    // Predicated region
    $region14: #{tpu_custom_call.1} parent=1 // pred_check
      _
    $region15: #{tpu_custom_call.1} parent=1 // pred_check_branch
      %56 = sbr.rel (0) target = $region17
    $region16: #{tpu_custom_call.1} parent=1 // pred_region
      %s58 = ssub.s32 64, 64
      %59 = vsyncadd [#allocation9], %s58
      %s61 = sshll.u32 [#allocation8], 4
      %s62 = int_to_ptr.vmem [resolvable:$true] %s61
      %64 = dma.hbm_to_vmem [thread:$0]  %s3, 64, %s62, [#allocation9]
    $region17: #{tpu_custom_call.1} parent=1 // pred_fallthru
      _
    // Predicated region
    $region18: #{tpu_custom_call.1} parent=1 // pred_check
      _
    $region19: #{tpu_custom_call.1} parent=1 // pred_check_branch
      %66 = sbr.rel (0) target = $region21
    $region20: #{tpu_custom_call.1} parent=1 // pred_region
      %s68 = ssub.s32 9216, 9216
      %69 = vsyncadd [#allocation9], %s68
      %s70 = sshll.u32 [#allocation10], 4
      %s71 = int_to_ptr.vmem [resolvable:$true] %s70
      %76 = dma.hbm_to_vmem [thread:$0]  %s4, 9216, %s71, [#allocation9], 192, 192, 12
    $region21: #{tpu_custom_call.1} parent=1 // pred_fallthru
      _
    // Predicated region
    $region22: #{tpu_custom_call.1} parent=1 // pred_check
      _
    $region23: #{tpu_custom_call.1} parent=1 // pred_check_branch
      %78 = sbr.rel (0) target = $region25
    $region24: #{tpu_custom_call.1} parent=1 // pred_region
      %s80 = ssub.s32 48, 48
      %81 = vsyncadd [#allocation12], %s80
      %s83 = sshll.u32 [#allocation11], 4
      %s84 = int_to_ptr.vmem [resolvable:$true] %s83
      %86 = dma.hbm_to_vmem [thread:$0]  %s5, 48, %s84, [#allocation12]
    $region25: #{tpu_custom_call.1} parent=1 // pred_fallthru
      _
    // Predicated region
    $region26: #{tpu_custom_call.1} parent=1 // pred_check
      _
    $region27: #{tpu_custom_call.1} parent=1 // pred_check_branch
      %88 = sbr.rel (0) target = $region29
    $region28: #{tpu_custom_call.1} parent=1 // pred_region
      %s90 = ssub.s32 6144, 6144
      %91 = vsyncadd [#allocation12], %s90
      %s92 = sshll.u32 [#allocation13], 4
      %s93 = int_to_ptr.vmem [resolvable:$true] %s92
      %98 = dma.hbm_to_vmem [thread:$0]  %s6, 6144, %s93, [#allocation12], 128, 128, 8
    $region29: #{tpu_custom_call.1} parent=1 // pred_fallthru
      _
    // Predicated region
    $region30: #{tpu_custom_call.1} parent=1 // pred_check
      _
    $region31: #{tpu_custom_call.1} parent=1 // pred_check_branch
      %100 = sbr.rel (0) target = $region33
    $region32: #{tpu_custom_call.1} parent=1 // pred_region
      %s102 = ssub.s32 8192, 8192
      %103 = vsyncadd [#allocation15], %s102
      %s104 = sshll.u32 [#allocation14], 4
      %s105 = int_to_ptr.vmem [resolvable:$true] %s104
      %110 = dma.hbm_to_vmem [thread:$0]  %s7, 8192, %s105, [#allocation15], 128, 128, 8
    $region33: #{tpu_custom_call.1} parent=1 // pred_fallthru
      _
    // Predicated region
    $region34: #{tpu_custom_call.1} parent=1 // pred_check
      _
    $region35: #{tpu_custom_call.1} parent=1 // pred_check_branch
      %112 = sbr.rel (0) target = $region37
    $region36: #{tpu_custom_call.1} parent=1 // pred_region
      %s114 = ssub.s32 32, 32
      %115 = vsyncadd [#allocation15], %s114
      %s117 = sshll.u32 [#allocation16], 4
      %s118 = int_to_ptr.vmem [resolvable:$true] %s117
      %120 = dma.hbm_to_vmem [thread:$0]  %s8, 32, %s118, [#allocation15]
    $region37: #{tpu_custom_call.1} parent=1 // pred_fallthru
      _
    // Predicated region
    $region38: #{tpu_custom_call.1} parent=1 // pred_check
      _
    $region39: #{tpu_custom_call.1} parent=1 // pred_check_branch
      %122 = sbr.rel (0) target = $region41
    $region40: #{tpu_custom_call.1} parent=1 // pred_region
      %s124 = ssub.s32 2048, 2048
      %125 = vsyncadd [#allocation18], %s124
      %s126 = sshll.u32 [#allocation17], 4
      %s127 = int_to_ptr.vmem [resolvable:$true] %s126
      %132 = dma.hbm_to_vmem [thread:$0]  %s9, 2048, %s127, [#allocation18], 64, 64, 4
    $region41: #{tpu_custom_call.1} parent=1 // pred_fallthru
      _
    // Predicated region
    $region42: #{tpu_custom_call.1} parent=1 // pred_check
      _
    $region43: #{tpu_custom_call.1} parent=1 // pred_check_branch
      %134 = sbr.rel (0) target = $region45
    $region44: #{tpu_custom_call.1} parent=1 // pred_region
      %s136 = ssub.s32 16, 16
      %137 = vsyncadd [#allocation18], %s136
      %s139 = sshll.u32 [#allocation19], 4
      %s140 = int_to_ptr.vmem [resolvable:$true] %s139
      %142 = dma.hbm_to_vmem [thread:$0]  %s10, 16, %s140, [#allocation18]
    $region45: #{tpu_custom_call.1} parent=1 // pred_fallthru
      _
    // Predicated region
    $region46: #{tpu_custom_call.1} parent=1 // pred_check
      _
    $region47: #{tpu_custom_call.1} parent=1 // pred_check_branch
      %144 = sbr.rel (0) target = $region49
    $region48: #{tpu_custom_call.1} parent=1 // pred_region
      %145 = dma.done [#allocation3], 2048
    $region49: #{tpu_custom_call.1} parent=1 // pred_fallthru
      _
    // Predicated region
    $region50: #{tpu_custom_call.1} parent=1 // pred_check
      _
    $region51: #{tpu_custom_call.1} parent=1 // pred_check_branch
      %147 = sbr.rel (0) target = $region53
    $region52: #{tpu_custom_call.1} parent=1 // pred_region
      %148 = dma.done [#allocation6], 384
    $region53: #{tpu_custom_call.1} parent=1 // pred_fallthru
      _
    // Predicated region
    $region54: #{tpu_custom_call.1} parent=1 // pred_check
      _
    $region55: #{tpu_custom_call.1} parent=1 // pred_check_branch
      %150 = sbr.rel (0) target = $region57
    $region56: #{tpu_custom_call.1} parent=1 // pred_region
      %151 = dma.done [#allocation6], 65536
    $region57: #{tpu_custom_call.1} parent=1 // pred_fallthru
      _
    // Predicated region
    $region58: #{tpu_custom_call.1} parent=1 // pred_check
      _
    $region59: #{tpu_custom_call.1} parent=1 // pred_check_branch
      %153 = sbr.rel (0) target = $region61
    $region60: #{tpu_custom_call.1} parent=1 // pred_region
      %154 = dma.done [#allocation9], 64
    $region61: #{tpu_custom_call.1} parent=1 // pred_fallthru
      _
    // Predicated region
    $region62: #{tpu_custom_call.1} parent=1 // pred_check
      _
    $region63: #{tpu_custom_call.1} parent=1 // pred_check_branch
      %156 = sbr.rel (0) target = $region65
    $region64: #{tpu_custom_call.1} parent=1 // pred_region
      %157 = dma.done [#allocation9], 9216
    $region65: #{tpu_custom_call.1} parent=1 // pred_fallthru
      _
    // Predicated region
    $region66: #{tpu_custom_call.1} parent=1 // pred_check
      _
    $region67: #{tpu_custom_call.1} parent=1 // pred_check_branch
      %159 = sbr.rel (0) target = $region69
    $region68: #{tpu_custom_call.1} parent=1 // pred_region
      %160 = dma.done [#allocation12], 48
    $region69: #{tpu_custom_call.1} parent=1 // pred_fallthru
      _
    // Predicated region
    $region70: #{tpu_custom_call.1} parent=1 // pred_check
      _
    $region71: #{tpu_custom_call.1} parent=1 // pred_check_branch
      %162 = sbr.rel (0) target = $region73
    $region72: #{tpu_custom_call.1} parent=1 // pred_region
      %163 = dma.done [#allocation12], 6144
    $region73: #{tpu_custom_call.1} parent=1 // pred_fallthru
      _
    // Predicated region
    $region74: #{tpu_custom_call.1} parent=1 // pred_check
      _
    $region75: #{tpu_custom_call.1} parent=1 // pred_check_branch
      %165 = sbr.rel (0) target = $region77
    $region76: #{tpu_custom_call.1} parent=1 // pred_region
      %166 = dma.done [#allocation15], 8192
    $region77: #{tpu_custom_call.1} parent=1 // pred_fallthru
      _
    // Predicated region
    $region78: #{tpu_custom_call.1} parent=1 // pred_check
      _
    $region79: #{tpu_custom_call.1} parent=1 // pred_check_branch
      %168 = sbr.rel (0) target = $region81
    $region80: #{tpu_custom_call.1} parent=1 // pred_region
      %169 = dma.done [#allocation15], 32
    $region81: #{tpu_custom_call.1} parent=1 // pred_fallthru
      _
    // Predicated region
    $region82: #{tpu_custom_call.1} parent=1 // pred_check
      _
    $region83: #{tpu_custom_call.1} parent=1 // pred_check_branch
      %171 = sbr.rel (0) target = $region85
    $region84: #{tpu_custom_call.1} parent=1 // pred_region
      %172 = dma.done [#allocation18], 2048
    $region85: #{tpu_custom_call.1} parent=1 // pred_fallthru
      _
    // Predicated region
    $region86: #{tpu_custom_call.1} parent=1 // pred_check
      _
    $region87: #{tpu_custom_call.1} parent=1 // pred_check_branch
      %174 = sbr.rel (0) target = $region89
    $region88: #{tpu_custom_call.1} parent=1 // pred_region
      %175 = dma.done [#allocation18], 16
    $region89: #{tpu_custom_call.1} parent=1 // pred_fallthru
      _
    %v177 = vld [vmem:[#allocation2] sm:$0xff]
    %v178 = vld [vmem:[#allocation2 + $0x8] sm:$0xff]
    %v179 = vld [vmem:[#allocation2 + $0x10] sm:$0xff]
    %v180 = vld [vmem:[#allocation2 + $0x18] sm:$0xff]
    %v181 = vld [vmem:[#allocation2 + $0x20] sm:$0xff]
    %v182 = vld [vmem:[#allocation2 + $0x28] sm:$0xff]
    %v183 = vld [vmem:[#allocation2 + $0x30] sm:$0xff]
    %v184 = vld [vmem:[#allocation2 + $0x38] sm:$0xff]
    %v185 = vld [vmem:[#allocation2 + $0x40] sm:$0xff]
    %v186 = vld [vmem:[#allocation2 + $0x48] sm:$0xff]
    %v187 = vld [vmem:[#allocation2 + $0x50] sm:$0xff]
    %v188 = vld [vmem:[#allocation2 + $0x58] sm:$0xff]
    %v189 = vld [vmem:[#allocation2 + $0x60] sm:$0xff]
    %v190 = vld [vmem:[#allocation2 + $0x68] sm:$0xff]
    %v191 = vld [vmem:[#allocation2 + $0x70] sm:$0xff]
    %v192 = vld [vmem:[#allocation2 + $0x78] sm:$0xff]
    %v193 = vpack.c.bf16 %v177, %v177
    %v194 = vpack.c.bf16 %v178, %v178
    %v195 = vpack.c.bf16 %v179, %v179
    %v196 = vpack.c.bf16 %v180, %v180
    %v197 = vpack.c.bf16 %v181, %v181
    %v198 = vpack.c.bf16 %v182, %v182
    %v199 = vpack.c.bf16 %v183, %v183
    %v200 = vpack.c.bf16 %v184, %v184
    %v201 = vpack.c.bf16 %v185, %v185
    %v202 = vpack.c.bf16 %v186, %v186
    %v203 = vpack.c.bf16 %v187, %v187
    %v204 = vpack.c.bf16 %v188, %v188
    %v205 = vpack.c.bf16 %v189, %v189
    %v206 = vpack.c.bf16 %v190, %v190
    %v207 = vpack.c.bf16 %v191, %v191
    %v208 = vpack.c.bf16 %v192, %v192
    %v209 = vld [vmem:[#allocation7] sm:$0xff]
    %v210 = vld [vmem:[#allocation7 + $0x8] sm:$0xff]
    %v211 = vld [vmem:[#allocation7 + $0x10] sm:$0xff]
    %v212 = vld [vmem:[#allocation7 + $0x18] sm:$0xff]
    %v213 = vld [vmem:[#allocation7 + $0x20] sm:$0xff]
    %v214 = vld [vmem:[#allocation7 + $0x28] sm:$0xff]
    %v215 = vld [vmem:[#allocation7 + $0x30] sm:$0xff]
    %v216 = vld [vmem:[#allocation7 + $0x38] sm:$0xff]
    %v217 = vld [vmem:[#allocation7 + $0x40] sm:$0xff]
    %v218 = vld [vmem:[#allocation7 + $0x48] sm:$0xff]
    %v219 = vld [vmem:[#allocation7 + $0x50] sm:$0xff]
    %v220 = vld [vmem:[#allocation7 + $0x58] sm:$0xff]
    %v221 = vld [vmem:[#allocation7 + $0x60] sm:$0xff]
    %v222 = vld [vmem:[#allocation7 + $0x68] sm:$0xff]
    %v223 = vld [vmem:[#allocation7 + $0x70] sm:$0xff]
    %v224 = vld [vmem:[#allocation7 + $0x78] sm:$0xff]
    %v225 = vld [vmem:[#allocation7 + $0x80] sm:$0xff]
    %v226 = vld [vmem:[#allocation7 + $0x88] sm:$0xff]
    %v227 = vld [vmem:[#allocation7 + $0x90] sm:$0xff]
    %v228 = vld [vmem:[#allocation7 + $0x98] sm:$0xff]
    %v229 = vld [vmem:[#allocation7 + $0xa0] sm:$0xff]
    %v230 = vld [vmem:[#allocation7 + $0xa8] sm:$0xff]
    %v231 = vld [vmem:[#allocation7 + $0xb0] sm:$0xff]
    %v232 = vld [vmem:[#allocation7 + $0xb8] sm:$0xff]
    %v233 = vld [vmem:[#allocation7 + $0xc0] sm:$0xff]
    %v234 = vld [vmem:[#allocation7 + $0xc8] sm:$0xff]
    %v235 = vld [vmem:[#allocation7 + $0xd0] sm:$0xff]
    %v236 = vld [vmem:[#allocation7 + $0xd8] sm:$0xff]
    %v237 = vld [vmem:[#allocation7 + $0xe0] sm:$0xff]
    %v238 = vld [vmem:[#allocation7 + $0xe8] sm:$0xff]
    %v239 = vld [vmem:[#allocation7 + $0xf0] sm:$0xff]
    %v240 = vld [vmem:[#allocation7 + $0xf8] sm:$0xff]
    %v241 = vld [vmem:[#allocation7 + $0x100] sm:$0xff]
    %v242 = vld [vmem:[#allocation7 + $0x108] sm:$0xff]
    %v243 = vld [vmem:[#allocation7 + $0x110] sm:$0xff]
    %v244 = vld [vmem:[#allocation7 + $0x118] sm:$0xff]
    %v245 = vld [vmem:[#allocation7 + $0x120] sm:$0xff]
    %v246 = vld [vmem:[#allocation7 + $0x128] sm:$0xff]
    %v247 = vld [vmem:[#allocation7 + $0x130] sm:$0xff]
    %v248 = vld [vmem:[#allocation7 + $0x138] sm:$0xff]
    %v249 = vld [vmem:[#allocation7 + $0x140] sm:$0xff]
    %v250 = vld [vmem:[#allocation7 + $0x148] sm:$0xff]
    %v251 = vld [vmem:[#allocation7 + $0x150] sm:$0xff]
    %v252 = vld [vmem:[#allocation7 + $0x158] sm:$0xff]
    %v253 = vld [vmem:[#allocation7 + $0x160] sm:$0xff]
    %v254 = vld [vmem:[#allocation7 + $0x168] sm:$0xff]
    %v255 = vld [vmem:[#allocation7 + $0x170] sm:$0xff]
    %v256 = vld [vmem:[#allocation7 + $0x178] sm:$0xff]
    %v257 = vld [vmem:[#allocation7 + $0x180] sm:$0xff]
    %v258 = vld [vmem:[#allocation7 + $0x188] sm:$0xff]
    %v259 = vld [vmem:[#allocation7 + $0x190] sm:$0xff]
    %v260 = vld [vmem:[#allocation7 + $0x198] sm:$0xff]
    %v261 = vld [vmem:[#allocation7 + $0x1a0] sm:$0xff]
    %v262 = vld [vmem:[#allocation7 + $0x1a8] sm:$0xff]
    %v263 = vld [vmem:[#allocation7 + $0x1b0] sm:$0xff]
    %v264 = vld [vmem:[#allocation7 + $0x1b8] sm:$0xff]
    %v265 = vld [vmem:[#allocation7 + $0x1c0] sm:$0xff]
    %v266 = vld [vmem:[#allocation7 + $0x1c8] sm:$0xff]
    %v267 = vld [vmem:[#allocation7 + $0x1d0] sm:$0xff]
    %v268 = vld [vmem:[#allocation7 + $0x1d8] sm:$0xff]
    %v269 = vld [vmem:[#allocation7 + $0x1e0] sm:$0xff]
    %v270 = vld [vmem:[#allocation7 + $0x1e8] sm:$0xff]
    %v271 = vld [vmem:[#allocation7 + $0x1f0] sm:$0xff]
    %v272 = vld [vmem:[#allocation7 + $0x1f8] sm:$0xff]
    %v273 = vld [vmem:[#allocation7 + $0x200] sm:$0xff]
    %v274 = vld [vmem:[#allocation7 + $0x208] sm:$0xff]
    %v275 = vld [vmem:[#allocation7 + $0x210] sm:$0xff]
    %v276 = vld [vmem:[#allocation7 + $0x218] sm:$0xff]
    %v277 = vld [vmem:[#allocation7 + $0x220] sm:$0xff]
    %v278 = vld [vmem:[#allocation7 + $0x228] sm:$0xff]
    %v279 = vld [vmem:[#allocation7 + $0x230] sm:$0xff]
    %v280 = vld [vmem:[#allocation7 + $0x238] sm:$0xff]
    %v281 = vld [vmem:[#allocation7 + $0x240] sm:$0xff]
    %v282 = vld [vmem:[#allocation7 + $0x248] sm:$0xff]
    %v283 = vld [vmem:[#allocation7 + $0x250] sm:$0xff]
    %v284 = vld [vmem:[#allocation7 + $0x258] sm:$0xff]
    %v285 = vld [vmem:[#allocation7 + $0x260] sm:$0xff]
    %v286 = vld [vmem:[#allocation7 + $0x268] sm:$0xff]
    %v287 = vld [vmem:[#allocation7 + $0x270] sm:$0xff]
    %v288 = vld [vmem:[#allocation7 + $0x278] sm:$0xff]
    %v289 = vld [vmem:[#allocation7 + $0x280] sm:$0xff]
    %v290 = vld [vmem:[#allocation7 + $0x288] sm:$0xff]
    %v291 = vld [vmem:[#allocation7 + $0x290] sm:$0xff]
    %v292 = vld [vmem:[#allocation7 + $0x298] sm:$0xff]
    %v293 = vld [vmem:[#allocation7 + $0x2a0] sm:$0xff]
    %v294 = vld [vmem:[#allocation7 + $0x2a8] sm:$0xff]
    %v295 = vld [vmem:[#allocation7 + $0x2b0] sm:$0xff]
    %v296 = vld [vmem:[#allocation7 + $0x2b8] sm:$0xff]
    %v297 = vld [vmem:[#allocation7 + $0x2c0] sm:$0xff]
    %v298 = vld [vmem:[#allocation7 + $0x2c8] sm:$0xff]
    %v299 = vld [vmem:[#allocation7 + $0x2d0] sm:$0xff]
    %v300 = vld [vmem:[#allocation7 + $0x2d8] sm:$0xff]
    %v301 = vld [vmem:[#allocation7 + $0x2e0] sm:$0xff]
    %v302 = vld [vmem:[#allocation7 + $0x2e8] sm:$0xff]
    %v303 = vld [vmem:[#allocation7 + $0x2f0] sm:$0xff]
    %v304 = vld [vmem:[#allocation7 + $0x2f8] sm:$0xff]
    %v305 = vld [vmem:[#allocation7 + $0x300] sm:$0xff]
    %v306 = vld [vmem:[#allocation7 + $0x308] sm:$0xff]
    %v307 = vld [vmem:[#allocation7 + $0x310] sm:$0xff]
    %v308 = vld [vmem:[#allocation7 + $0x318] sm:$0xff]
    %v309 = vld [vmem:[#allocation7 + $0x320] sm:$0xff]
    %v310 = vld [vmem:[#allocation7 + $0x328] sm:$0xff]
    %v311 = vld [vmem:[#allocation7 + $0x330] sm:$0xff]
    %v312 = vld [vmem:[#allocation7 + $0x338] sm:$0xff]
    %v313 = vld [vmem:[#allocation7 + $0x340] sm:$0xff]
    %v314 = vld [vmem:[#allocation7 + $0x348] sm:$0xff]
    %v315 = vld [vmem:[#allocation7 + $0x350] sm:$0xff]
    %v316 = vld [vmem:[#allocation7 + $0x358] sm:$0xff]
    %v317 = vld [vmem:[#allocation7 + $0x360] sm:$0xff]
    %v318 = vld [vmem:[#allocation7 + $0x368] sm:$0xff]
    %v319 = vld [vmem:[#allocation7 + $0x370] sm:$0xff]
    %v320 = vld [vmem:[#allocation7 + $0x378] sm:$0xff]
    %v321 = vld [vmem:[#allocation7 + $0x380] sm:$0xff]
    %v322 = vld [vmem:[#allocation7 + $0x388] sm:$0xff]
    %v323 = vld [vmem:[#allocation7 + $0x390] sm:$0xff]
    %v324 = vld [vmem:[#allocation7 + $0x398] sm:$0xff]
    %v325 = vld [vmem:[#allocation7 + $0x3a0] sm:$0xff]
    %v326 = vld [vmem:[#allocation7 + $0x3a8] sm:$0xff]
    %v327 = vld [vmem:[#allocation7 + $0x3b0] sm:$0xff]
    %v328 = vld [vmem:[#allocation7 + $0x3b8] sm:$0xff]
    %v329 = vld [vmem:[#allocation7 + $0x3c0] sm:$0xff]
    %v330 = vld [vmem:[#allocation7 + $0x3c8] sm:$0xff]
    %v331 = vld [vmem:[#allocation7 + $0x3d0] sm:$0xff]
    %v332 = vld [vmem:[#allocation7 + $0x3d8] sm:$0xff]
    %v333 = vld [vmem:[#allocation7 + $0x3e0] sm:$0xff]
    %v334 = vld [vmem:[#allocation7 + $0x3e8] sm:$0xff]
    %v335 = vld [vmem:[#allocation7 + $0x3f0] sm:$0xff]
    %v336 = vld [vmem:[#allocation7 + $0x3f8] sm:$0xff]
    %v337 = vld [vmem:[#allocation7 + $0x400] sm:$0xff]
    %v338 = vld [vmem:[#allocation7 + $0x408] sm:$0xff]
    %v339 = vld [vmem:[#allocation7 + $0x410] sm:$0xff]
    %v340 = vld [vmem:[#allocation7 + $0x418] sm:$0xff]
    %v341 = vld [vmem:[#allocation7 + $0x420] sm:$0xff]
    %v342 = vld [vmem:[#allocation7 + $0x428] sm:$0xff]
    %v343 = vld [vmem:[#allocation7 + $0x430] sm:$0xff]
    %v344 = vld [vmem:[#allocation7 + $0x438] sm:$0xff]
    %v345 = vld [vmem:[#allocation7 + $0x440] sm:$0xff]
    %v346 = vld [vmem:[#allocation7 + $0x448] sm:$0xff]
    %v347 = vld [vmem:[#allocation7 + $0x450] sm:$0xff]
    %v348 = vld [vmem:[#allocation7 + $0x458] sm:$0xff]
    %v349 = vld [vmem:[#allocation7 + $0x460] sm:$0xff]
    %v350 = vld [vmem:[#allocation7 + $0x468] sm:$0xff]
    %v351 = vld [vmem:[#allocation7 + $0x470] sm:$0xff]
    %v352 = vld [vmem:[#allocation7 + $0x478] sm:$0xff]
    %v353 = vld [vmem:[#allocation7 + $0x480] sm:$0xff]
    %v354 = vld [vmem:[#allocation7 + $0x488] sm:$0xff]
    %v355 = vld [vmem:[#allocation7 + $0x490] sm:$0xff]
    %v356 = vld [vmem:[#allocation7 + $0x498] sm:$0xff]
    %v357 = vld [vmem:[#allocation7 + $0x4a0] sm:$0xff]
    %v358 = vld [vmem:[#allocation7 + $0x4a8] sm:$0xff]
    %v359 = vld [vmem:[#allocation7 + $0x4b0] sm:$0xff]
    %v360 = vld [vmem:[#allocation7 + $0x4b8] sm:$0xff]
    %v361 = vld [vmem:[#allocation7 + $0x4c0] sm:$0xff]
    %v362 = vld [vmem:[#allocation7 + $0x4c8] sm:$0xff]
    %v363 = vld [vmem:[#allocation7 + $0x4d0] sm:$0xff]
    %v364 = vld [vmem:[#allocation7 + $0x4d8] sm:$0xff]
    %v365 = vld [vmem:[#allocation7 + $0x4e0] sm:$0xff]
    %v366 = vld [vmem:[#allocation7 + $0x4e8] sm:$0xff]
    %v367 = vld [vmem:[#allocation7 + $0x4f0] sm:$0xff]
    %v368 = vld [vmem:[#allocation7 + $0x4f8] sm:$0xff]
    %v369 = vld [vmem:[#allocation7 + $0x500] sm:$0xff]
    %v370 = vld [vmem:[#allocation7 + $0x508] sm:$0xff]
    %v371 = vld [vmem:[#allocation7 + $0x510] sm:$0xff]
    %v372 = vld [vmem:[#allocation7 + $0x518] sm:$0xff]
    %v373 = vld [vmem:[#allocation7 + $0x520] sm:$0xff]
    %v374 = vld [vmem:[#allocation7 + $0x528] sm:$0xff]
    %v375 = vld [vmem:[#allocation7 + $0x530] sm:$0xff]
    %v376 = vld [vmem:[#allocation7 + $0x538] sm:$0xff]
    %v377 = vld [vmem:[#allocation7 + $0x540] sm:$0xff]
    %v378 = vld [vmem:[#allocation7 + $0x548] sm:$0xff]
    %v379 = vld [vmem:[#allocation7 + $0x550] sm:$0xff]
    %v380 = vld [vmem:[#allocation7 + $0x558] sm:$0xff]
    %v381 = vld [vmem:[#allocation7 + $0x560] sm:$0xff]
    %v382 = vld [vmem:[#allocation7 + $0x568] sm:$0xff]
    %v383 = vld [vmem:[#allocation7 + $0x570] sm:$0xff]
    %v384 = vld [vmem:[#allocation7 + $0x578] sm:$0xff]
    %v385 = vld [vmem:[#allocation7 + $0x580] sm:$0xff]
    %v386 = vld [vmem:[#allocation7 + $0x588] sm:$0xff]
    %v387 = vld [vmem:[#allocation7 + $0x590] sm:$0xff]
    %v388 = vld [vmem:[#allocation7 + $0x598] sm:$0xff]
    %v389 = vld [vmem:[#allocation7 + $0x5a0] sm:$0xff]
    %v390 = vld [vmem:[#allocation7 + $0x5a8] sm:$0xff]
    %v391 = vld [vmem:[#allocation7 + $0x5b0] sm:$0xff]
    %v392 = vld [vmem:[#allocation7 + $0x5b8] sm:$0xff]
    %v393 = vld [vmem:[#allocation7 + $0x5c0] sm:$0xff]
    %v394 = vld [vmem:[#allocation7 + $0x5c8] sm:$0xff]
    %v395 = vld [vmem:[#allocation7 + $0x5d0] sm:$0xff]
    %v396 = vld [vmem:[#allocation7 + $0x5d8] sm:$0xff]
    %v397 = vld [vmem:[#allocation7 + $0x5e0] sm:$0xff]
    %v398 = vld [vmem:[#allocation7 + $0x5e8] sm:$0xff]
    %v399 = vld [vmem:[#allocation7 + $0x5f0] sm:$0xff]
    %v400 = vld [vmem:[#allocation7 + $0x5f8] sm:$0xff]
    %v401 = vld [vmem:[#allocation7 + $0x600] sm:$0xff]
    %v402 = vld [vmem:[#allocation7 + $0x608] sm:$0xff]
    %v403 = vld [vmem:[#allocation7 + $0x610] sm:$0xff]
    %v404 = vld [vmem:[#allocation7 + $0x618] sm:$0xff]
    %v405 = vld [vmem:[#allocation7 + $0x620] sm:$0xff]
    %v406 = vld [vmem:[#allocation7 + $0x628] sm:$0xff]
    %v407 = vld [vmem:[#allocation7 + $0x630] sm:$0xff]
    %v408 = vld [vmem:[#allocation7 + $0x638] sm:$0xff]
    %v409 = vld [vmem:[#allocation7 + $0x640] sm:$0xff]
    %v410 = vld [vmem:[#allocation7 + $0x648] sm:$0xff]
    %v411 = vld [vmem:[#allocation7 + $0x650] sm:$0xff]
    %v412 = vld [vmem:[#allocation7 + $0x658] sm:$0xff]
    %v413 = vld [vmem:[#allocation7 + $0x660] sm:$0xff]
    %v414 = vld [vmem:[#allocation7 + $0x668] sm:$0xff]
    %v415 = vld [vmem:[#allocation7 + $0x670] sm:$0xff]
    %v416 = vld [vmem:[#allocation7 + $0x678] sm:$0xff]
    %v417 = vld [vmem:[#allocation7 + $0x680] sm:$0xff]
    %v418 = vld [vmem:[#allocation7 + $0x688] sm:$0xff]
    %v419 = vld [vmem:[#allocation7 + $0x690] sm:$0xff]
    %v420 = vld [vmem:[#allocation7 + $0x698] sm:$0xff]
    %v421 = vld [vmem:[#allocation7 + $0x6a0] sm:$0xff]
    %v422 = vld [vmem:[#allocation7 + $0x6a8] sm:$0xff]
    %v423 = vld [vmem:[#allocation7 + $0x6b0] sm:$0xff]
    %v424 = vld [vmem:[#allocation7 + $0x6b8] sm:$0xff]
    %v425 = vld [vmem:[#allocation7 + $0x6c0] sm:$0xff]
    %v426 = vld [vmem:[#allocation7 + $0x6c8] sm:$0xff]
    %v427 = vld [vmem:[#allocation7 + $0x6d0] sm:$0xff]
    %v428 = vld [vmem:[#allocation7 + $0x6d8] sm:$0xff]
    %v429 = vld [vmem:[#allocation7 + $0x6e0] sm:$0xff]
    %v430 = vld [vmem:[#allocation7 + $0x6e8] sm:$0xff]
    %v431 = vld [vmem:[#allocation7 + $0x6f0] sm:$0xff]
    %v432 = vld [vmem:[#allocation7 + $0x6f8] sm:$0xff]
    %v433 = vld [vmem:[#allocation7 + $0x700] sm:$0xff]
    %v434 = vld [vmem:[#allocation7 + $0x708] sm:$0xff]
    %v435 = vld [vmem:[#allocation7 + $0x710] sm:$0xff]
    %v436 = vld [vmem:[#allocation7 + $0x718] sm:$0xff]
    %v437 = vld [vmem:[#allocation7 + $0x720] sm:$0xff]
    %v438 = vld [vmem:[#allocation7 + $0x728] sm:$0xff]
    %v439 = vld [vmem:[#allocation7 + $0x730] sm:$0xff]
    %v440 = vld [vmem:[#allocation7 + $0x738] sm:$0xff]
    %v441 = vld [vmem:[#allocation7 + $0x740] sm:$0xff]
    %v442 = vld [vmem:[#allocation7 + $0x748] sm:$0xff]
    %v443 = vld [vmem:[#allocation7 + $0x750] sm:$0xff]
    %v444 = vld [vmem:[#allocation7 + $0x758] sm:$0xff]
    %v445 = vld [vmem:[#allocation7 + $0x760] sm:$0xff]
    %v446 = vld [vmem:[#allocation7 + $0x768] sm:$0xff]
    %v447 = vld [vmem:[#allocation7 + $0x770] sm:$0xff]
    %v448 = vld [vmem:[#allocation7 + $0x778] sm:$0xff]
    %v449 = vld [vmem:[#allocation7 + $0x780] sm:$0xff]
    %v450 = vld [vmem:[#allocation7 + $0x788] sm:$0xff]
    %v451 = vld [vmem:[#allocation7 + $0x790] sm:$0xff]
    %v452 = vld [vmem:[#allocation7 + $0x798] sm:$0xff]
    %v453 = vld [vmem:[#allocation7 + $0x7a0] sm:$0xff]
    %v454 = vld [vmem:[#allocation7 + $0x7a8] sm:$0xff]
    %v455 = vld [vmem:[#allocation7 + $0x7b0] sm:$0xff]
    %v456 = vld [vmem:[#allocation7 + $0x7b8] sm:$0xff]
    %v457 = vld [vmem:[#allocation7 + $0x7c0] sm:$0xff]
    %v458 = vld [vmem:[#allocation7 + $0x7c8] sm:$0xff]
    %v459 = vld [vmem:[#allocation7 + $0x7d0] sm:$0xff]
    %v460 = vld [vmem:[#allocation7 + $0x7d8] sm:$0xff]
    %v461 = vld [vmem:[#allocation7 + $0x7e0] sm:$0xff]
    %v462 = vld [vmem:[#allocation7 + $0x7e8] sm:$0xff]
    %v463 = vld [vmem:[#allocation7 + $0x7f0] sm:$0xff]
    %v464 = vld [vmem:[#allocation7 + $0x7f8] sm:$0xff]
    %v465 = vld [vmem:[#allocation7 + $0x800] sm:$0xff]
    %v466 = vld [vmem:[#allocation7 + $0x808] sm:$0xff]
    %v467 = vld [vmem:[#allocation7 + $0x810] sm:$0xff]
    %v468 = vld [vmem:[#allocation7 + $0x818] sm:$0xff]
    %v469 = vld [vmem:[#allocation7 + $0x820] sm:$0xff]
    %v470 = vld [vmem:[#allocation7 + $0x828] sm:$0xff]
    %v471 = vld [vmem:[#allocation7 + $0x830] sm:$0xff]
    %v472 = vld [vmem:[#allocation7 + $0x838] sm:$0xff]
    %v473 = vld [vmem:[#allocation7 + $0x840] sm:$0xff]
    %v474 = vld [vmem:[#allocation7 + $0x848] sm:$0xff]
    %v475 = vld [vmem:[#allocation7 + $0x850] sm:$0xff]
    %v476 = vld [vmem:[#allocation7 + $0x858] sm:$0xff]
    %v477 = vld [vmem:[#allocation7 + $0x860] sm:$0xff]
    %v478 = vld [vmem:[#allocation7 + $0x868] sm:$0xff]
    %v479 = vld [vmem:[#allocation7 + $0x870] sm:$0xff]
    %v480 = vld [vmem:[#allocation7 + $0x878] sm:$0xff]
    %v481 = vld [vmem:[#allocation7 + $0x880] sm:$0xff]
    %v482 = vld [vmem:[#allocation7 + $0x888] sm:$0xff]
    %v483 = vld [vmem:[#allocation7 + $0x890] sm:$0xff]
    %v484 = vld [vmem:[#allocation7 + $0x898] sm:$0xff]
    %v485 = vld [vmem:[#allocation7 + $0x8a0] sm:$0xff]
    %v486 = vld [vmem:[#allocation7 + $0x8a8] sm:$0xff]
    %v487 = vld [vmem:[#allocation7 + $0x8b0] sm:$0xff]
    %v488 = vld [vmem:[#allocation7 + $0x8b8] sm:$0xff]
    %v489 = vld [vmem:[#allocation7 + $0x8c0] sm:$0xff]
    %v490 = vld [vmem:[#allocation7 + $0x8c8] sm:$0xff]
    %v491 = vld [vmem:[#allocation7 + $0x8d0] sm:$0xff]
    %v492 = vld [vmem:[#allocation7 + $0x8d8] sm:$0xff]
    %v493 = vld [vmem:[#allocation7 + $0x8e0] sm:$0xff]
    %v494 = vld [vmem:[#allocation7 + $0x8e8] sm:$0xff]
    %v495 = vld [vmem:[#allocation7 + $0x8f0] sm:$0xff]
    %v496 = vld [vmem:[#allocation7 + $0x8f8] sm:$0xff]
    %v497 = vld [vmem:[#allocation7 + $0x900] sm:$0xff]
    %v498 = vld [vmem:[#allocation7 + $0x908] sm:$0xff]
    %v499 = vld [vmem:[#allocation7 + $0x910] sm:$0xff]
    %v500 = vld [vmem:[#allocation7 + $0x918] sm:$0xff]
    %v501 = vld [vmem:[#allocation7 + $0x920] sm:$0xff]
    %v502 = vld [vmem:[#allocation7 + $0x928] sm:$0xff]
    %v503 = vld [vmem:[#allocation7 + $0x930] sm:$0xff]
    %v504 = vld [vmem:[#allocation7 + $0x938] sm:$0xff]
    %v505 = vld [vmem:[#allocation7 + $0x940] sm:$0xff]
    %v506 = vld [vmem:[#allocation7 + $0x948] sm:$0xff]
    %v507 = vld [vmem:[#allocation7 + $0x950] sm:$0xff]
    %v508 = vld [vmem:[#allocation7 + $0x958] sm:$0xff]
    %v509 = vld [vmem:[#allocation7 + $0x960] sm:$0xff]
    %v510 = vld [vmem:[#allocation7 + $0x968] sm:$0xff]
    %v511 = vld [vmem:[#allocation7 + $0x970] sm:$0xff]
    %v512 = vld [vmem:[#allocation7 + $0x978] sm:$0xff]
    %v513 = vld [vmem:[#allocation7 + $0x980] sm:$0xff]
    %v514 = vld [vmem:[#allocation7 + $0x988] sm:$0xff]
    %v515 = vld [vmem:[#allocation7 + $0x990] sm:$0xff]
    %v516 = vld [vmem:[#allocation7 + $0x998] sm:$0xff]
    %v517 = vld [vmem:[#allocation7 + $0x9a0] sm:$0xff]
    %v518 = vld [vmem:[#allocation7 + $0x9a8] sm:$0xff]
    %v519 = vld [vmem:[#allocation7 + $0x9b0] sm:$0xff]
    %v520 = vld [vmem:[#allocation7 + $0x9b8] sm:$0xff]
    %v521 = vld [vmem:[#allocation7 + $0x9c0] sm:$0xff]
    %v522 = vld [vmem:[#allocation7 + $0x9c8] sm:$0xff]
    %v523 = vld [vmem:[#allocation7 + $0x9d0] sm:$0xff]
    %v524 = vld [vmem:[#allocation7 + $0x9d8] sm:$0xff]
    %v525 = vld [vmem:[#allocation7 + $0x9e0] sm:$0xff]
    %v526 = vld [vmem:[#allocation7 + $0x9e8] sm:$0xff]
    %v527 = vld [vmem:[#allocation7 + $0x9f0] sm:$0xff]
    %v528 = vld [vmem:[#allocation7 + $0x9f8] sm:$0xff]
    %v529 = vld [vmem:[#allocation7 + $0xa00] sm:$0xff]
    %v530 = vld [vmem:[#allocation7 + $0xa08] sm:$0xff]
    %v531 = vld [vmem:[#allocation7 + $0xa10] sm:$0xff]
    %v532 = vld [vmem:[#allocation7 + $0xa18] sm:$0xff]
    %v533 = vld [vmem:[#allocation7 + $0xa20] sm:$0xff]
    %v534 = vld [vmem:[#allocation7 + $0xa28] sm:$0xff]
    %v535 = vld [vmem:[#allocation7 + $0xa30] sm:$0xff]
    %v536 = vld [vmem:[#allocation7 + $0xa38] sm:$0xff]
    %v537 = vld [vmem:[#allocation7 + $0xa40] sm:$0xff]
    %v538 = vld [vmem:[#allocation7 + $0xa48] sm:$0xff]
    %v539 = vld [vmem:[#allocation7 + $0xa50] sm:$0xff]
    %v540 = vld [vmem:[#allocation7 + $0xa58] sm:$0xff]
    %v541 = vld [vmem:[#allocation7 + $0xa60] sm:$0xff]
    %v542 = vld [vmem:[#allocation7 + $0xa68] sm:$0xff]
    %v543 = vld [vmem:[#allocation7 + $0xa70] sm:$0xff]
    %v544 = vld [vmem:[#allocation7 + $0xa78] sm:$0xff]
    %v545 = vld [vmem:[#allocation7 + $0xa80] sm:$0xff]
    %v546 = vld [vmem:[#allocation7 + $0xa88] sm:$0xff]
    %v547 = vld [vmem:[#allocation7 + $0xa90] sm:$0xff]
    %v548 = vld [vmem:[#allocation7 + $0xa98] sm:$0xff]
    %v549 = vld [vmem:[#allocation7 + $0xaa0] sm:$0xff]
    %v550 = vld [vmem:[#allocation7 + $0xaa8] sm:$0xff]
    %v551 = vld [vmem:[#allocation7 + $0xab0] sm:$0xff]
    %v552 = vld [vmem:[#allocation7 + $0xab8] sm:$0xff]
    %v553 = vld [vmem:[#allocation7 + $0xac0] sm:$0xff]
    %v554 = vld [vmem:[#allocation7 + $0xac8] sm:$0xff]
    %v555 = vld [vmem:[#allocation7 + $0xad0] sm:$0xff]
    %v556 = vld [vmem:[#allocation7 + $0xad8] sm:$0xff]
    %v557 = vld [vmem:[#allocation7 + $0xae0] sm:$0xff]
    %v558 = vld [vmem:[#allocation7 + $0xae8] sm:$0xff]
    %v559 = vld [vmem:[#allocation7 + $0xaf0] sm:$0xff]
    %v560 = vld [vmem:[#allocation7 + $0xaf8] sm:$0xff]
    %v561 = vld [vmem:[#allocation7 + $0xb00] sm:$0xff]
    %v562 = vld [vmem:[#allocation7 + $0xb08] sm:$0xff]
    %v563 = vld [vmem:[#allocation7 + $0xb10] sm:$0xff]
    %v564 = vld [vmem:[#allocation7 + $0xb18] sm:$0xff]
    %v565 = vld [vmem:[#allocation7 + $0xb20] sm:$0xff]
    %v566 = vld [vmem:[#allocation7 + $0xb28] sm:$0xff]
    %v567 = vld [vmem:[#allocation7 + $0xb30] sm:$0xff]
    %v568 = vld [vmem:[#allocation7 + $0xb38] sm:$0xff]
    %v569 = vld [vmem:[#allocation7 + $0xb40] sm:$0xff]
    %v570 = vld [vmem:[#allocation7 + $0xb48] sm:$0xff]
    %v571 = vld [vmem:[#allocation7 + $0xb50] sm:$0xff]
    %v572 = vld [vmem:[#allocation7 + $0xb58] sm:$0xff]
    %v573 = vld [vmem:[#allocation7 + $0xb60] sm:$0xff]
    %v574 = vld [vmem:[#allocation7 + $0xb68] sm:$0xff]
    %v575 = vld [vmem:[#allocation7 + $0xb70] sm:$0xff]
    %v576 = vld [vmem:[#allocation7 + $0xb78] sm:$0xff]
    %v577 = vld [vmem:[#allocation7 + $0xb80] sm:$0xff]
    %v578 = vld [vmem:[#allocation7 + $0xb88] sm:$0xff]
    %v579 = vld [vmem:[#allocation7 + $0xb90] sm:$0xff]
    %v580 = vld [vmem:[#allocation7 + $0xb98] sm:$0xff]
    %v581 = vld [vmem:[#allocation7 + $0xba0] sm:$0xff]
    %v582 = vld [vmem:[#allocation7 + $0xba8] sm:$0xff]
    %v583 = vld [vmem:[#allocation7 + $0xbb0] sm:$0xff]
    %v584 = vld [vmem:[#allocation7 + $0xbb8] sm:$0xff]
    %v585 = vld [vmem:[#allocation7 + $0xbc0] sm:$0xff]
    %v586 = vld [vmem:[#allocation7 + $0xbc8] sm:$0xff]
    %v587 = vld [vmem:[#allocation7 + $0xbd0] sm:$0xff]
    %v588 = vld [vmem:[#allocation7 + $0xbd8] sm:$0xff]
    %v589 = vld [vmem:[#allocation7 + $0xbe0] sm:$0xff]
    %v590 = vld [vmem:[#allocation7 + $0xbe8] sm:$0xff]
    %v591 = vld [vmem:[#allocation7 + $0xbf0] sm:$0xff]
    %v592 = vld [vmem:[#allocation7 + $0xbf8] sm:$0xff]
    %v593 = vld [vmem:[#allocation7 + $0xc00] sm:$0xff]
    %v594 = vld [vmem:[#allocation7 + $0xc08] sm:$0xff]
    %v595 = vld [vmem:[#allocation7 + $0xc10] sm:$0xff]
    %v596 = vld [vmem:[#allocation7 + $0xc18] sm:$0xff]
    %v597 = vld [vmem:[#allocation7 + $0xc20] sm:$0xff]
    %v598 = vld [vmem:[#allocation7 + $0xc28] sm:$0xff]
    %v599 = vld [vmem:[#allocation7 + $0xc30] sm:$0xff]
    %v600 = vld [vmem:[#allocation7 + $0xc38] sm:$0xff]
    %v601 = vld [vmem:[#allocation7 + $0xc40] sm:$0xff]
    %v602 = vld [vmem:[#allocation7 + $0xc48] sm:$0xff]
    %v603 = vld [vmem:[#allocation7 + $0xc50] sm:$0xff]
    %v604 = vld [vmem:[#allocation7 + $0xc58] sm:$0xff]
    %v605 = vld [vmem:[#allocation7 + $0xc60] sm:$0xff]
    %v606 = vld [vmem:[#allocation7 + $0xc68] sm:$0xff]
    %v607 = vld [vmem:[#allocation7 + $0xc70] sm:$0xff]
    %v608 = vld [vmem:[#allocation7 + $0xc78] sm:$0xff]
    %v609 = vld [vmem:[#allocation7 + $0xc80] sm:$0xff]
    %v610 = vld [vmem:[#allocation7 + $0xc88] sm:$0xff]
    %v611 = vld [vmem:[#allocation7 + $0xc90] sm:$0xff]
    %v612 = vld [vmem:[#allocation7 + $0xc98] sm:$0xff]
    %v613 = vld [vmem:[#allocation7 + $0xca0] sm:$0xff]
    %v614 = vld [vmem:[#allocation7 + $0xca8] sm:$0xff]
    %v615 = vld [vmem:[#allocation7 + $0xcb0] sm:$0xff]
    %v616 = vld [vmem:[#allocation7 + $0xcb8] sm:$0xff]
    %v617 = vld [vmem:[#allocation7 + $0xcc0] sm:$0xff]
    %v618 = vld [vmem:[#allocation7 + $0xcc8] sm:$0xff]
    %v619 = vld [vmem:[#allocation7 + $0xcd0] sm:$0xff]
    %v620 = vld [vmem:[#allocation7 + $0xcd8] sm:$0xff]
    %v621 = vld [vmem:[#allocation7 + $0xce0] sm:$0xff]
    %v622 = vld [vmem:[#allocation7 + $0xce8] sm:$0xff]
    %v623 = vld [vmem:[#allocation7 + $0xcf0] sm:$0xff]
    %v624 = vld [vmem:[#allocation7 + $0xcf8] sm:$0xff]
    %v625 = vld [vmem:[#allocation7 + $0xd00] sm:$0xff]
    %v626 = vld [vmem:[#allocation7 + $0xd08] sm:$0xff]
    %v627 = vld [vmem:[#allocation7 + $0xd10] sm:$0xff]
    %v628 = vld [vmem:[#allocation7 + $0xd18] sm:$0xff]
    %v629 = vld [vmem:[#allocation7 + $0xd20] sm:$0xff]
    %v630 = vld [vmem:[#allocation7 + $0xd28] sm:$0xff]
    %v631 = vld [vmem:[#allocation7 + $0xd30] sm:$0xff]
    %v632 = vld [vmem:[#allocation7 + $0xd38] sm:$0xff]
    %v633 = vld [vmem:[#allocation7 + $0xd40] sm:$0xff]
    %v634 = vld [vmem:[#allocation7 + $0xd48] sm:$0xff]
    %v635 = vld [vmem:[#allocation7 + $0xd50] sm:$0xff]
    %v636 = vld [vmem:[#allocation7 + $0xd58] sm:$0xff]
    %v637 = vld [vmem:[#allocation7 + $0xd60] sm:$0xff]
    %v638 = vld [vmem:[#allocation7 + $0xd68] sm:$0xff]
    %v639 = vld [vmem:[#allocation7 + $0xd70] sm:$0xff]
    %v640 = vld [vmem:[#allocation7 + $0xd78] sm:$0xff]
    %v641 = vld [vmem:[#allocation7 + $0xd80] sm:$0xff]
    %v642 = vld [vmem:[#allocation7 + $0xd88] sm:$0xff]
    %v643 = vld [vmem:[#allocation7 + $0xd90] sm:$0xff]
    %v644 = vld [vmem:[#allocation7 + $0xd98] sm:$0xff]
    %v645 = vld [vmem:[#allocation7 + $0xda0] sm:$0xff]
    %v646 = vld [vmem:[#allocation7 + $0xda8] sm:$0xff]
    %v647 = vld [vmem:[#allocation7 + $0xdb0] sm:$0xff]
    %v648 = vld [vmem:[#allocation7 + $0xdb8] sm:$0xff]
    %v649 = vld [vmem:[#allocation7 + $0xdc0] sm:$0xff]
    %v650 = vld [vmem:[#allocation7 + $0xdc8] sm:$0xff]
    %v651 = vld [vmem:[#allocation7 + $0xdd0] sm:$0xff]
    %v652 = vld [vmem:[#allocation7 + $0xdd8] sm:$0xff]
    %v653 = vld [vmem:[#allocation7 + $0xde0] sm:$0xff]
    %v654 = vld [vmem:[#allocation7 + $0xde8] sm:$0xff]
    %v655 = vld [vmem:[#allocation7 + $0xdf0] sm:$0xff]
    %v656 = vld [vmem:[#allocation7 + $0xdf8] sm:$0xff]
    %v657 = vld [vmem:[#allocation7 + $0xe00] sm:$0xff]
    %v658 = vld [vmem:[#allocation7 + $0xe08] sm:$0xff]
    %v659 = vld [vmem:[#allocation7 + $0xe10] sm:$0xff]
    %v660 = vld [vmem:[#allocation7 + $0xe18] sm:$0xff]
    %v661 = vld [vmem:[#allocation7 + $0xe20] sm:$0xff]
    %v662 = vld [vmem:[#allocation7 + $0xe28] sm:$0xff]
    %v663 = vld [vmem:[#allocation7 + $0xe30] sm:$0xff]
    %v664 = vld [vmem:[#allocation7 + $0xe38] sm:$0xff]
    %v665 = vld [vmem:[#allocation7 + $0xe40] sm:$0xff]
    %v666 = vld [vmem:[#allocation7 + $0xe48] sm:$0xff]
    %v667 = vld [vmem:[#allocation7 + $0xe50] sm:$0xff]
    %v668 = vld [vmem:[#allocation7 + $0xe58] sm:$0xff]
    %v669 = vld [vmem:[#allocation7 + $0xe60] sm:$0xff]
    %v670 = vld [vmem:[#allocation7 + $0xe68] sm:$0xff]
    %v671 = vld [vmem:[#allocation7 + $0xe70] sm:$0xff]
    %v672 = vld [vmem:[#allocation7 + $0xe78] sm:$0xff]
    %v673 = vld [vmem:[#allocation7 + $0xe80] sm:$0xff]
    %v674 = vld [vmem:[#allocation7 + $0xe88] sm:$0xff]
    %v675 = vld [vmem:[#allocation7 + $0xe90] sm:$0xff]
    %v676 = vld [vmem:[#allocation7 + $0xe98] sm:$0xff]
    %v677 = vld [vmem:[#allocation7 + $0xea0] sm:$0xff]
    %v678 = vld [vmem:[#allocation7 + $0xea8] sm:$0xff]
    %v679 = vld [vmem:[#allocation7 + $0xeb0] sm:$0xff]
    %v680 = vld [vmem:[#allocation7 + $0xeb8] sm:$0xff]
    %v681 = vld [vmem:[#allocation7 + $0xec0] sm:$0xff]
    %v682 = vld [vmem:[#allocation7 + $0xec8] sm:$0xff]
    %v683 = vld [vmem:[#allocation7 + $0xed0] sm:$0xff]
    %v684 = vld [vmem:[#allocation7 + $0xed8] sm:$0xff]
    %v685 = vld [vmem:[#allocation7 + $0xee0] sm:$0xff]
    %v686 = vld [vmem:[#allocation7 + $0xee8] sm:$0xff]
    %v687 = vld [vmem:[#allocation7 + $0xef0] sm:$0xff]
    %v688 = vld [vmem:[#allocation7 + $0xef8] sm:$0xff]
    %v689 = vld [vmem:[#allocation7 + $0xf00] sm:$0xff]
    %v690 = vld [vmem:[#allocation7 + $0xf08] sm:$0xff]
    %v691 = vld [vmem:[#allocation7 + $0xf10] sm:$0xff]
    %v692 = vld [vmem:[#allocation7 + $0xf18] sm:$0xff]
    %v693 = vld [vmem:[#allocation7 + $0xf20] sm:$0xff]
    %v694 = vld [vmem:[#allocation7 + $0xf28] sm:$0xff]
    %v695 = vld [vmem:[#allocation7 + $0xf30] sm:$0xff]
    %v696 = vld [vmem:[#allocation7 + $0xf38] sm:$0xff]
    %v697 = vld [vmem:[#allocation7 + $0xf40] sm:$0xff]
    %v698 = vld [vmem:[#allocation7 + $0xf48] sm:$0xff]
    %v699 = vld [vmem:[#allocation7 + $0xf50] sm:$0xff]
    %v700 = vld [vmem:[#allocation7 + $0xf58] sm:$0xff]
    %v701 = vld [vmem:[#allocation7 + $0xf60] sm:$0xff]
    %v702 = vld [vmem:[#allocation7 + $0xf68] sm:$0xff]
    %v703 = vld [vmem:[#allocation7 + $0xf70] sm:$0xff]
    %v704 = vld [vmem:[#allocation7 + $0xf78] sm:$0xff]
    %v705 = vld [vmem:[#allocation7 + $0xf80] sm:$0xff]
    %v706 = vld [vmem:[#allocation7 + $0xf88] sm:$0xff]
    %v707 = vld [vmem:[#allocation7 + $0xf90] sm:$0xff]
    %v708 = vld [vmem:[#allocation7 + $0xf98] sm:$0xff]
    %v709 = vld [vmem:[#allocation7 + $0xfa0] sm:$0xff]
    %v710 = vld [vmem:[#allocation7 + $0xfa8] sm:$0xff]
    %v711 = vld [vmem:[#allocation7 + $0xfb0] sm:$0xff]
    %v712 = vld [vmem:[#allocation7 + $0xfb8] sm:$0xff]
    %v713 = vld [vmem:[#allocation7 + $0xfc0] sm:$0xff]
    %v714 = vld [vmem:[#allocation7 + $0xfc8] sm:$0xff]
    %v715 = vld [vmem:[#allocation7 + $0xfd0] sm:$0xff]
    %v716 = vld [vmem:[#allocation7 + $0xfd8] sm:$0xff]
    %v717 = vld [vmem:[#allocation7 + $0xfe0] sm:$0xff]
    %v718 = vld [vmem:[#allocation7 + $0xfe8] sm:$0xff]
    %v719 = vld [vmem:[#allocation7 + $0xff0] sm:$0xff]
    %v720 = vld [vmem:[#allocation7 + $0xff8] sm:$0xff]
    %v721 = vld [vmem:[#allocation8] sm:$0xf]
    %v723 = vlaneseq
    %v724 = vshrl.u32 %v723, 7
    %v725 = vsub.s32 0, %v724
    %v726 = vrot.slane %v721, %v725
    %v727 = vlaneseq
    %v728 = vshrl.u32 %v727, 7
    %v729 = vsub.s32 1, %v728
    %v730 = vrot.slane %v721, %v729
    %v731 = vlaneseq
    %v732 = vshrl.u32 %v731, 7
    %v733 = vsub.s32 2, %v732
    %v734 = vrot.slane %v721, %v733
    %v735 = vlaneseq
    %v736 = vshrl.u32 %v735, 7
    %v737 = vsub.s32 3, %v736
    %v738 = vrot.slane %v721, %v737
    %v1255 = vunpack.c.l.b16 %v209
    %v1256 = vunpack.c.h.b16 %v209
    %v1257 = vunpack.c.l.b16 %v210
    %v1258 = vunpack.c.h.b16 %v210
    %v1259 = vunpack.c.l.b16 %v211
    %v1260 = vunpack.c.h.b16 %v211
    %v1261 = vunpack.c.l.b16 %v212
    %v1262 = vunpack.c.h.b16 %v212
    %v1263 = vunpack.c.l.b16 %v213
    %v1264 = vunpack.c.h.b16 %v213
    %v1265 = vunpack.c.l.b16 %v214
    %v1266 = vunpack.c.h.b16 %v214
    %v1267 = vunpack.c.l.b16 %v215
    %v1268 = vunpack.c.h.b16 %v215
    %v1269 = vunpack.c.l.b16 %v216
    %v1270 = vunpack.c.h.b16 %v216
    %v1271 = vunpack.c.l.b16 %v217
    %v1272 = vunpack.c.h.b16 %v217
    %v1273 = vunpack.c.l.b16 %v218
    %v1274 = vunpack.c.h.b16 %v218
    %v1275 = vunpack.c.l.b16 %v219
    %v1276 = vunpack.c.h.b16 %v219
    %v1277 = vunpack.c.l.b16 %v220
    %v1278 = vunpack.c.h.b16 %v220
    %v1279 = vunpack.c.l.b16 %v221
    %v1280 = vunpack.c.h.b16 %v221
    %v1281 = vunpack.c.l.b16 %v222
    %v1282 = vunpack.c.h.b16 %v222
    %v1283 = vunpack.c.l.b16 %v223
    %v1284 = vunpack.c.h.b16 %v223
    %v1285 = vunpack.c.l.b16 %v224
    %v1286 = vunpack.c.h.b16 %v224
    %v1287 = vunpack.c.l.b16 %v225
    %v1288 = vunpack.c.h.b16 %v225
    %v1289 = vunpack.c.l.b16 %v226
    %v1290 = vunpack.c.h.b16 %v226
    %v1291 = vunpack.c.l.b16 %v227
    %v1292 = vunpack.c.h.b16 %v227
    %v1293 = vunpack.c.l.b16 %v228
    %v1294 = vunpack.c.h.b16 %v228
    %v1295 = vunpack.c.l.b16 %v229
    %v1296 = vunpack.c.h.b16 %v229
    %v1297 = vunpack.c.l.b16 %v230
    %v1298 = vunpack.c.h.b16 %v230
    %v1299 = vunpack.c.l.b16 %v231
    %v1300 = vunpack.c.h.b16 %v231
    %v1301 = vunpack.c.l.b16 %v232
    %v1302 = vunpack.c.h.b16 %v232
    %v1303 = vunpack.c.l.b16 %v233
    %v1304 = vunpack.c.h.b16 %v233
    %v1305 = vunpack.c.l.b16 %v234
    %v1306 = vunpack.c.h.b16 %v234
    %v1307 = vunpack.c.l.b16 %v235
    %v1308 = vunpack.c.h.b16 %v235
    %v1309 = vunpack.c.l.b16 %v236
    %v1310 = vunpack.c.h.b16 %v236
    %v1311 = vunpack.c.l.b16 %v237
    %v1312 = vunpack.c.h.b16 %v237
    %v1313 = vunpack.c.l.b16 %v238
    %v1314 = vunpack.c.h.b16 %v238
    %v1315 = vunpack.c.l.b16 %v239
    %v1316 = vunpack.c.h.b16 %v239
    %v1317 = vunpack.c.l.b16 %v240
    %v1318 = vunpack.c.h.b16 %v240
    %v1319 = vunpack.c.l.b16 %v241
    %v1320 = vunpack.c.h.b16 %v241
    %v1321 = vunpack.c.l.b16 %v242
    %v1322 = vunpack.c.h.b16 %v242
    %v1323 = vunpack.c.l.b16 %v243
    %v1324 = vunpack.c.h.b16 %v243
    %v1325 = vunpack.c.l.b16 %v244
    %v1326 = vunpack.c.h.b16 %v244
    %v1327 = vunpack.c.l.b16 %v245
    %v1328 = vunpack.c.h.b16 %v245
    %v1329 = vunpack.c.l.b16 %v246
    %v1330 = vunpack.c.h.b16 %v246
    %v1331 = vunpack.c.l.b16 %v247
    %v1332 = vunpack.c.h.b16 %v247
    %v1333 = vunpack.c.l.b16 %v248
    %v1334 = vunpack.c.h.b16 %v248
    %v1335 = vunpack.c.l.b16 %v249
    %v1336 = vunpack.c.h.b16 %v249
    %v1337 = vunpack.c.l.b16 %v250
    %v1338 = vunpack.c.h.b16 %v250
    %v1339 = vunpack.c.l.b16 %v251
    %v1340 = vunpack.c.h.b16 %v251
    %v1341 = vunpack.c.l.b16 %v252
    %v1342 = vunpack.c.h.b16 %v252
    %v1343 = vunpack.c.l.b16 %v253
    %v1344 = vunpack.c.h.b16 %v253
    %v1345 = vunpack.c.l.b16 %v254
    %v1346 = vunpack.c.h.b16 %v254
    %v1347 = vunpack.c.l.b16 %v255
    %v1348 = vunpack.c.h.b16 %v255
    %v1349 = vunpack.c.l.b16 %v256
    %v1350 = vunpack.c.h.b16 %v256
    %v1351 = vunpack.c.l.b16 %v257
    %v1352 = vunpack.c.h.b16 %v257
    %v1353 = vunpack.c.l.b16 %v258
    %v1354 = vunpack.c.h.b16 %v258
    %v1355 = vunpack.c.l.b16 %v259
    %v1356 = vunpack.c.h.b16 %v259
    %v1357 = vunpack.c.l.b16 %v260
    %v1358 = vunpack.c.h.b16 %v260
    %v1359 = vunpack.c.l.b16 %v261
    %v1360 = vunpack.c.h.b16 %v261
    %v1361 = vunpack.c.l.b16 %v262
    %v1362 = vunpack.c.h.b16 %v262
    %v1363 = vunpack.c.l.b16 %v263
    %v1364 = vunpack.c.h.b16 %v263
    %v1365 = vunpack.c.l.b16 %v264
    %v1366 = vunpack.c.h.b16 %v264
    %v1367 = vunpack.c.l.b16 %v265
    %v1368 = vunpack.c.h.b16 %v265
    %v1369 = vunpack.c.l.b16 %v266
    %v1370 = vunpack.c.h.b16 %v266
    %v1371 = vunpack.c.l.b16 %v267
    %v1372 = vunpack.c.h.b16 %v267
    %v1373 = vunpack.c.l.b16 %v268
    %v1374 = vunpack.c.h.b16 %v268
    %v1375 = vunpack.c.l.b16 %v269
    %v1376 = vunpack.c.h.b16 %v269
    %v1377 = vunpack.c.l.b16 %v270
    %v1378 = vunpack.c.h.b16 %v270
    %v1379 = vunpack.c.l.b16 %v271
    %v1380 = vunpack.c.h.b16 %v271
    %v1381 = vunpack.c.l.b16 %v272
    %v1382 = vunpack.c.h.b16 %v272
    %v1383 = vunpack.c.l.b16 %v273
    %v1384 = vunpack.c.h.b16 %v273
    %v1385 = vunpack.c.l.b16 %v274
    %v1386 = vunpack.c.h.b16 %v274
    %v1387 = vunpack.c.l.b16 %v275
    %v1388 = vunpack.c.h.b16 %v275
    %v1389 = vunpack.c.l.b16 %v276
    %v1390 = vunpack.c.h.b16 %v276
    %v1391 = vunpack.c.l.b16 %v277
    %v1392 = vunpack.c.h.b16 %v277
    %v1393 = vunpack.c.l.b16 %v278
    %v1394 = vunpack.c.h.b16 %v278
    %v1395 = vunpack.c.l.b16 %v279
    %v1396 = vunpack.c.h.b16 %v279
    %v1397 = vunpack.c.l.b16 %v280
    %v1398 = vunpack.c.h.b16 %v280
    %v1399 = vunpack.c.l.b16 %v281
    %v1400 = vunpack.c.h.b16 %v281
    %v1401 = vunpack.c.l.b16 %v282
    %v1402 = vunpack.c.h.b16 %v282
    %v1403 = vunpack.c.l.b16 %v283
    %v1404 = vunpack.c.h.b16 %v283
    %v1405 = vunpack.c.l.b16 %v284
    %v1406 = vunpack.c.h.b16 %v284
    %v1407 = vunpack.c.l.b16 %v285
    %v1408 = vunpack.c.h.b16 %v285
    %v1409 = vunpack.c.l.b16 %v286
    %v1410 = vunpack.c.h.b16 %v286
    %v1411 = vunpack.c.l.b16 %v287
    %v1412 = vunpack.c.h.b16 %v287
    %v1413 = vunpack.c.l.b16 %v288
    %v1414 = vunpack.c.h.b16 %v288
    %v1415 = vunpack.c.l.b16 %v289
    %v1416 = vunpack.c.h.b16 %v289
    %v1417 = vunpack.c.l.b16 %v290
    %v1418 = vunpack.c.h.b16 %v290
    %v1419 = vunpack.c.l.b16 %v291
    %v1420 = vunpack.c.h.b16 %v291
    %v1421 = vunpack.c.l.b16 %v292
    %v1422 = vunpack.c.h.b16 %v292
    %v1423 = vunpack.c.l.b16 %v293
    %v1424 = vunpack.c.h.b16 %v293
    %v1425 = vunpack.c.l.b16 %v294
    %v1426 = vunpack.c.h.b16 %v294
    %v1427 = vunpack.c.l.b16 %v295
    %v1428 = vunpack.c.h.b16 %v295
    %v1429 = vunpack.c.l.b16 %v296
    %v1430 = vunpack.c.h.b16 %v296
    %v1431 = vunpack.c.l.b16 %v297
    %v1432 = vunpack.c.h.b16 %v297
    %v1433 = vunpack.c.l.b16 %v298
    %v1434 = vunpack.c.h.b16 %v298
    %v1435 = vunpack.c.l.b16 %v299
    %v1436 = vunpack.c.h.b16 %v299
    %v1437 = vunpack.c.l.b16 %v300
    %v1438 = vunpack.c.h.b16 %v300
    %v1439 = vunpack.c.l.b16 %v301
    %v1440 = vunpack.c.h.b16 %v301
    %v1441 = vunpack.c.l.b16 %v302
    %v1442 = vunpack.c.h.b16 %v302
    %v1443 = vunpack.c.l.b16 %v303
    %v1444 = vunpack.c.h.b16 %v303
    %v1445 = vunpack.c.l.b16 %v304
    %v1446 = vunpack.c.h.b16 %v304
    %v1447 = vunpack.c.l.b16 %v305
    %v1448 = vunpack.c.h.b16 %v305
    %v1449 = vunpack.c.l.b16 %v306
    %v1450 = vunpack.c.h.b16 %v306
    %v1451 = vunpack.c.l.b16 %v307
    %v1452 = vunpack.c.h.b16 %v307
    %v1453 = vunpack.c.l.b16 %v308
    %v1454 = vunpack.c.h.b16 %v308
    %v1455 = vunpack.c.l.b16 %v309
    %v1456 = vunpack.c.h.b16 %v309
    %v1457 = vunpack.c.l.b16 %v310
    %v1458 = vunpack.c.h.b16 %v310
    %v1459 = vunpack.c.l.b16 %v311
    %v1460 = vunpack.c.h.b16 %v311
    %v1461 = vunpack.c.l.b16 %v312
    %v1462 = vunpack.c.h.b16 %v312
    %v1463 = vunpack.c.l.b16 %v313
    %v1464 = vunpack.c.h.b16 %v313
    %v1465 = vunpack.c.l.b16 %v314
    %v1466 = vunpack.c.h.b16 %v314
    %v1467 = vunpack.c.l.b16 %v315
    %v1468 = vunpack.c.h.b16 %v315
    %v1469 = vunpack.c.l.b16 %v316
    %v1470 = vunpack.c.h.b16 %v316
    %v1471 = vunpack.c.l.b16 %v317
    %v1472 = vunpack.c.h.b16 %v317
    %v1473 = vunpack.c.l.b16 %v318
    %v1474 = vunpack.c.h.b16 %v318
    %v1475 = vunpack.c.l.b16 %v319
    %v1476 = vunpack.c.h.b16 %v319
    %v1477 = vunpack.c.l.b16 %v320
    %v1478 = vunpack.c.h.b16 %v320
    %v1479 = vunpack.c.l.b16 %v321
    %v1480 = vunpack.c.h.b16 %v321
    %v1481 = vunpack.c.l.b16 %v322
    %v1482 = vunpack.c.h.b16 %v322
    %v1483 = vunpack.c.l.b16 %v323
    %v1484 = vunpack.c.h.b16 %v323
    %v1485 = vunpack.c.l.b16 %v324
    %v1486 = vunpack.c.h.b16 %v324
    %v1487 = vunpack.c.l.b16 %v325
    %v1488 = vunpack.c.h.b16 %v325
    %v1489 = vunpack.c.l.b16 %v326
    %v1490 = vunpack.c.h.b16 %v326
    %v1491 = vunpack.c.l.b16 %v327
    %v1492 = vunpack.c.h.b16 %v327
    %v1493 = vunpack.c.l.b16 %v328
    %v1494 = vunpack.c.h.b16 %v328
    %v1495 = vunpack.c.l.b16 %v329
    %v1496 = vunpack.c.h.b16 %v329
    %v1497 = vunpack.c.l.b16 %v330
    %v1498 = vunpack.c.h.b16 %v330
    %v1499 = vunpack.c.l.b16 %v331
    %v1500 = vunpack.c.h.b16 %v331
    %v1501 = vunpack.c.l.b16 %v332
    %v1502 = vunpack.c.h.b16 %v332
    %v1503 = vunpack.c.l.b16 %v333
    %v1504 = vunpack.c.h.b16 %v333
    %v1505 = vunpack.c.l.b16 %v334
    %v1506 = vunpack.c.h.b16 %v334
    %v1507 = vunpack.c.l.b16 %v335
    %v1508 = vunpack.c.h.b16 %v335
    %v1509 = vunpack.c.l.b16 %v336
    %v1510 = vunpack.c.h.b16 %v336
    %v1511 = vunpack.c.l.b16 %v337
    %v1512 = vunpack.c.h.b16 %v337
    %v1513 = vunpack.c.l.b16 %v338
    %v1514 = vunpack.c.h.b16 %v338
    %v1515 = vunpack.c.l.b16 %v339
    %v1516 = vunpack.c.h.b16 %v339
    %v1517 = vunpack.c.l.b16 %v340
    %v1518 = vunpack.c.h.b16 %v340
    %v1519 = vunpack.c.l.b16 %v341
    %v1520 = vunpack.c.h.b16 %v341
    %v1521 = vunpack.c.l.b16 %v342
    %v1522 = vunpack.c.h.b16 %v342
    %v1523 = vunpack.c.l.b16 %v343
    %v1524 = vunpack.c.h.b16 %v343
    %v1525 = vunpack.c.l.b16 %v344
    %v1526 = vunpack.c.h.b16 %v344
    %v1527 = vunpack.c.l.b16 %v345
    %v1528 = vunpack.c.h.b16 %v345
    %v1529 = vunpack.c.l.b16 %v346
    %v1530 = vunpack.c.h.b16 %v346
    %v1531 = vunpack.c.l.b16 %v347
    %v1532 = vunpack.c.h.b16 %v347
    %v1533 = vunpack.c.l.b16 %v348
    %v1534 = vunpack.c.h.b16 %v348
    %v1535 = vunpack.c.l.b16 %v349
    %v1536 = vunpack.c.h.b16 %v349
    %v1537 = vunpack.c.l.b16 %v350
    %v1538 = vunpack.c.h.b16 %v350
    %v1539 = vunpack.c.l.b16 %v351
    %v1540 = vunpack.c.h.b16 %v351
    %v1541 = vunpack.c.l.b16 %v352
    %v1542 = vunpack.c.h.b16 %v352
    %v1543 = vunpack.c.l.b16 %v353
    %v1544 = vunpack.c.h.b16 %v353
    %v1545 = vunpack.c.l.b16 %v354
    %v1546 = vunpack.c.h.b16 %v354
    %v1547 = vunpack.c.l.b16 %v355
    %v1548 = vunpack.c.h.b16 %v355
    %v1549 = vunpack.c.l.b16 %v356
    %v1550 = vunpack.c.h.b16 %v356
    %v1551 = vunpack.c.l.b16 %v357
    %v1552 = vunpack.c.h.b16 %v357
    %v1553 = vunpack.c.l.b16 %v358
    %v1554 = vunpack.c.h.b16 %v358
    %v1555 = vunpack.c.l.b16 %v359
    %v1556 = vunpack.c.h.b16 %v359
    %v1557 = vunpack.c.l.b16 %v360
    %v1558 = vunpack.c.h.b16 %v360
    %v1559 = vunpack.c.l.b16 %v361
    %v1560 = vunpack.c.h.b16 %v361
    %v1561 = vunpack.c.l.b16 %v362
    %v1562 = vunpack.c.h.b16 %v362
    %v1563 = vunpack.c.l.b16 %v363
    %v1564 = vunpack.c.h.b16 %v363
    %v1565 = vunpack.c.l.b16 %v364
    %v1566 = vunpack.c.h.b16 %v364
    %v1567 = vunpack.c.l.b16 %v365
    %v1568 = vunpack.c.h.b16 %v365
    %v1569 = vunpack.c.l.b16 %v366
    %v1570 = vunpack.c.h.b16 %v366
    %v1571 = vunpack.c.l.b16 %v367
    %v1572 = vunpack.c.h.b16 %v367
    %v1573 = vunpack.c.l.b16 %v368
    %v1574 = vunpack.c.h.b16 %v368
    %v1575 = vunpack.c.l.b16 %v369
    %v1576 = vunpack.c.h.b16 %v369
    %v1577 = vunpack.c.l.b16 %v370
    %v1578 = vunpack.c.h.b16 %v370
    %v1579 = vunpack.c.l.b16 %v371
    %v1580 = vunpack.c.h.b16 %v371
    %v1581 = vunpack.c.l.b16 %v372
    %v1582 = vunpack.c.h.b16 %v372
    %v1583 = vunpack.c.l.b16 %v373
    %v1584 = vunpack.c.h.b16 %v373
    %v1585 = vunpack.c.l.b16 %v374
    %v1586 = vunpack.c.h.b16 %v374
    %v1587 = vunpack.c.l.b16 %v375
    %v1588 = vunpack.c.h.b16 %v375
    %v1589 = vunpack.c.l.b16 %v376
    %v1590 = vunpack.c.h.b16 %v376
    %v1591 = vunpack.c.l.b16 %v377
    %v1592 = vunpack.c.h.b16 %v377
    %v1593 = vunpack.c.l.b16 %v378
    %v1594 = vunpack.c.h.b16 %v378
    %v1595 = vunpack.c.l.b16 %v379
    %v1596 = vunpack.c.h.b16 %v379
    %v1597 = vunpack.c.l.b16 %v380
    %v1598 = vunpack.c.h.b16 %v380
    %v1599 = vunpack.c.l.b16 %v381
    %v1600 = vunpack.c.h.b16 %v381
    %v1601 = vunpack.c.l.b16 %v382
    %v1602 = vunpack.c.h.b16 %v382
    %v1603 = vunpack.c.l.b16 %v383
    %v1604 = vunpack.c.h.b16 %v383
    %v1605 = vunpack.c.l.b16 %v384
    %v1606 = vunpack.c.h.b16 %v384
    %v1607 = vunpack.c.l.b16 %v385
    %v1608 = vunpack.c.h.b16 %v385
    %v1609 = vunpack.c.l.b16 %v386
    %v1610 = vunpack.c.h.b16 %v386
    %v1611 = vunpack.c.l.b16 %v387
    %v1612 = vunpack.c.h.b16 %v387
    %v1613 = vunpack.c.l.b16 %v388
    %v1614 = vunpack.c.h.b16 %v388
    %v1615 = vunpack.c.l.b16 %v389
    %v1616 = vunpack.c.h.b16 %v389
    %v1617 = vunpack.c.l.b16 %v390
    %v1618 = vunpack.c.h.b16 %v390
    %v1619 = vunpack.c.l.b16 %v391
    %v1620 = vunpack.c.h.b16 %v391
    %v1621 = vunpack.c.l.b16 %v392
    %v1622 = vunpack.c.h.b16 %v392
    %v1623 = vunpack.c.l.b16 %v393
    %v1624 = vunpack.c.h.b16 %v393
    %v1625 = vunpack.c.l.b16 %v394
    %v1626 = vunpack.c.h.b16 %v394
    %v1627 = vunpack.c.l.b16 %v395
    %v1628 = vunpack.c.h.b16 %v395
    %v1629 = vunpack.c.l.b16 %v396
    %v1630 = vunpack.c.h.b16 %v396
    %v1631 = vunpack.c.l.b16 %v397
    %v1632 = vunpack.c.h.b16 %v397
    %v1633 = vunpack.c.l.b16 %v398
    %v1634 = vunpack.c.h.b16 %v398
    %v1635 = vunpack.c.l.b16 %v399
    %v1636 = vunpack.c.h.b16 %v399
    %v1637 = vunpack.c.l.b16 %v400
    %v1638 = vunpack.c.h.b16 %v400
    %v1639 = vunpack.c.l.b16 %v401
    %v1640 = vunpack.c.h.b16 %v401
    %v1641 = vunpack.c.l.b16 %v402
    %v1642 = vunpack.c.h.b16 %v402
    %v1643 = vunpack.c.l.b16 %v403
    %v1644 = vunpack.c.h.b16 %v403
    %v1645 = vunpack.c.l.b16 %v404
    %v1646 = vunpack.c.h.b16 %v404
    %v1647 = vunpack.c.l.b16 %v405
    %v1648 = vunpack.c.h.b16 %v405
    %v1649 = vunpack.c.l.b16 %v406
    %v1650 = vunpack.c.h.b16 %v406
    %v1651 = vunpack.c.l.b16 %v407
    %v1652 = vunpack.c.h.b16 %v407
    %v1653 = vunpack.c.l.b16 %v408
    %v1654 = vunpack.c.h.b16 %v408
    %v1655 = vunpack.c.l.b16 %v409
    %v1656 = vunpack.c.h.b16 %v409
    %v1657 = vunpack.c.l.b16 %v410
    %v1658 = vunpack.c.h.b16 %v410
    %v1659 = vunpack.c.l.b16 %v411
    %v1660 = vunpack.c.h.b16 %v411
    %v1661 = vunpack.c.l.b16 %v412
    %v1662 = vunpack.c.h.b16 %v412
    %v1663 = vunpack.c.l.b16 %v413
    %v1664 = vunpack.c.h.b16 %v413
    %v1665 = vunpack.c.l.b16 %v414
    %v1666 = vunpack.c.h.b16 %v414
    %v1667 = vunpack.c.l.b16 %v415
    %v1668 = vunpack.c.h.b16 %v415
    %v1669 = vunpack.c.l.b16 %v416
    %v1670 = vunpack.c.h.b16 %v416
    %v1671 = vunpack.c.l.b16 %v417
    %v1672 = vunpack.c.h.b16 %v417
    %v1673 = vunpack.c.l.b16 %v418
    %v1674 = vunpack.c.h.b16 %v418
    %v1675 = vunpack.c.l.b16 %v419
    %v1676 = vunpack.c.h.b16 %v419
    %v1677 = vunpack.c.l.b16 %v420
    %v1678 = vunpack.c.h.b16 %v420
    %v1679 = vunpack.c.l.b16 %v421
    %v1680 = vunpack.c.h.b16 %v421
    %v1681 = vunpack.c.l.b16 %v422
    %v1682 = vunpack.c.h.b16 %v422
    %v1683 = vunpack.c.l.b16 %v423
    %v1684 = vunpack.c.h.b16 %v423
    %v1685 = vunpack.c.l.b16 %v424
    %v1686 = vunpack.c.h.b16 %v424
    %v1687 = vunpack.c.l.b16 %v425
    %v1688 = vunpack.c.h.b16 %v425
    %v1689 = vunpack.c.l.b16 %v426
    %v1690 = vunpack.c.h.b16 %v426
    %v1691 = vunpack.c.l.b16 %v427
    %v1692 = vunpack.c.h.b16 %v427
    %v1693 = vunpack.c.l.b16 %v428
    %v1694 = vunpack.c.h.b16 %v428
    %v1695 = vunpack.c.l.b16 %v429
    %v1696 = vunpack.c.h.b16 %v429
    %v1697 = vunpack.c.l.b16 %v430
    %v1698 = vunpack.c.h.b16 %v430
    %v1699 = vunpack.c.l.b16 %v431
    %v1700 = vunpack.c.h.b16 %v431
    %v1701 = vunpack.c.l.b16 %v432
    %v1702 = vunpack.c.h.b16 %v432
    %v1703 = vunpack.c.l.b16 %v433
    %v1704 = vunpack.c.h.b16 %v433
    %v1705 = vunpack.c.l.b16 %v434
    %v1706 = vunpack.c.h.b16 %v434
    %v1707 = vunpack.c.l.b16 %v435
    %v1708 = vunpack.c.h.b16 %v435
    %v1709 = vunpack.c.l.b16 %v436
    %v1710 = vunpack.c.h.b16 %v436
    %v1711 = vunpack.c.l.b16 %v437
    %v1712 = vunpack.c.h.b16 %v437
    %v1713 = vunpack.c.l.b16 %v438
    %v1714 = vunpack.c.h.b16 %v438
    %v1715 = vunpack.c.l.b16 %v439
    %v1716 = vunpack.c.h.b16 %v439
    %v1717 = vunpack.c.l.b16 %v440
    %v1718 = vunpack.c.h.b16 %v440
    %v1719 = vunpack.c.l.b16 %v441
    %v1720 = vunpack.c.h.b16 %v441
    %v1721 = vunpack.c.l.b16 %v442
    %v1722 = vunpack.c.h.b16 %v442
    %v1723 = vunpack.c.l.b16 %v443
    %v1724 = vunpack.c.h.b16 %v443
    %v1725 = vunpack.c.l.b16 %v444
    %v1726 = vunpack.c.h.b16 %v444
    %v1727 = vunpack.c.l.b16 %v445
    %v1728 = vunpack.c.h.b16 %v445
    %v1729 = vunpack.c.l.b16 %v446
    %v1730 = vunpack.c.h.b16 %v446
    %v1731 = vunpack.c.l.b16 %v447
    %v1732 = vunpack.c.h.b16 %v447
    %v1733 = vunpack.c.l.b16 %v448
    %v1734 = vunpack.c.h.b16 %v448
    %v1735 = vunpack.c.l.b16 %v449
    %v1736 = vunpack.c.h.b16 %v449
    %v1737 = vunpack.c.l.b16 %v450
    %v1738 = vunpack.c.h.b16 %v450
    %v1739 = vunpack.c.l.b16 %v451
    %v1740 = vunpack.c.h.b16 %v451
    %v1741 = vunpack.c.l.b16 %v452
    %v1742 = vunpack.c.h.b16 %v452
    %v1743 = vunpack.c.l.b16 %v453
    %v1744 = vunpack.c.h.b16 %v453
    %v1745 = vunpack.c.l.b16 %v454
    %v1746 = vunpack.c.h.b16 %v454
    %v1747 = vunpack.c.l.b16 %v455
    %v1748 = vunpack.c.h.b16 %v455
    %v1749 = vunpack.c.l.b16 %v456
    %v1750 = vunpack.c.h.b16 %v456
    %v1751 = vunpack.c.l.b16 %v457
    %v1752 = vunpack.c.h.b16 %v457
    %v1753 = vunpack.c.l.b16 %v458
    %v1754 = vunpack.c.h.b16 %v458
    %v1755 = vunpack.c.l.b16 %v459
    %v1756 = vunpack.c.h.b16 %v459
    %v1757 = vunpack.c.l.b16 %v460
    %v1758 = vunpack.c.h.b16 %v460
    %v1759 = vunpack.c.l.b16 %v461
    %v1760 = vunpack.c.h.b16 %v461
    %v1761 = vunpack.c.l.b16 %v462
    %v1762 = vunpack.c.h.b16 %v462
    %v1763 = vunpack.c.l.b16 %v463
    %v1764 = vunpack.c.h.b16 %v463
    %v1765 = vunpack.c.l.b16 %v464
    %v1766 = vunpack.c.h.b16 %v464
    %v1767 = vunpack.c.l.b16 %v465
    %v1768 = vunpack.c.h.b16 %v465
    %v1769 = vunpack.c.l.b16 %v466
    %v1770 = vunpack.c.h.b16 %v466
    %v1771 = vunpack.c.l.b16 %v467
    %v1772 = vunpack.c.h.b16 %v467
    %v1773 = vunpack.c.l.b16 %v468
    %v1774 = vunpack.c.h.b16 %v468
    %v1775 = vunpack.c.l.b16 %v469
    %v1776 = vunpack.c.h.b16 %v469
    %v1777 = vunpack.c.l.b16 %v470
    %v1778 = vunpack.c.h.b16 %v470
    %v1779 = vunpack.c.l.b16 %v471
    %v1780 = vunpack.c.h.b16 %v471
    %v1781 = vunpack.c.l.b16 %v472
    %v1782 = vunpack.c.h.b16 %v472
    %v1783 = vunpack.c.l.b16 %v473
    %v1784 = vunpack.c.h.b16 %v473
    %v1785 = vunpack.c.l.b16 %v474
    %v1786 = vunpack.c.h.b16 %v474
    %v1787 = vunpack.c.l.b16 %v475
    %v1788 = vunpack.c.h.b16 %v475
    %v1789 = vunpack.c.l.b16 %v476
    %v1790 = vunpack.c.h.b16 %v476
    %v1791 = vunpack.c.l.b16 %v477
    %v1792 = vunpack.c.h.b16 %v477
    %v1793 = vunpack.c.l.b16 %v478
    %v1794 = vunpack.c.h.b16 %v478
    %v1795 = vunpack.c.l.b16 %v479
    %v1796 = vunpack.c.h.b16 %v479
    %v1797 = vunpack.c.l.b16 %v480
    %v1798 = vunpack.c.h.b16 %v480
    %v1799 = vunpack.c.l.b16 %v481
    %v1800 = vunpack.c.h.b16 %v481
    %v1801 = vunpack.c.l.b16 %v482
    %v1802 = vunpack.c.h.b16 %v482
    %v1803 = vunpack.c.l.b16 %v483
    %v1804 = vunpack.c.h.b16 %v483
    %v1805 = vunpack.c.l.b16 %v484
    %v1806 = vunpack.c.h.b16 %v484
    %v1807 = vunpack.c.l.b16 %v485
    %v1808 = vunpack.c.h.b16 %v485
    %v1809 = vunpack.c.l.b16 %v486
    %v1810 = vunpack.c.h.b16 %v486
    %v1811 = vunpack.c.l.b16 %v487
    %v1812 = vunpack.c.h.b16 %v487
    %v1813 = vunpack.c.l.b16 %v488
    %v1814 = vunpack.c.h.b16 %v488
    %v1815 = vunpack.c.l.b16 %v489
    %v1816 = vunpack.c.h.b16 %v489
    %v1817 = vunpack.c.l.b16 %v490
    %v1818 = vunpack.c.h.b16 %v490
    %v1819 = vunpack.c.l.b16 %v491
    %v1820 = vunpack.c.h.b16 %v491
    %v1821 = vunpack.c.l.b16 %v492
    %v1822 = vunpack.c.h.b16 %v492
    %v1823 = vunpack.c.l.b16 %v493
    %v1824 = vunpack.c.h.b16 %v493
    %v1825 = vunpack.c.l.b16 %v494
    %v1826 = vunpack.c.h.b16 %v494
    %v1827 = vunpack.c.l.b16 %v495
    %v1828 = vunpack.c.h.b16 %v495
    %v1829 = vunpack.c.l.b16 %v496
    %v1830 = vunpack.c.h.b16 %v496
    %v1831 = vunpack.c.l.b16 %v497
    %v1832 = vunpack.c.h.b16 %v497
    %v1833 = vunpack.c.l.b16 %v498
    %v1834 = vunpack.c.h.b16 %v498
    %v1835 = vunpack.c.l.b16 %v499
    %v1836 = vunpack.c.h.b16 %v499
    %v1837 = vunpack.c.l.b16 %v500
    %v1838 = vunpack.c.h.b16 %v500
    %v1839 = vunpack.c.l.b16 %v501
    %v1840 = vunpack.c.h.b16 %v501
    %v1841 = vunpack.c.l.b16 %v502
    %v1842 = vunpack.c.h.b16 %v502
    %v1843 = vunpack.c.l.b16 %v503
    %v1844 = vunpack.c.h.b16 %v503
    %v1845 = vunpack.c.l.b16 %v504
    %v1846 = vunpack.c.h.b16 %v504
    %v1847 = vunpack.c.l.b16 %v505
    %v1848 = vunpack.c.h.b16 %v505
    %v1849 = vunpack.c.l.b16 %v506
    %v1850 = vunpack.c.h.b16 %v506
    %v1851 = vunpack.c.l.b16 %v507
    %v1852 = vunpack.c.h.b16 %v507
    %v1853 = vunpack.c.l.b16 %v508
    %v1854 = vunpack.c.h.b16 %v508
    %v1855 = vunpack.c.l.b16 %v509
    %v1856 = vunpack.c.h.b16 %v509
    %v1857 = vunpack.c.l.b16 %v510
    %v1858 = vunpack.c.h.b16 %v510
    %v1859 = vunpack.c.l.b16 %v511
    %v1860 = vunpack.c.h.b16 %v511
    %v1861 = vunpack.c.l.b16 %v512
    %v1862 = vunpack.c.h.b16 %v512
    %v1863 = vunpack.c.l.b16 %v513
    %v1864 = vunpack.c.h.b16 %v513
    %v1865 = vunpack.c.l.b16 %v514
    %v1866 = vunpack.c.h.b16 %v514
    %v1867 = vunpack.c.l.b16 %v515
    %v1868 = vunpack.c.h.b16 %v515
    %v1869 = vunpack.c.l.b16 %v516
    %v1870 = vunpack.c.h.b16 %v516
    %v1871 = vunpack.c.l.b16 %v517
    %v1872 = vunpack.c.h.b16 %v517
    %v1873 = vunpack.c.l.b16 %v518
    %v1874 = vunpack.c.h.b16 %v518
    %v1875 = vunpack.c.l.b16 %v519
    %v1876 = vunpack.c.h.b16 %v519
    %v1877 = vunpack.c.l.b16 %v520
    %v1878 = vunpack.c.h.b16 %v520
    %v1879 = vunpack.c.l.b16 %v521
    %v1880 = vunpack.c.h.b16 %v521
    %v1881 = vunpack.c.l.b16 %v522
    %v1882 = vunpack.c.h.b16 %v522
    %v1883 = vunpack.c.l.b16 %v523
    %v1884 = vunpack.c.h.b16 %v523
    %v1885 = vunpack.c.l.b16 %v524
    %v1886 = vunpack.c.h.b16 %v524
    %v1887 = vunpack.c.l.b16 %v525
    %v1888 = vunpack.c.h.b16 %v525
    %v1889 = vunpack.c.l.b16 %v526
    %v1890 = vunpack.c.h.b16 %v526
    %v1891 = vunpack.c.l.b16 %v527
    %v1892 = vunpack.c.h.b16 %v527
    %v1893 = vunpack.c.l.b16 %v528
    %v1894 = vunpack.c.h.b16 %v528
    %v1895 = vunpack.c.l.b16 %v529
    %v1896 = vunpack.c.h.b16 %v529
    %v1897 = vunpack.c.l.b16 %v530
    %v1898 = vunpack.c.h.b16 %v530
    %v1899 = vunpack.c.l.b16 %v531
    %v1900 = vunpack.c.h.b16 %v531
    %v1901 = vunpack.c.l.b16 %v532
    %v1902 = vunpack.c.h.b16 %v532
    %v1903 = vunpack.c.l.b16 %v533
    %v1904 = vunpack.c.h.b16 %v533
    %v1905 = vunpack.c.l.b16 %v534
    %v1906 = vunpack.c.h.b16 %v534
    %v1907 = vunpack.c.l.b16 %v535
    %v1908 = vunpack.c.h.b16 %v535
    %v1909 = vunpack.c.l.b16 %v536
    %v1910 = vunpack.c.h.b16 %v536
    %v1911 = vunpack.c.l.b16 %v537
    %v1912 = vunpack.c.h.b16 %v537
    %v1913 = vunpack.c.l.b16 %v538
    %v1914 = vunpack.c.h.b16 %v538
    %v1915 = vunpack.c.l.b16 %v539
    %v1916 = vunpack.c.h.b16 %v539
    %v1917 = vunpack.c.l.b16 %v540
    %v1918 = vunpack.c.h.b16 %v540
    %v1919 = vunpack.c.l.b16 %v541
    %v1920 = vunpack.c.h.b16 %v541
    %v1921 = vunpack.c.l.b16 %v542
    %v1922 = vunpack.c.h.b16 %v542
    %v1923 = vunpack.c.l.b16 %v543
    %v1924 = vunpack.c.h.b16 %v543
    %v1925 = vunpack.c.l.b16 %v544
    %v1926 = vunpack.c.h.b16 %v544
    %v1927 = vunpack.c.l.b16 %v545
    %v1928 = vunpack.c.h.b16 %v545
    %v1929 = vunpack.c.l.b16 %v546
    %v1930 = vunpack.c.h.b16 %v546
    %v1931 = vunpack.c.l.b16 %v547
    %v1932 = vunpack.c.h.b16 %v547
    %v1933 = vunpack.c.l.b16 %v548
    %v1934 = vunpack.c.h.b16 %v548
    %v1935 = vunpack.c.l.b16 %v549
    %v1936 = vunpack.c.h.b16 %v549
    %v1937 = vunpack.c.l.b16 %v550
    %v1938 = vunpack.c.h.b16 %v550
    %v1939 = vunpack.c.l.b16 %v551
    %v1940 = vunpack.c.h.b16 %v551
    %v1941 = vunpack.c.l.b16 %v552
    %v1942 = vunpack.c.h.b16 %v552
    %v1943 = vunpack.c.l.b16 %v553
    %v1944 = vunpack.c.h.b16 %v553
    %v1945 = vunpack.c.l.b16 %v554
    %v1946 = vunpack.c.h.b16 %v554
    %v1947 = vunpack.c.l.b16 %v555
    %v1948 = vunpack.c.h.b16 %v555
    %v1949 = vunpack.c.l.b16 %v556
    %v1950 = vunpack.c.h.b16 %v556
    %v1951 = vunpack.c.l.b16 %v557
    %v1952 = vunpack.c.h.b16 %v557
    %v1953 = vunpack.c.l.b16 %v558
    %v1954 = vunpack.c.h.b16 %v558
    %v1955 = vunpack.c.l.b16 %v559
    %v1956 = vunpack.c.h.b16 %v559
    %v1957 = vunpack.c.l.b16 %v560
    %v1958 = vunpack.c.h.b16 %v560
    %v1959 = vunpack.c.l.b16 %v561
    %v1960 = vunpack.c.h.b16 %v561
    %v1961 = vunpack.c.l.b16 %v562
    %v1962 = vunpack.c.h.b16 %v562
    %v1963 = vunpack.c.l.b16 %v563
    %v1964 = vunpack.c.h.b16 %v563
    %v1965 = vunpack.c.l.b16 %v564
    %v1966 = vunpack.c.h.b16 %v564
    %v1967 = vunpack.c.l.b16 %v565
    %v1968 = vunpack.c.h.b16 %v565
    %v1969 = vunpack.c.l.b16 %v566
    %v1970 = vunpack.c.h.b16 %v566
    %v1971 = vunpack.c.l.b16 %v567
    %v1972 = vunpack.c.h.b16 %v567
    %v1973 = vunpack.c.l.b16 %v568
    %v1974 = vunpack.c.h.b16 %v568
    %v1975 = vunpack.c.l.b16 %v569
    %v1976 = vunpack.c.h.b16 %v569
    %v1977 = vunpack.c.l.b16 %v570
    %v1978 = vunpack.c.h.b16 %v570
    %v1979 = vunpack.c.l.b16 %v571
    %v1980 = vunpack.c.h.b16 %v571
    %v1981 = vunpack.c.l.b16 %v572
    %v1982 = vunpack.c.h.b16 %v572
    %v1983 = vunpack.c.l.b16 %v573
    %v1984 = vunpack.c.h.b16 %v573
    %v1985 = vunpack.c.l.b16 %v574
    %v1986 = vunpack.c.h.b16 %v574
    %v1987 = vunpack.c.l.b16 %v575
    %v1988 = vunpack.c.h.b16 %v575
    %v1989 = vunpack.c.l.b16 %v576
    %v1990 = vunpack.c.h.b16 %v576
    %v1991 = vunpack.c.l.b16 %v577
    %v1992 = vunpack.c.h.b16 %v577
    %v1993 = vunpack.c.l.b16 %v578
    %v1994 = vunpack.c.h.b16 %v578
    %v1995 = vunpack.c.l.b16 %v579
    %v1996 = vunpack.c.h.b16 %v579
    %v1997 = vunpack.c.l.b16 %v580
    %v1998 = vunpack.c.h.b16 %v580
    %v1999 = vunpack.c.l.b16 %v581
    %v2000 = vunpack.c.h.b16 %v581
    %v2001 = vunpack.c.l.b16 %v582
    %v2002 = vunpack.c.h.b16 %v582
    %v2003 = vunpack.c.l.b16 %v583
    %v2004 = vunpack.c.h.b16 %v583
    %v2005 = vunpack.c.l.b16 %v584
    %v2006 = vunpack.c.h.b16 %v584
    %v2007 = vunpack.c.l.b16 %v585
    %v2008 = vunpack.c.h.b16 %v585
    %v2009 = vunpack.c.l.b16 %v586
    %v2010 = vunpack.c.h.b16 %v586
    %v2011 = vunpack.c.l.b16 %v587
    %v2012 = vunpack.c.h.b16 %v587
    %v2013 = vunpack.c.l.b16 %v588
    %v2014 = vunpack.c.h.b16 %v588
    %v2015 = vunpack.c.l.b16 %v589
    %v2016 = vunpack.c.h.b16 %v589
    %v2017 = vunpack.c.l.b16 %v590
    %v2018 = vunpack.c.h.b16 %v590
    %v2019 = vunpack.c.l.b16 %v591
    %v2020 = vunpack.c.h.b16 %v591
    %v2021 = vunpack.c.l.b16 %v592
    %v2022 = vunpack.c.h.b16 %v592
    %v2023 = vunpack.c.l.b16 %v593
    %v2024 = vunpack.c.h.b16 %v593
    %v2025 = vunpack.c.l.b16 %v594
    %v2026 = vunpack.c.h.b16 %v594
    %v2027 = vunpack.c.l.b16 %v595
    %v2028 = vunpack.c.h.b16 %v595
    %v2029 = vunpack.c.l.b16 %v596
    %v2030 = vunpack.c.h.b16 %v596
    %v2031 = vunpack.c.l.b16 %v597
    %v2032 = vunpack.c.h.b16 %v597
    %v2033 = vunpack.c.l.b16 %v598
    %v2034 = vunpack.c.h.b16 %v598
    %v2035 = vunpack.c.l.b16 %v599
    %v2036 = vunpack.c.h.b16 %v599
    %v2037 = vunpack.c.l.b16 %v600
    %v2038 = vunpack.c.h.b16 %v600
    %v2039 = vunpack.c.l.b16 %v601
    %v2040 = vunpack.c.h.b16 %v601
    %v2041 = vunpack.c.l.b16 %v602
    %v2042 = vunpack.c.h.b16 %v602
    %v2043 = vunpack.c.l.b16 %v603
    %v2044 = vunpack.c.h.b16 %v603
    %v2045 = vunpack.c.l.b16 %v604
    %v2046 = vunpack.c.h.b16 %v604
    %v2047 = vunpack.c.l.b16 %v605
    %v2048 = vunpack.c.h.b16 %v605
    %v2049 = vunpack.c.l.b16 %v606
    %v2050 = vunpack.c.h.b16 %v606
    %v2051 = vunpack.c.l.b16 %v607
    %v2052 = vunpack.c.h.b16 %v607
    %v2053 = vunpack.c.l.b16 %v608
    %v2054 = vunpack.c.h.b16 %v608
    %v2055 = vunpack.c.l.b16 %v609
    %v2056 = vunpack.c.h.b16 %v609
    %v2057 = vunpack.c.l.b16 %v610
    %v2058 = vunpack.c.h.b16 %v610
    %v2059 = vunpack.c.l.b16 %v611
    %v2060 = vunpack.c.h.b16 %v611
    %v2061 = vunpack.c.l.b16 %v612
    %v2062 = vunpack.c.h.b16 %v612
    %v2063 = vunpack.c.l.b16 %v613
    %v2064 = vunpack.c.h.b16 %v613
    %v2065 = vunpack.c.l.b16 %v614
    %v2066 = vunpack.c.h.b16 %v614
    %v2067 = vunpack.c.l.b16 %v615
    %v2068 = vunpack.c.h.b16 %v615
    %v2069 = vunpack.c.l.b16 %v616
    %v2070 = vunpack.c.h.b16 %v616
    %v2071 = vunpack.c.l.b16 %v617
    %v2072 = vunpack.c.h.b16 %v617
    %v2073 = vunpack.c.l.b16 %v618
    %v2074 = vunpack.c.h.b16 %v618
    %v2075 = vunpack.c.l.b16 %v619
    %v2076 = vunpack.c.h.b16 %v619
    %v2077 = vunpack.c.l.b16 %v620
    %v2078 = vunpack.c.h.b16 %v620
    %v2079 = vunpack.c.l.b16 %v621
    %v2080 = vunpack.c.h.b16 %v621
    %v2081 = vunpack.c.l.b16 %v622
    %v2082 = vunpack.c.h.b16 %v622
    %v2083 = vunpack.c.l.b16 %v623
    %v2084 = vunpack.c.h.b16 %v623
    %v2085 = vunpack.c.l.b16 %v624
    %v2086 = vunpack.c.h.b16 %v624
    %v2087 = vunpack.c.l.b16 %v625
    %v2088 = vunpack.c.h.b16 %v625
    %v2089 = vunpack.c.l.b16 %v626
    %v2090 = vunpack.c.h.b16 %v626
    %v2091 = vunpack.c.l.b16 %v627
    %v2092 = vunpack.c.h.b16 %v627
    %v2093 = vunpack.c.l.b16 %v628
    %v2094 = vunpack.c.h.b16 %v628
    %v2095 = vunpack.c.l.b16 %v629
    %v2096 = vunpack.c.h.b16 %v629
    %v2097 = vunpack.c.l.b16 %v630
    %v2098 = vunpack.c.h.b16 %v630
    %v2099 = vunpack.c.l.b16 %v631
    %v2100 = vunpack.c.h.b16 %v631
    %v2101 = vunpack.c.l.b16 %v632
    %v2102 = vunpack.c.h.b16 %v632
    %v2103 = vunpack.c.l.b16 %v633
    %v2104 = vunpack.c.h.b16 %v633
    %v2105 = vunpack.c.l.b16 %v634
    %v2106 = vunpack.c.h.b16 %v634
    %v2107 = vunpack.c.l.b16 %v635
    %v2108 = vunpack.c.h.b16 %v635
    %v2109 = vunpack.c.l.b16 %v636
    %v2110 = vunpack.c.h.b16 %v636
    %v2111 = vunpack.c.l.b16 %v637
    %v2112 = vunpack.c.h.b16 %v637
    %v2113 = vunpack.c.l.b16 %v638
    %v2114 = vunpack.c.h.b16 %v638
    %v2115 = vunpack.c.l.b16 %v639
    %v2116 = vunpack.c.h.b16 %v639
    %v2117 = vunpack.c.l.b16 %v640
    %v2118 = vunpack.c.h.b16 %v640
    %v2119 = vunpack.c.l.b16 %v641
    %v2120 = vunpack.c.h.b16 %v641
    %v2121 = vunpack.c.l.b16 %v642
    %v2122 = vunpack.c.h.b16 %v642
    %v2123 = vunpack.c.l.b16 %v643
    %v2124 = vunpack.c.h.b16 %v643
    %v2125 = vunpack.c.l.b16 %v644
    %v2126 = vunpack.c.h.b16 %v644
    %v2127 = vunpack.c.l.b16 %v645
    %v2128 = vunpack.c.h.b16 %v645
    %v2129 = vunpack.c.l.b16 %v646
    %v2130 = vunpack.c.h.b16 %v646
    %v2131 = vunpack.c.l.b16 %v647
    %v2132 = vunpack.c.h.b16 %v647
    %v2133 = vunpack.c.l.b16 %v648
    %v2134 = vunpack.c.h.b16 %v648
    %v2135 = vunpack.c.l.b16 %v649
    %v2136 = vunpack.c.h.b16 %v649
    %v2137 = vunpack.c.l.b16 %v650
    %v2138 = vunpack.c.h.b16 %v650
    %v2139 = vunpack.c.l.b16 %v651
    %v2140 = vunpack.c.h.b16 %v651
    %v2141 = vunpack.c.l.b16 %v652
    %v2142 = vunpack.c.h.b16 %v652
    %v2143 = vunpack.c.l.b16 %v653
    %v2144 = vunpack.c.h.b16 %v653
    %v2145 = vunpack.c.l.b16 %v654
    %v2146 = vunpack.c.h.b16 %v654
    %v2147 = vunpack.c.l.b16 %v655
    %v2148 = vunpack.c.h.b16 %v655
    %v2149 = vunpack.c.l.b16 %v656
    %v2150 = vunpack.c.h.b16 %v656
    %v2151 = vunpack.c.l.b16 %v657
    %v2152 = vunpack.c.h.b16 %v657
    %v2153 = vunpack.c.l.b16 %v658
    %v2154 = vunpack.c.h.b16 %v658
    %v2155 = vunpack.c.l.b16 %v659
    %v2156 = vunpack.c.h.b16 %v659
    %v2157 = vunpack.c.l.b16 %v660
    %v2158 = vunpack.c.h.b16 %v660
    %v2159 = vunpack.c.l.b16 %v661
    %v2160 = vunpack.c.h.b16 %v661
    %v2161 = vunpack.c.l.b16 %v662
    %v2162 = vunpack.c.h.b16 %v662
    %v2163 = vunpack.c.l.b16 %v663
    %v2164 = vunpack.c.h.b16 %v663
    %v2165 = vunpack.c.l.b16 %v664
    %v2166 = vunpack.c.h.b16 %v664
    %v2167 = vunpack.c.l.b16 %v665
    %v2168 = vunpack.c.h.b16 %v665
    %v2169 = vunpack.c.l.b16 %v666
    %v2170 = vunpack.c.h.b16 %v666
    %v2171 = vunpack.c.l.b16 %v667
    %v2172 = vunpack.c.h.b16 %v667
    %v2173 = vunpack.c.l.b16 %v668
    %v2174 = vunpack.c.h.b16 %v668
    %v2175 = vunpack.c.l.b16 %v669
    %v2176 = vunpack.c.h.b16 %v669
    %v2177 = vunpack.c.l.b16 %v670
    %v2178 = vunpack.c.h.b16 %v670
    %v2179 = vunpack.c.l.b16 %v671
    %v2180 = vunpack.c.h.b16 %v671
    %v2181 = vunpack.c.l.b16 %v672
    %v2182 = vunpack.c.h.b16 %v672
    %v2183 = vunpack.c.l.b16 %v673
    %v2184 = vunpack.c.h.b16 %v673
    %v2185 = vunpack.c.l.b16 %v674
    %v2186 = vunpack.c.h.b16 %v674
    %v2187 = vunpack.c.l.b16 %v675
    %v2188 = vunpack.c.h.b16 %v675
    %v2189 = vunpack.c.l.b16 %v676
    %v2190 = vunpack.c.h.b16 %v676
    %v2191 = vunpack.c.l.b16 %v677
    %v2192 = vunpack.c.h.b16 %v677
    %v2193 = vunpack.c.l.b16 %v678
    %v2194 = vunpack.c.h.b16 %v678
    %v2195 = vunpack.c.l.b16 %v679
    %v2196 = vunpack.c.h.b16 %v679
    %v2197 = vunpack.c.l.b16 %v680
    %v2198 = vunpack.c.h.b16 %v680
    %v2199 = vunpack.c.l.b16 %v681
    %v2200 = vunpack.c.h.b16 %v681
    %v2201 = vunpack.c.l.b16 %v682
    %v2202 = vunpack.c.h.b16 %v682
    %v2203 = vunpack.c.l.b16 %v683
    %v2204 = vunpack.c.h.b16 %v683
    %v2205 = vunpack.c.l.b16 %v684
    %v2206 = vunpack.c.h.b16 %v684
    %v2207 = vunpack.c.l.b16 %v685
    %v2208 = vunpack.c.h.b16 %v685
    %v2209 = vunpack.c.l.b16 %v686
    %v2210 = vunpack.c.h.b16 %v686
    %v2211 = vunpack.c.l.b16 %v687
    %v2212 = vunpack.c.h.b16 %v687
    %v2213 = vunpack.c.l.b16 %v688
    %v2214 = vunpack.c.h.b16 %v688
    %v2215 = vunpack.c.l.b16 %v689
    %v2216 = vunpack.c.h.b16 %v689
    %v2217 = vunpack.c.l.b16 %v690
    %v2218 = vunpack.c.h.b16 %v690
    %v2219 = vunpack.c.l.b16 %v691
    %v2220 = vunpack.c.h.b16 %v691
    %v2221 = vunpack.c.l.b16 %v692
    %v2222 = vunpack.c.h.b16 %v692
    %v2223 = vunpack.c.l.b16 %v693
    %v2224 = vunpack.c.h.b16 %v693
    %v2225 = vunpack.c.l.b16 %v694
    %v2226 = vunpack.c.h.b16 %v694
    %v2227 = vunpack.c.l.b16 %v695
    %v2228 = vunpack.c.h.b16 %v695
    %v2229 = vunpack.c.l.b16 %v696
    %v2230 = vunpack.c.h.b16 %v696
    %v2231 = vunpack.c.l.b16 %v697
    %v2232 = vunpack.c.h.b16 %v697
    %v2233 = vunpack.c.l.b16 %v698
    %v2234 = vunpack.c.h.b16 %v698
    %v2235 = vunpack.c.l.b16 %v699
    %v2236 = vunpack.c.h.b16 %v699
    %v2237 = vunpack.c.l.b16 %v700
    %v2238 = vunpack.c.h.b16 %v700
    %v2239 = vunpack.c.l.b16 %v701
    %v2240 = vunpack.c.h.b16 %v701
    %v2241 = vunpack.c.l.b16 %v702
    %v2242 = vunpack.c.h.b16 %v702
    %v2243 = vunpack.c.l.b16 %v703
    %v2244 = vunpack.c.h.b16 %v703
    %v2245 = vunpack.c.l.b16 %v704
    %v2246 = vunpack.c.h.b16 %v704
    %v2247 = vunpack.c.l.b16 %v705
    %v2248 = vunpack.c.h.b16 %v705
    %v2249 = vunpack.c.l.b16 %v706
    %v2250 = vunpack.c.h.b16 %v706
    %v2251 = vunpack.c.l.b16 %v707
    %v2252 = vunpack.c.h.b16 %v707
    %v2253 = vunpack.c.l.b16 %v708
    %v2254 = vunpack.c.h.b16 %v708
    %v2255 = vunpack.c.l.b16 %v709
    %v2256 = vunpack.c.h.b16 %v709
    %v2257 = vunpack.c.l.b16 %v710
    %v2258 = vunpack.c.h.b16 %v710
    %v2259 = vunpack.c.l.b16 %v711
    %v2260 = vunpack.c.h.b16 %v711
    %v2261 = vunpack.c.l.b16 %v712
    %v2262 = vunpack.c.h.b16 %v712
    %v2263 = vunpack.c.l.b16 %v713
    %v2264 = vunpack.c.h.b16 %v713
    %v2265 = vunpack.c.l.b16 %v714
    %v2266 = vunpack.c.h.b16 %v714
    %v2267 = vunpack.c.l.b16 %v715
    %v2268 = vunpack.c.h.b16 %v715
    %v2269 = vunpack.c.l.b16 %v716
    %v2270 = vunpack.c.h.b16 %v716
    %v2271 = vunpack.c.l.b16 %v717
    %v2272 = vunpack.c.h.b16 %v717
    %v2273 = vunpack.c.l.b16 %v718
    %v2274 = vunpack.c.h.b16 %v718
    %v2275 = vunpack.c.l.b16 %v719
    %v2276 = vunpack.c.h.b16 %v719
    %v2277 = vunpack.c.l.b16 %v720
    %v2278 = vunpack.c.h.b16 %v720
    %v2279 = vpack.c.b16 %v1259, %v1255
    %v2280 = vpack.c.b16 %v1260, %v1256
    %v2281 = vpack.c.b16 %v1261, %v1257
    %v2282 = vpack.c.b16 %v1262, %v1258
    %v2283 = vpack.c.b16 %v1267, %v1263
    %v2284 = vpack.c.b16 %v1268, %v1264
    %v2285 = vpack.c.b16 %v1269, %v1265
    %v2286 = vpack.c.b16 %v1270, %v1266
    %v2287 = vpack.c.b16 %v1275, %v1271
    %v2288 = vpack.c.b16 %v1276, %v1272
    %v2289 = vpack.c.b16 %v1277, %v1273
    %v2290 = vpack.c.b16 %v1278, %v1274
    %v2291 = vpack.c.b16 %v1283, %v1279
    %v2292 = vpack.c.b16 %v1284, %v1280
    %v2293 = vpack.c.b16 %v1285, %v1281
    %v2294 = vpack.c.b16 %v1286, %v1282
    %v2295 = vpack.c.b16 %v1291, %v1287
    %v2296 = vpack.c.b16 %v1292, %v1288
    %v2297 = vpack.c.b16 %v1293, %v1289
    %v2298 = vpack.c.b16 %v1294, %v1290
    %v2299 = vpack.c.b16 %v1299, %v1295
    %v2300 = vpack.c.b16 %v1300, %v1296
    %v2301 = vpack.c.b16 %v1301, %v1297
    %v2302 = vpack.c.b16 %v1302, %v1298
    %v2303 = vpack.c.b16 %v1307, %v1303
    %v2304 = vpack.c.b16 %v1308, %v1304
    %v2305 = vpack.c.b16 %v1309, %v1305
    %v2306 = vpack.c.b16 %v1310, %v1306
    %v2307 = vpack.c.b16 %v1315, %v1311
    %v2308 = vpack.c.b16 %v1316, %v1312
    %v2309 = vpack.c.b16 %v1317, %v1313
    %v2310 = vpack.c.b16 %v1318, %v1314
    %v2311 = vpack.c.b16 %v1323, %v1319
    %v2312 = vpack.c.b16 %v1324, %v1320
    %v2313 = vpack.c.b16 %v1325, %v1321
    %v2314 = vpack.c.b16 %v1326, %v1322
    %v2315 = vpack.c.b16 %v1331, %v1327
    %v2316 = vpack.c.b16 %v1332, %v1328
    %v2317 = vpack.c.b16 %v1333, %v1329
    %v2318 = vpack.c.b16 %v1334, %v1330
    %v2319 = vpack.c.b16 %v1339, %v1335
    %v2320 = vpack.c.b16 %v1340, %v1336
    %v2321 = vpack.c.b16 %v1341, %v1337
    %v2322 = vpack.c.b16 %v1342, %v1338
    %v2323 = vpack.c.b16 %v1347, %v1343
    %v2324 = vpack.c.b16 %v1348, %v1344
    %v2325 = vpack.c.b16 %v1349, %v1345
    %v2326 = vpack.c.b16 %v1350, %v1346
    %v2327 = vpack.c.b16 %v1355, %v1351
    %v2328 = vpack.c.b16 %v1356, %v1352
    %v2329 = vpack.c.b16 %v1357, %v1353
    %v2330 = vpack.c.b16 %v1358, %v1354
    %v2331 = vpack.c.b16 %v1363, %v1359
    %v2332 = vpack.c.b16 %v1364, %v1360
    %v2333 = vpack.c.b16 %v1365, %v1361
    %v2334 = vpack.c.b16 %v1366, %v1362
    %v2335 = vpack.c.b16 %v1371, %v1367
    %v2336 = vpack.c.b16 %v1372, %v1368
    %v2337 = vpack.c.b16 %v1373, %v1369
    %v2338 = vpack.c.b16 %v1374, %v1370
    %v2339 = vpack.c.b16 %v1379, %v1375
    %v2340 = vpack.c.b16 %v1380, %v1376
    %v2341 = vpack.c.b16 %v1381, %v1377
    %v2342 = vpack.c.b16 %v1382, %v1378
    %v2343 = vpack.c.b16 %v1387, %v1383
    %v2344 = vpack.c.b16 %v1388, %v1384
    %v2345 = vpack.c.b16 %v1389, %v1385
    %v2346 = vpack.c.b16 %v1390, %v1386
    %v2347 = vpack.c.b16 %v1395, %v1391
    %v2348 = vpack.c.b16 %v1396, %v1392
    %v2349 = vpack.c.b16 %v1397, %v1393
    %v2350 = vpack.c.b16 %v1398, %v1394
    %v2351 = vpack.c.b16 %v1403, %v1399
    %v2352 = vpack.c.b16 %v1404, %v1400
    %v2353 = vpack.c.b16 %v1405, %v1401
    %v2354 = vpack.c.b16 %v1406, %v1402
    %v2355 = vpack.c.b16 %v1411, %v1407
    %v2356 = vpack.c.b16 %v1412, %v1408
    %v2357 = vpack.c.b16 %v1413, %v1409
    %v2358 = vpack.c.b16 %v1414, %v1410
    %v2359 = vpack.c.b16 %v1419, %v1415
    %v2360 = vpack.c.b16 %v1420, %v1416
    %v2361 = vpack.c.b16 %v1421, %v1417
    %v2362 = vpack.c.b16 %v1422, %v1418
    %v2363 = vpack.c.b16 %v1427, %v1423
    %v2364 = vpack.c.b16 %v1428, %v1424
    %v2365 = vpack.c.b16 %v1429, %v1425
    %v2366 = vpack.c.b16 %v1430, %v1426
    %v2367 = vpack.c.b16 %v1435, %v1431
    %v2368 = vpack.c.b16 %v1436, %v1432
    %v2369 = vpack.c.b16 %v1437, %v1433
    %v2370 = vpack.c.b16 %v1438, %v1434
    %v2371 = vpack.c.b16 %v1443, %v1439
    %v2372 = vpack.c.b16 %v1444, %v1440
    %v2373 = vpack.c.b16 %v1445, %v1441
    %v2374 = vpack.c.b16 %v1446, %v1442
    %v2375 = vpack.c.b16 %v1451, %v1447
    %v2376 = vpack.c.b16 %v1452, %v1448
    %v2377 = vpack.c.b16 %v1453, %v1449
    %v2378 = vpack.c.b16 %v1454, %v1450
    %v2379 = vpack.c.b16 %v1459, %v1455
    %v2380 = vpack.c.b16 %v1460, %v1456
    %v2381 = vpack.c.b16 %v1461, %v1457
    %v2382 = vpack.c.b16 %v1462, %v1458
    %v2383 = vpack.c.b16 %v1467, %v1463
    %v2384 = vpack.c.b16 %v1468, %v1464
    %v2385 = vpack.c.b16 %v1469, %v1465
    %v2386 = vpack.c.b16 %v1470, %v1466
    %v2387 = vpack.c.b16 %v1475, %v1471
    %v2388 = vpack.c.b16 %v1476, %v1472
    %v2389 = vpack.c.b16 %v1477, %v1473
    %v2390 = vpack.c.b16 %v1478, %v1474
    %v2391 = vpack.c.b16 %v1483, %v1479
    %v2392 = vpack.c.b16 %v1484, %v1480
    %v2393 = vpack.c.b16 %v1485, %v1481
    %v2394 = vpack.c.b16 %v1486, %v1482
    %v2395 = vpack.c.b16 %v1491, %v1487
    %v2396 = vpack.c.b16 %v1492, %v1488
    %v2397 = vpack.c.b16 %v1493, %v1489
    %v2398 = vpack.c.b16 %v1494, %v1490
    %v2399 = vpack.c.b16 %v1499, %v1495
    %v2400 = vpack.c.b16 %v1500, %v1496
    %v2401 = vpack.c.b16 %v1501, %v1497
    %v2402 = vpack.c.b16 %v1502, %v1498
    %v2403 = vpack.c.b16 %v1507, %v1503
    %v2404 = vpack.c.b16 %v1508, %v1504
    %v2405 = vpack.c.b16 %v1509, %v1505
    %v2406 = vpack.c.b16 %v1510, %v1506
    %v2407 = vpack.c.b16 %v1515, %v1511
    %v2408 = vpack.c.b16 %v1516, %v1512
    %v2409 = vpack.c.b16 %v1517, %v1513
    %v2410 = vpack.c.b16 %v1518, %v1514
    %v2411 = vpack.c.b16 %v1523, %v1519
    %v2412 = vpack.c.b16 %v1524, %v1520
    %v2413 = vpack.c.b16 %v1525, %v1521
    %v2414 = vpack.c.b16 %v1526, %v1522
    %v2415 = vpack.c.b16 %v1531, %v1527
    %v2416 = vpack.c.b16 %v1532, %v1528
    %v2417 = vpack.c.b16 %v1533, %v1529
    %v2418 = vpack.c.b16 %v1534, %v1530
    %v2419 = vpack.c.b16 %v1539, %v1535
    %v2420 = vpack.c.b16 %v1540, %v1536
    %v2421 = vpack.c.b16 %v1541, %v1537
    %v2422 = vpack.c.b16 %v1542, %v1538
    %v2423 = vpack.c.b16 %v1547, %v1543
    %v2424 = vpack.c.b16 %v1548, %v1544
    %v2425 = vpack.c.b16 %v1549, %v1545
    %v2426 = vpack.c.b16 %v1550, %v1546
    %v2427 = vpack.c.b16 %v1555, %v1551
    %v2428 = vpack.c.b16 %v1556, %v1552
    %v2429 = vpack.c.b16 %v1557, %v1553
    %v2430 = vpack.c.b16 %v1558, %v1554
    %v2431 = vpack.c.b16 %v1563, %v1559
    %v2432 = vpack.c.b16 %v1564, %v1560
    %v2433 = vpack.c.b16 %v1565, %v1561
    %v2434 = vpack.c.b16 %v1566, %v1562
    %v2435 = vpack.c.b16 %v1571, %v1567
    %v2436 = vpack.c.b16 %v1572, %v1568
    %v2437 = vpack.c.b16 %v1573, %v1569
    %v2438 = vpack.c.b16 %v1574, %v1570
    %v2439 = vpack.c.b16 %v1579, %v1575
    %v2440 = vpack.c.b16 %v1580, %v1576
    %v2441 = vpack.c.b16 %v1581, %v1577
    %v2442 = vpack.c.b16 %v1582, %v1578
    %v2443 = vpack.c.b16 %v1587, %v1583
    %v2444 = vpack.c.b16 %v1588, %v1584
    %v2445 = vpack.c.b16 %v1589, %v1585
    %v2446 = vpack.c.b16 %v1590, %v1586
    %v2447 = vpack.c.b16 %v1595, %v1591
    %v2448 = vpack.c.b16 %v1596, %v1592
    %v2449 = vpack.c.b16 %v1597, %v1593
    %v2450 = vpack.c.b16 %v1598, %v1594
    %v2451 = vpack.c.b16 %v1603, %v1599
    %v2452 = vpack.c.b16 %v1604, %v1600
    %v2453 = vpack.c.b16 %v1605, %v1601
    %v2454 = vpack.c.b16 %v1606, %v1602
    %v2455 = vpack.c.b16 %v1611, %v1607
    %v2456 = vpack.c.b16 %v1612, %v1608
    %v2457 = vpack.c.b16 %v1613, %v1609
    %v2458 = vpack.c.b16 %v1614, %v1610
    %v2459 = vpack.c.b16 %v1619, %v1615
    %v2460 = vpack.c.b16 %v1620, %v1616
    %v2461 = vpack.c.b16 %v1621, %v1617
    %v2462 = vpack.c.b16 %v1622, %v1618
    %v2463 = vpack.c.b16 %v1627, %v1623
    %v2464 = vpack.c.b16 %v1628, %v1624
    %v2465 = vpack.c.b16 %v1629, %v1625
    %v2466 = vpack.c.b16 %v1630, %v1626
    %v2467 = vpack.c.b16 %v1635, %v1631
    %v2468 = vpack.c.b16 %v1636, %v1632
    %v2469 = vpack.c.b16 %v1637, %v1633
    %v2470 = vpack.c.b16 %v1638, %v1634
    %v2471 = vpack.c.b16 %v1643, %v1639
    %v2472 = vpack.c.b16 %v1644, %v1640
    %v2473 = vpack.c.b16 %v1645, %v1641
    %v2474 = vpack.c.b16 %v1646, %v1642
    %v2475 = vpack.c.b16 %v1651, %v1647
    %v2476 = vpack.c.b16 %v1652, %v1648
    %v2477 = vpack.c.b16 %v1653, %v1649
    %v2478 = vpack.c.b16 %v1654, %v1650
    %v2479 = vpack.c.b16 %v1659, %v1655
    %v2480 = vpack.c.b16 %v1660, %v1656
    %v2481 = vpack.c.b16 %v1661, %v1657
    %v2482 = vpack.c.b16 %v1662, %v1658
    %v2483 = vpack.c.b16 %v1667, %v1663
    %v2484 = vpack.c.b16 %v1668, %v1664
    %v2485 = vpack.c.b16 %v1669, %v1665
    %v2486 = vpack.c.b16 %v1670, %v1666
    %v2487 = vpack.c.b16 %v1675, %v1671
    %v2488 = vpack.c.b16 %v1676, %v1672
    %v2489 = vpack.c.b16 %v1677, %v1673
    %v2490 = vpack.c.b16 %v1678, %v1674
    %v2491 = vpack.c.b16 %v1683, %v1679
    %v2492 = vpack.c.b16 %v1684, %v1680
    %v2493 = vpack.c.b16 %v1685, %v1681
    %v2494 = vpack.c.b16 %v1686, %v1682
    %v2495 = vpack.c.b16 %v1691, %v1687
    %v2496 = vpack.c.b16 %v1692, %v1688
    %v2497 = vpack.c.b16 %v1693, %v1689
    %v2498 = vpack.c.b16 %v1694, %v1690
    %v2499 = vpack.c.b16 %v1699, %v1695
    %v2500 = vpack.c.b16 %v1700, %v1696
    %v2501 = vpack.c.b16 %v1701, %v1697
    %v2502 = vpack.c.b16 %v1702, %v1698
    %v2503 = vpack.c.b16 %v1707, %v1703
    %v2504 = vpack.c.b16 %v1708, %v1704
    %v2505 = vpack.c.b16 %v1709, %v1705
    %v2506 = vpack.c.b16 %v1710, %v1706
    %v2507 = vpack.c.b16 %v1715, %v1711
    %v2508 = vpack.c.b16 %v1716, %v1712
    %v2509 = vpack.c.b16 %v1717, %v1713
    %v2510 = vpack.c.b16 %v1718, %v1714
    %v2511 = vpack.c.b16 %v1723, %v1719
    %v2512 = vpack.c.b16 %v1724, %v1720
    %v2513 = vpack.c.b16 %v1725, %v1721
    %v2514 = vpack.c.b16 %v1726, %v1722
    %v2515 = vpack.c.b16 %v1731, %v1727
    %v2516 = vpack.c.b16 %v1732, %v1728
    %v2517 = vpack.c.b16 %v1733, %v1729
    %v2518 = vpack.c.b16 %v1734, %v1730
    %v2519 = vpack.c.b16 %v1739, %v1735
    %v2520 = vpack.c.b16 %v1740, %v1736
    %v2521 = vpack.c.b16 %v1741, %v1737
    %v2522 = vpack.c.b16 %v1742, %v1738
    %v2523 = vpack.c.b16 %v1747, %v1743
    %v2524 = vpack.c.b16 %v1748, %v1744
    %v2525 = vpack.c.b16 %v1749, %v1745
    %v2526 = vpack.c.b16 %v1750, %v1746
    %v2527 = vpack.c.b16 %v1755, %v1751
    %v2528 = vpack.c.b16 %v1756, %v1752
    %v2529 = vpack.c.b16 %v1757, %v1753
    %v2530 = vpack.c.b16 %v1758, %v1754
    %v2531 = vpack.c.b16 %v1763, %v1759
    %v2532 = vpack.c.b16 %v1764, %v1760
    %v2533 = vpack.c.b16 %v1765, %v1761
    %v2534 = vpack.c.b16 %v1766, %v1762
    %v2535 = vpack.c.b16 %v1771, %v1767
    %v2536 = vpack.c.b16 %v1772, %v1768
    %v2537 = vpack.c.b16 %v1773, %v1769
    %v2538 = vpack.c.b16 %v1774, %v1770
    %v2539 = vpack.c.b16 %v1779, %v1775
    %v2540 = vpack.c.b16 %v1780, %v1776
    %v2541 = vpack.c.b16 %v1781, %v1777
    %v2542 = vpack.c.b16 %v1782, %v1778
    %v2543 = vpack.c.b16 %v1787, %v1783
    %v2544 = vpack.c.b16 %v1788, %v1784
    %v2545 = vpack.c.b16 %v1789, %v1785
    %v2546 = vpack.c.b16 %v1790, %v1786
    %v2547 = vpack.c.b16 %v1795, %v1791
    %v2548 = vpack.c.b16 %v1796, %v1792
    %v2549 = vpack.c.b16 %v1797, %v1793
    %v2550 = vpack.c.b16 %v1798, %v1794
    %v2551 = vpack.c.b16 %v1803, %v1799
    %v2552 = vpack.c.b16 %v1804, %v1800
    %v2553 = vpack.c.b16 %v1805, %v1801
    %v2554 = vpack.c.b16 %v1806, %v1802
    %v2555 = vpack.c.b16 %v1811, %v1807
    %v2556 = vpack.c.b16 %v1812, %v1808
    %v2557 = vpack.c.b16 %v1813, %v1809
    %v2558 = vpack.c.b16 %v1814, %v1810
    %v2559 = vpack.c.b16 %v1819, %v1815
    %v2560 = vpack.c.b16 %v1820, %v1816
    %v2561 = vpack.c.b16 %v1821, %v1817
    %v2562 = vpack.c.b16 %v1822, %v1818
    %v2563 = vpack.c.b16 %v1827, %v1823
    %v2564 = vpack.c.b16 %v1828, %v1824
    %v2565 = vpack.c.b16 %v1829, %v1825
    %v2566 = vpack.c.b16 %v1830, %v1826
    %v2567 = vpack.c.b16 %v1835, %v1831
    %v2568 = vpack.c.b16 %v1836, %v1832
    %v2569 = vpack.c.b16 %v1837, %v1833
    %v2570 = vpack.c.b16 %v1838, %v1834
    %v2571 = vpack.c.b16 %v1843, %v1839
    %v2572 = vpack.c.b16 %v1844, %v1840
    %v2573 = vpack.c.b16 %v1845, %v1841
    %v2574 = vpack.c.b16 %v1846, %v1842
    %v2575 = vpack.c.b16 %v1851, %v1847
    %v2576 = vpack.c.b16 %v1852, %v1848
    %v2577 = vpack.c.b16 %v1853, %v1849
    %v2578 = vpack.c.b16 %v1854, %v1850
    %v2579 = vpack.c.b16 %v1859, %v1855
    %v2580 = vpack.c.b16 %v1860, %v1856
    %v2581 = vpack.c.b16 %v1861, %v1857
    %v2582 = vpack.c.b16 %v1862, %v1858
    %v2583 = vpack.c.b16 %v1867, %v1863
    %v2584 = vpack.c.b16 %v1868, %v1864
    %v2585 = vpack.c.b16 %v1869, %v1865
    %v2586 = vpack.c.b16 %v1870, %v1866
    %v2587 = vpack.c.b16 %v1875, %v1871
    %v2588 = vpack.c.b16 %v1876, %v1872
    %v2589 = vpack.c.b16 %v1877, %v1873
    %v2590 = vpack.c.b16 %v1878, %v1874
    %v2591 = vpack.c.b16 %v1883, %v1879
    %v2592 = vpack.c.b16 %v1884, %v1880
    %v2593 = vpack.c.b16 %v1885, %v1881
    %v2594 = vpack.c.b16 %v1886, %v1882
    %v2595 = vpack.c.b16 %v1891, %v1887
    %v2596 = vpack.c.b16 %v1892, %v1888
    %v2597 = vpack.c.b16 %v1893, %v1889
    %v2598 = vpack.c.b16 %v1894, %v1890
    %v2599 = vpack.c.b16 %v1899, %v1895
    %v2600 = vpack.c.b16 %v1900, %v1896
    %v2601 = vpack.c.b16 %v1901, %v1897
    %v2602 = vpack.c.b16 %v1902, %v1898
    %v2603 = vpack.c.b16 %v1907, %v1903
    %v2604 = vpack.c.b16 %v1908, %v1904
    %v2605 = vpack.c.b16 %v1909, %v1905
    %v2606 = vpack.c.b16 %v1910, %v1906
    %v2607 = vpack.c.b16 %v1915, %v1911
    %v2608 = vpack.c.b16 %v1916, %v1912
    %v2609 = vpack.c.b16 %v1917, %v1913
    %v2610 = vpack.c.b16 %v1918, %v1914
    %v2611 = vpack.c.b16 %v1923, %v1919
    %v2612 = vpack.c.b16 %v1924, %v1920
    %v2613 = vpack.c.b16 %v1925, %v1921
    %v2614 = vpack.c.b16 %v1926, %v1922
    %v2615 = vpack.c.b16 %v1931, %v1927
    %v2616 = vpack.c.b16 %v1932, %v1928
    %v2617 = vpack.c.b16 %v1933, %v1929
    %v2618 = vpack.c.b16 %v1934, %v1930
    %v2619 = vpack.c.b16 %v1939, %v1935
    %v2620 = vpack.c.b16 %v1940, %v1936
    %v2621 = vpack.c.b16 %v1941, %v1937
    %v2622 = vpack.c.b16 %v1942, %v1938
    %v2623 = vpack.c.b16 %v1947, %v1943
    %v2624 = vpack.c.b16 %v1948, %v1944
    %v2625 = vpack.c.b16 %v1949, %v1945
    %v2626 = vpack.c.b16 %v1950, %v1946
    %v2627 = vpack.c.b16 %v1955, %v1951
    %v2628 = vpack.c.b16 %v1956, %v1952
    %v2629 = vpack.c.b16 %v1957, %v1953
    %v2630 = vpack.c.b16 %v1958, %v1954
    %v2631 = vpack.c.b16 %v1963, %v1959
    %v2632 = vpack.c.b16 %v1964, %v1960
    %v2633 = vpack.c.b16 %v1965, %v1961
    %v2634 = vpack.c.b16 %v1966, %v1962
    %v2635 = vpack.c.b16 %v1971, %v1967
    %v2636 = vpack.c.b16 %v1972, %v1968
    %v2637 = vpack.c.b16 %v1973, %v1969
    %v2638 = vpack.c.b16 %v1974, %v1970
    %v2639 = vpack.c.b16 %v1979, %v1975
    %v2640 = vpack.c.b16 %v1980, %v1976
    %v2641 = vpack.c.b16 %v1981, %v1977
    %v2642 = vpack.c.b16 %v1982, %v1978
    %v2643 = vpack.c.b16 %v1987, %v1983
    %v2644 = vpack.c.b16 %v1988, %v1984
    %v2645 = vpack.c.b16 %v1989, %v1985
    %v2646 = vpack.c.b16 %v1990, %v1986
    %v2647 = vpack.c.b16 %v1995, %v1991
    %v2648 = vpack.c.b16 %v1996, %v1992
    %v2649 = vpack.c.b16 %v1997, %v1993
    %v2650 = vpack.c.b16 %v1998, %v1994
    %v2651 = vpack.c.b16 %v2003, %v1999
    %v2652 = vpack.c.b16 %v2004, %v2000
    %v2653 = vpack.c.b16 %v2005, %v2001
    %v2654 = vpack.c.b16 %v2006, %v2002
    %v2655 = vpack.c.b16 %v2011, %v2007
    %v2656 = vpack.c.b16 %v2012, %v2008
    %v2657 = vpack.c.b16 %v2013, %v2009
    %v2658 = vpack.c.b16 %v2014, %v2010
    %v2659 = vpack.c.b16 %v2019, %v2015
    %v2660 = vpack.c.b16 %v2020, %v2016
    %v2661 = vpack.c.b16 %v2021, %v2017
    %v2662 = vpack.c.b16 %v2022, %v2018
    %v2663 = vpack.c.b16 %v2027, %v2023
    %v2664 = vpack.c.b16 %v2028, %v2024
    %v2665 = vpack.c.b16 %v2029, %v2025
    %v2666 = vpack.c.b16 %v2030, %v2026
    %v2667 = vpack.c.b16 %v2035, %v2031
    %v2668 = vpack.c.b16 %v2036, %v2032
    %v2669 = vpack.c.b16 %v2037, %v2033
    %v2670 = vpack.c.b16 %v2038, %v2034
    %v2671 = vpack.c.b16 %v2043, %v2039
    %v2672 = vpack.c.b16 %v2044, %v2040
    %v2673 = vpack.c.b16 %v2045, %v2041
    %v2674 = vpack.c.b16 %v2046, %v2042
    %v2675 = vpack.c.b16 %v2051, %v2047
    %v2676 = vpack.c.b16 %v2052, %v2048
    %v2677 = vpack.c.b16 %v2053, %v2049
    %v2678 = vpack.c.b16 %v2054, %v2050
    %v2679 = vpack.c.b16 %v2059, %v2055
    %v2680 = vpack.c.b16 %v2060, %v2056
    %v2681 = vpack.c.b16 %v2061, %v2057
    %v2682 = vpack.c.b16 %v2062, %v2058
    %v2683 = vpack.c.b16 %v2067, %v2063
    %v2684 = vpack.c.b16 %v2068, %v2064
    %v2685 = vpack.c.b16 %v2069, %v2065
    %v2686 = vpack.c.b16 %v2070, %v2066
    %v2687 = vpack.c.b16 %v2075, %v2071
    %v2688 = vpack.c.b16 %v2076, %v2072
    %v2689 = vpack.c.b16 %v2077, %v2073
    %v2690 = vpack.c.b16 %v2078, %v2074
    %v2691 = vpack.c.b16 %v2083, %v2079
    %v2692 = vpack.c.b16 %v2084, %v2080
    %v2693 = vpack.c.b16 %v2085, %v2081
    %v2694 = vpack.c.b16 %v2086, %v2082
    %v2695 = vpack.c.b16 %v2091, %v2087
    %v2696 = vpack.c.b16 %v2092, %v2088
    %v2697 = vpack.c.b16 %v2093, %v2089
    %v2698 = vpack.c.b16 %v2094, %v2090
    %v2699 = vpack.c.b16 %v2099, %v2095
    %v2700 = vpack.c.b16 %v2100, %v2096
    %v2701 = vpack.c.b16 %v2101, %v2097
    %v2702 = vpack.c.b16 %v2102, %v2098
    %v2703 = vpack.c.b16 %v2107, %v2103
    %v2704 = vpack.c.b16 %v2108, %v2104
    %v2705 = vpack.c.b16 %v2109, %v2105
    %v2706 = vpack.c.b16 %v2110, %v2106
    %v2707 = vpack.c.b16 %v2115, %v2111
    %v2708 = vpack.c.b16 %v2116, %v2112
    %v2709 = vpack.c.b16 %v2117, %v2113
    %v2710 = vpack.c.b16 %v2118, %v2114
    %v2711 = vpack.c.b16 %v2123, %v2119
    %v2712 = vpack.c.b16 %v2124, %v2120
    %v2713 = vpack.c.b16 %v2125, %v2121
    %v2714 = vpack.c.b16 %v2126, %v2122
    %v2715 = vpack.c.b16 %v2131, %v2127
    %v2716 = vpack.c.b16 %v2132, %v2128
    %v2717 = vpack.c.b16 %v2133, %v2129
    %v2718 = vpack.c.b16 %v2134, %v2130
    %v2719 = vpack.c.b16 %v2139, %v2135
    %v2720 = vpack.c.b16 %v2140, %v2136
    %v2721 = vpack.c.b16 %v2141, %v2137
    %v2722 = vpack.c.b16 %v2142, %v2138
    %v2723 = vpack.c.b16 %v2147, %v2143
    %v2724 = vpack.c.b16 %v2148, %v2144
    %v2725 = vpack.c.b16 %v2149, %v2145
    %v2726 = vpack.c.b16 %v2150, %v2146
    %v2727 = vpack.c.b16 %v2155, %v2151
    %v2728 = vpack.c.b16 %v2156, %v2152
    %v2729 = vpack.c.b16 %v2157, %v2153
    %v2730 = vpack.c.b16 %v2158, %v2154
    %v2731 = vpack.c.b16 %v2163, %v2159
    %v2732 = vpack.c.b16 %v2164, %v2160
    %v2733 = vpack.c.b16 %v2165, %v2161
    %v2734 = vpack.c.b16 %v2166, %v2162
    %v2735 = vpack.c.b16 %v2171, %v2167
    %v2736 = vpack.c.b16 %v2172, %v2168
    %v2737 = vpack.c.b16 %v2173, %v2169
    %v2738 = vpack.c.b16 %v2174, %v2170
    %v2739 = vpack.c.b16 %v2179, %v2175
    %v2740 = vpack.c.b16 %v2180, %v2176
    %v2741 = vpack.c.b16 %v2181, %v2177
    %v2742 = vpack.c.b16 %v2182, %v2178
    %v2743 = vpack.c.b16 %v2187, %v2183
    %v2744 = vpack.c.b16 %v2188, %v2184
    %v2745 = vpack.c.b16 %v2189, %v2185
    %v2746 = vpack.c.b16 %v2190, %v2186
    %v2747 = vpack.c.b16 %v2195, %v2191
    %v2748 = vpack.c.b16 %v2196, %v2192
    %v2749 = vpack.c.b16 %v2197, %v2193
    %v2750 = vpack.c.b16 %v2198, %v2194
    %v2751 = vpack.c.b16 %v2203, %v2199
    %v2752 = vpack.c.b16 %v2204, %v2200
    %v2753 = vpack.c.b16 %v2205, %v2201
    %v2754 = vpack.c.b16 %v2206, %v2202
    %v2755 = vpack.c.b16 %v2211, %v2207
    %v2756 = vpack.c.b16 %v2212, %v2208
    %v2757 = vpack.c.b16 %v2213, %v2209
    %v2758 = vpack.c.b16 %v2214, %v2210
    %v2759 = vpack.c.b16 %v2219, %v2215
    %v2760 = vpack.c.b16 %v2220, %v2216
    %v2761 = vpack.c.b16 %v2221, %v2217
    %v2762 = vpack.c.b16 %v2222, %v2218
    %v2763 = vpack.c.b16 %v2227, %v2223
    %v2764 = vpack.c.b16 %v2228, %v2224
    %v2765 = vpack.c.b16 %v2229, %v2225
    %v2766 = vpack.c.b16 %v2230, %v2226
    %v2767 = vpack.c.b16 %v2235, %v2231
    %v2768 = vpack.c.b16 %v2236, %v2232
    %v2769 = vpack.c.b16 %v2237, %v2233
    %v2770 = vpack.c.b16 %v2238, %v2234
    %v2771 = vpack.c.b16 %v2243, %v2239
    %v2772 = vpack.c.b16 %v2244, %v2240
    %v2773 = vpack.c.b16 %v2245, %v2241
    %v2774 = vpack.c.b16 %v2246, %v2242
    %v2775 = vpack.c.b16 %v2251, %v2247
    %v2776 = vpack.c.b16 %v2252, %v2248
    %v2777 = vpack.c.b16 %v2253, %v2249
    %v2778 = vpack.c.b16 %v2254, %v2250
    %v2779 = vpack.c.b16 %v2259, %v2255
    %v2780 = vpack.c.b16 %v2260, %v2256
    %v2781 = vpack.c.b16 %v2261, %v2257
    %v2782 = vpack.c.b16 %v2262, %v2258
    %v2783 = vpack.c.b16 %v2267, %v2263
    %v2784 = vpack.c.b16 %v2268, %v2264
    %v2785 = vpack.c.b16 %v2269, %v2265
    %v2786 = vpack.c.b16 %v2270, %v2266
    %v2787 = vpack.c.b16 %v2275, %v2271
    %v2788 = vpack.c.b16 %v2276, %v2272
    %v2789 = vpack.c.b16 %v2277, %v2273
    %v2790 = vpack.c.b16 %v2278, %v2274
    %3303 = vmatprep.subr.bf16.mxu0 %v2308
    %3304 = vmatpush1.bf16.msra.mxu0 %v2307
    %3305 = vmatprep.subr.bf16.mxu0 %v2304
    %3306 = vmatpush1.bf16.msra.mxu0 %v2303
    %3307 = vmatprep.subr.bf16.mxu0 %v2300
    %3308 = vmatpush1.bf16.msra.mxu0 %v2299
    %3309 = vmatprep.subr.bf16.mxu0 %v2296
    %3310 = vmatpush1.bf16.msra.mxu0 %v2295
    %3311 = vmatprep.subr.bf16.mxu0 %v2292
    %3312 = vmatpush1.bf16.msra.mxu0 %v2291
    %3313 = vmatprep.subr.bf16.mxu0 %v2288
    %3314 = vmatpush1.bf16.msra.mxu0 %v2287
    %3315 = vmatprep.subr.bf16.mxu0 %v2284
    %3316 = vmatpush1.bf16.msra.mxu0 %v2283
    %3317 = vmatprep.subr.bf16.mxu0 %v2280
    %3318 = vmatpush1.bf16.msra.mxu0 %v2279
    %3319 = vmatprep.subr.bf16.mxu0 %v2340
    %3320 = vmatpush2.bf16.msra.mxu0 %v2339
    %3321 = vmatprep.subr.bf16.mxu0 %v2336
    %3322 = vmatpush2.bf16.msra.mxu0 %v2335
    %3323 = vmatprep.subr.bf16.mxu0 %v2332
    %3324 = vmatpush2.bf16.msra.mxu0 %v2331
    %3325 = vmatprep.subr.bf16.mxu0 %v2328
    %3326 = vmatpush2.bf16.msra.mxu0 %v2327
    %3327 = vmatprep.subr.bf16.mxu0 %v2324
    %3328 = vmatpush2.bf16.msra.mxu0 %v2323
    %3329 = vmatprep.subr.bf16.mxu0 %v2320
    %3330 = vmatpush2.bf16.msra.mxu0 %v2319
    %3331 = vmatprep.subr.bf16.mxu0 %v2316
    %3332 = vmatpush2.bf16.msra.mxu0 %v2315
    %3333 = vmatprep.subr.bf16.mxu0 %v2312
    %3334 = vmatpush2.bf16.msra.mxu0 %v2311
    %3335 = vmatprep.mubr.bf16.mxu0 %v194
    %3336 = vmatmul.mubr.bf16.gmra.mxu0 %v193
    %v3337 = vpop.f32.mrf.mxu0
    %v3338 = vadd.f32 %v726, %v3337
    %v3339 = vpop.f32.mrf.mxu0
    %v3340 = vadd.f32 %v730, %v3339
    %v3341 = vpop.f32.mrf.mxu0
    %v3342 = vpop.f32.mrf.mxu0
    %3343 = vdwg.mxu0
    %3344 = vmatprep.subr.bf16.mxu0 %v2372
    %3345 = vmatpush1.bf16.msra.mxu0 %v2371
    %3346 = vmatprep.subr.bf16.mxu0 %v2368
    %3347 = vmatpush1.bf16.msra.mxu0 %v2367
    %3348 = vmatprep.subr.bf16.mxu0 %v2364
    %3349 = vmatpush1.bf16.msra.mxu0 %v2363
    %3350 = vmatprep.subr.bf16.mxu0 %v2360
    %3351 = vmatpush1.bf16.msra.mxu0 %v2359
    %3352 = vmatprep.subr.bf16.mxu0 %v2356
    %3353 = vmatpush1.bf16.msra.mxu0 %v2355
    %3354 = vmatprep.subr.bf16.mxu0 %v2352
    %3355 = vmatpush1.bf16.msra.mxu0 %v2351
    %3356 = vmatprep.subr.bf16.mxu0 %v2348
    %3357 = vmatpush1.bf16.msra.mxu0 %v2347
    %3358 = vmatprep.subr.bf16.mxu0 %v2344
    %3359 = vmatpush1.bf16.msra.mxu0 %v2343
    %3360 = vmatprep.subr.bf16.mxu0 %v2404
    %3361 = vmatpush2.bf16.msra.mxu0 %v2403
    %3362 = vmatprep.subr.bf16.mxu0 %v2400
    %3363 = vmatpush2.bf16.msra.mxu0 %v2399
    %3364 = vmatprep.subr.bf16.mxu0 %v2396
    %3365 = vmatpush2.bf16.msra.mxu0 %v2395
    %3366 = vmatprep.subr.bf16.mxu0 %v2392
    %3367 = vmatpush2.bf16.msra.mxu0 %v2391
    %3368 = vmatprep.subr.bf16.mxu0 %v2388
    %3369 = vmatpush2.bf16.msra.mxu0 %v2387
    %3370 = vmatprep.subr.bf16.mxu0 %v2384
    %3371 = vmatpush2.bf16.msra.mxu0 %v2383
    %3372 = vmatprep.subr.bf16.mxu0 %v2380
    %3373 = vmatpush2.bf16.msra.mxu0 %v2379
    %3374 = vmatprep.subr.bf16.mxu0 %v2376
    %3375 = vmatpush2.bf16.msra.mxu0 %v2375
    %3376 = vmatprep.mubr.bf16.mxu0 %v196
    %3377 = vmatmul.mubr.bf16.gmra.mxu0 %v195
    %v3378 = vpop.f32.mrf.mxu0
    %v3379 = vadd.f32 %v3338, %v3378
    %v3380 = vpop.f32.mrf.mxu0
    %v3381 = vadd.f32 %v3340, %v3380
    %v3382 = vpop.f32.mrf.mxu0
    %v3383 = vpop.f32.mrf.mxu0
    %3384 = vdwg.mxu0
    %3385 = vmatprep.subr.bf16.mxu0 %v2436
    %3386 = vmatpush1.bf16.msra.mxu0 %v2435
    %3387 = vmatprep.subr.bf16.mxu0 %v2432
    %3388 = vmatpush1.bf16.msra.mxu0 %v2431
    %3389 = vmatprep.subr.bf16.mxu0 %v2428
    %3390 = vmatpush1.bf16.msra.mxu0 %v2427
    %3391 = vmatprep.subr.bf16.mxu0 %v2424
    %3392 = vmatpush1.bf16.msra.mxu0 %v2423
    %3393 = vmatprep.subr.bf16.mxu0 %v2420
    %3394 = vmatpush1.bf16.msra.mxu0 %v2419
    %3395 = vmatprep.subr.bf16.mxu0 %v2416
    %3396 = vmatpush1.bf16.msra.mxu0 %v2415
    %3397 = vmatprep.subr.bf16.mxu0 %v2412
    %3398 = vmatpush1.bf16.msra.mxu0 %v2411
    %3399 = vmatprep.subr.bf16.mxu0 %v2408
    %3400 = vmatpush1.bf16.msra.mxu0 %v2407
    %3401 = vmatprep.subr.bf16.mxu0 %v2468
    %3402 = vmatpush2.bf16.msra.mxu0 %v2467
    %3403 = vmatprep.subr.bf16.mxu0 %v2464
    %3404 = vmatpush2.bf16.msra.mxu0 %v2463
    %3405 = vmatprep.subr.bf16.mxu0 %v2460
    %3406 = vmatpush2.bf16.msra.mxu0 %v2459
    %3407 = vmatprep.subr.bf16.mxu0 %v2456
    %3408 = vmatpush2.bf16.msra.mxu0 %v2455
    %3409 = vmatprep.subr.bf16.mxu0 %v2452
    %3410 = vmatpush2.bf16.msra.mxu0 %v2451
    %3411 = vmatprep.subr.bf16.mxu0 %v2448
    %3412 = vmatpush2.bf16.msra.mxu0 %v2447
    %3413 = vmatprep.subr.bf16.mxu0 %v2444
    %3414 = vmatpush2.bf16.msra.mxu0 %v2443
    %3415 = vmatprep.subr.bf16.mxu0 %v2440
    %3416 = vmatpush2.bf16.msra.mxu0 %v2439
    %3417 = vmatprep.mubr.bf16.mxu0 %v198
    %3418 = vmatmul.mubr.bf16.gmra.mxu0 %v197
    %v3419 = vpop.f32.mrf.mxu0
    %v3420 = vadd.f32 %v3379, %v3419
    %v3421 = vpop.f32.mrf.mxu0
    %v3422 = vadd.f32 %v3381, %v3421
    %v3423 = vpop.f32.mrf.mxu0
    %v3424 = vpop.f32.mrf.mxu0
    %3425 = vdwg.mxu0
    %3426 = vmatprep.subr.bf16.mxu0 %v2500
    %3427 = vmatpush1.bf16.msra.mxu0 %v2499
    %3428 = vmatprep.subr.bf16.mxu0 %v2496
    %3429 = vmatpush1.bf16.msra.mxu0 %v2495
    %3430 = vmatprep.subr.bf16.mxu0 %v2492
    %3431 = vmatpush1.bf16.msra.mxu0 %v2491
    %3432 = vmatprep.subr.bf16.mxu0 %v2488
    %3433 = vmatpush1.bf16.msra.mxu0 %v2487
    %3434 = vmatprep.subr.bf16.mxu0 %v2484
    %3435 = vmatpush1.bf16.msra.mxu0 %v2483
    %3436 = vmatprep.subr.bf16.mxu0 %v2480
    %3437 = vmatpush1.bf16.msra.mxu0 %v2479
    %3438 = vmatprep.subr.bf16.mxu0 %v2476
    %3439 = vmatpush1.bf16.msra.mxu0 %v2475
    %3440 = vmatprep.subr.bf16.mxu0 %v2472
    %3441 = vmatpush1.bf16.msra.mxu0 %v2471
    %3442 = vmatprep.subr.bf16.mxu0 %v2532
    %3443 = vmatpush2.bf16.msra.mxu0 %v2531
    %3444 = vmatprep.subr.bf16.mxu0 %v2528
    %3445 = vmatpush2.bf16.msra.mxu0 %v2527
    %3446 = vmatprep.subr.bf16.mxu0 %v2524
    %3447 = vmatpush2.bf16.msra.mxu0 %v2523
    %3448 = vmatprep.subr.bf16.mxu0 %v2520
    %3449 = vmatpush2.bf16.msra.mxu0 %v2519
    %3450 = vmatprep.subr.bf16.mxu0 %v2516
    %3451 = vmatpush2.bf16.msra.mxu0 %v2515
    %3452 = vmatprep.subr.bf16.mxu0 %v2512
    %3453 = vmatpush2.bf16.msra.mxu0 %v2511
    %3454 = vmatprep.subr.bf16.mxu0 %v2508
    %3455 = vmatpush2.bf16.msra.mxu0 %v2507
    %3456 = vmatprep.subr.bf16.mxu0 %v2504
    %3457 = vmatpush2.bf16.msra.mxu0 %v2503
    %3458 = vmatprep.mubr.bf16.mxu0 %v200
    %3459 = vmatmul.mubr.bf16.gmra.mxu0 %v199
    %v3460 = vpop.f32.mrf.mxu0
    %v3461 = vadd.f32 %v3420, %v3460
    %v3462 = vpop.f32.mrf.mxu0
    %v3463 = vadd.f32 %v3422, %v3462
    %v3464 = vpop.f32.mrf.mxu0
    %v3465 = vpop.f32.mrf.mxu0
    %3466 = vdwg.mxu0
    %3467 = vmatprep.subr.bf16.mxu0 %v2564
    %3468 = vmatpush1.bf16.msra.mxu0 %v2563
    %3469 = vmatprep.subr.bf16.mxu0 %v2560
    %3470 = vmatpush1.bf16.msra.mxu0 %v2559
    %3471 = vmatprep.subr.bf16.mxu0 %v2556
    %3472 = vmatpush1.bf16.msra.mxu0 %v2555
    %3473 = vmatprep.subr.bf16.mxu0 %v2552
    %3474 = vmatpush1.bf16.msra.mxu0 %v2551
    %3475 = vmatprep.subr.bf16.mxu0 %v2548
    %3476 = vmatpush1.bf16.msra.mxu0 %v2547
    %3477 = vmatprep.subr.bf16.mxu0 %v2544
    %3478 = vmatpush1.bf16.msra.mxu0 %v2543
    %3479 = vmatprep.subr.bf16.mxu0 %v2540
    %3480 = vmatpush1.bf16.msra.mxu0 %v2539
    %3481 = vmatprep.subr.bf16.mxu0 %v2536
    %3482 = vmatpush1.bf16.msra.mxu0 %v2535
    %3483 = vmatprep.subr.bf16.mxu0 %v2596
    %3484 = vmatpush2.bf16.msra.mxu0 %v2595
    %3485 = vmatprep.subr.bf16.mxu0 %v2592
    %3486 = vmatpush2.bf16.msra.mxu0 %v2591
    %3487 = vmatprep.subr.bf16.mxu0 %v2588
    %3488 = vmatpush2.bf16.msra.mxu0 %v2587
    %3489 = vmatprep.subr.bf16.mxu0 %v2584
    %3490 = vmatpush2.bf16.msra.mxu0 %v2583
    %3491 = vmatprep.subr.bf16.mxu0 %v2580
    %3492 = vmatpush2.bf16.msra.mxu0 %v2579
    %3493 = vmatprep.subr.bf16.mxu0 %v2576
    %3494 = vmatpush2.bf16.msra.mxu0 %v2575
    %3495 = vmatprep.subr.bf16.mxu0 %v2572
    %3496 = vmatpush2.bf16.msra.mxu0 %v2571
    %3497 = vmatprep.subr.bf16.mxu0 %v2568
    %3498 = vmatpush2.bf16.msra.mxu0 %v2567
    %3499 = vmatprep.mubr.bf16.mxu0 %v202
    %3500 = vmatmul.mubr.bf16.gmra.mxu0 %v201
    %v3501 = vpop.f32.mrf.mxu0
    %v3502 = vadd.f32 %v3461, %v3501
    %v3503 = vpop.f32.mrf.mxu0
    %v3504 = vadd.f32 %v3463, %v3503
    %v3505 = vpop.f32.mrf.mxu0
    %v3506 = vpop.f32.mrf.mxu0
    %3507 = vdwg.mxu0
    %3508 = vmatprep.subr.bf16.mxu0 %v2628
    %3509 = vmatpush1.bf16.msra.mxu0 %v2627
    %3510 = vmatprep.subr.bf16.mxu0 %v2624
    %3511 = vmatpush1.bf16.msra.mxu0 %v2623
    %3512 = vmatprep.subr.bf16.mxu0 %v2620
    %3513 = vmatpush1.bf16.msra.mxu0 %v2619
    %3514 = vmatprep.subr.bf16.mxu0 %v2616
    %3515 = vmatpush1.bf16.msra.mxu0 %v2615
    %3516 = vmatprep.subr.bf16.mxu0 %v2612
    %3517 = vmatpush1.bf16.msra.mxu0 %v2611
    %3518 = vmatprep.subr.bf16.mxu0 %v2608
    %3519 = vmatpush1.bf16.msra.mxu0 %v2607
    %3520 = vmatprep.subr.bf16.mxu0 %v2604
    %3521 = vmatpush1.bf16.msra.mxu0 %v2603
    %3522 = vmatprep.subr.bf16.mxu0 %v2600
    %3523 = vmatpush1.bf16.msra.mxu0 %v2599
    %3524 = vmatprep.subr.bf16.mxu0 %v2660
    %3525 = vmatpush2.bf16.msra.mxu0 %v2659
    %3526 = vmatprep.subr.bf16.mxu0 %v2656
    %3527 = vmatpush2.bf16.msra.mxu0 %v2655
    %3528 = vmatprep.subr.bf16.mxu0 %v2652
    %3529 = vmatpush2.bf16.msra.mxu0 %v2651
    %3530 = vmatprep.subr.bf16.mxu0 %v2648
    %3531 = vmatpush2.bf16.msra.mxu0 %v2647
    %3532 = vmatprep.subr.bf16.mxu0 %v2644
    %3533 = vmatpush2.bf16.msra.mxu0 %v2643
    %3534 = vmatprep.subr.bf16.mxu0 %v2640
    %3535 = vmatpush2.bf16.msra.mxu0 %v2639
    %3536 = vmatprep.subr.bf16.mxu0 %v2636
    %3537 = vmatpush2.bf16.msra.mxu0 %v2635
    %3538 = vmatprep.subr.bf16.mxu0 %v2632
    %3539 = vmatpush2.bf16.msra.mxu0 %v2631
    %3540 = vmatprep.mubr.bf16.mxu0 %v204
    %3541 = vmatmul.mubr.bf16.gmra.mxu0 %v203
    %v3542 = vpop.f32.mrf.mxu0
    %v3543 = vadd.f32 %v3502, %v3542
    %v3544 = vpop.f32.mrf.mxu0
    %v3545 = vadd.f32 %v3504, %v3544
    %v3546 = vpop.f32.mrf.mxu0
    %v3547 = vpop.f32.mrf.mxu0
    %3548 = vdwg.mxu0
    %3549 = vmatprep.subr.bf16.mxu0 %v2692
    %3550 = vmatpush1.bf16.msra.mxu0 %v2691
    %3551 = vmatprep.subr.bf16.mxu0 %v2688
    %3552 = vmatpush1.bf16.msra.mxu0 %v2687
    %3553 = vmatprep.subr.bf16.mxu0 %v2684
    %3554 = vmatpush1.bf16.msra.mxu0 %v2683
    %3555 = vmatprep.subr.bf16.mxu0 %v2680
    %3556 = vmatpush1.bf16.msra.mxu0 %v2679
    %3557 = vmatprep.subr.bf16.mxu0 %v2676
    %3558 = vmatpush1.bf16.msra.mxu0 %v2675
    %3559 = vmatprep.subr.bf16.mxu0 %v2672
    %3560 = vmatpush1.bf16.msra.mxu0 %v2671
    %3561 = vmatprep.subr.bf16.mxu0 %v2668
    %3562 = vmatpush1.bf16.msra.mxu0 %v2667
    %3563 = vmatprep.subr.bf16.mxu0 %v2664
    %3564 = vmatpush1.bf16.msra.mxu0 %v2663
    %3565 = vmatprep.subr.bf16.mxu0 %v2724
    %3566 = vmatpush2.bf16.msra.mxu0 %v2723
    %3567 = vmatprep.subr.bf16.mxu0 %v2720
    %3568 = vmatpush2.bf16.msra.mxu0 %v2719
    %3569 = vmatprep.subr.bf16.mxu0 %v2716
    %3570 = vmatpush2.bf16.msra.mxu0 %v2715
    %3571 = vmatprep.subr.bf16.mxu0 %v2712
    %3572 = vmatpush2.bf16.msra.mxu0 %v2711
    %3573 = vmatprep.subr.bf16.mxu0 %v2708
    %3574 = vmatpush2.bf16.msra.mxu0 %v2707
    %3575 = vmatprep.subr.bf16.mxu0 %v2704
    %3576 = vmatpush2.bf16.msra.mxu0 %v2703
    %3577 = vmatprep.subr.bf16.mxu0 %v2700
    %3578 = vmatpush2.bf16.msra.mxu0 %v2699
    %3579 = vmatprep.subr.bf16.mxu0 %v2696
    %3580 = vmatpush2.bf16.msra.mxu0 %v2695
    %3581 = vmatprep.mubr.bf16.mxu0 %v206
    %3582 = vmatmul.mubr.bf16.gmra.mxu0 %v205
    %v3583 = vpop.f32.mrf.mxu0
    %v3584 = vadd.f32 %v3543, %v3583
    %v3585 = vpop.f32.mrf.mxu0
    %v3586 = vadd.f32 %v3545, %v3585
    %v3587 = vpop.f32.mrf.mxu0
    %v3588 = vpop.f32.mrf.mxu0
    %3589 = vdwg.mxu0
    %3590 = vmatprep.subr.bf16.mxu0 %v2756
    %3591 = vmatpush1.bf16.msra.mxu0 %v2755
    %3592 = vmatprep.subr.bf16.mxu0 %v2752
    %3593 = vmatpush1.bf16.msra.mxu0 %v2751
    %3594 = vmatprep.subr.bf16.mxu0 %v2748
    %3595 = vmatpush1.bf16.msra.mxu0 %v2747
    %3596 = vmatprep.subr.bf16.mxu0 %v2744
    %3597 = vmatpush1.bf16.msra.mxu0 %v2743
    %3598 = vmatprep.subr.bf16.mxu0 %v2740
    %3599 = vmatpush1.bf16.msra.mxu0 %v2739
    %3600 = vmatprep.subr.bf16.mxu0 %v2736
    %3601 = vmatpush1.bf16.msra.mxu0 %v2735
    %3602 = vmatprep.subr.bf16.mxu0 %v2732
    %3603 = vmatpush1.bf16.msra.mxu0 %v2731
    %3604 = vmatprep.subr.bf16.mxu0 %v2728
    %3605 = vmatpush1.bf16.msra.mxu0 %v2727
    %3606 = vmatprep.subr.bf16.mxu0 %v2788
    %3607 = vmatpush2.bf16.msra.mxu0 %v2787
    %3608 = vmatprep.subr.bf16.mxu0 %v2784
    %3609 = vmatpush2.bf16.msra.mxu0 %v2783
    %3610 = vmatprep.subr.bf16.mxu0 %v2780
    %3611 = vmatpush2.bf16.msra.mxu0 %v2779
    %3612 = vmatprep.subr.bf16.mxu0 %v2776
    %3613 = vmatpush2.bf16.msra.mxu0 %v2775
    %3614 = vmatprep.subr.bf16.mxu0 %v2772
    %3615 = vmatpush2.bf16.msra.mxu0 %v2771
    %3616 = vmatprep.subr.bf16.mxu0 %v2768
    %3617 = vmatpush2.bf16.msra.mxu0 %v2767
    %3618 = vmatprep.subr.bf16.mxu0 %v2764
    %3619 = vmatpush2.bf16.msra.mxu0 %v2763
    %3620 = vmatprep.subr.bf16.mxu0 %v2760
    %3621 = vmatpush2.bf16.msra.mxu0 %v2759
    %3622 = vmatprep.mubr.bf16.mxu0 %v208
    %3623 = vmatmul.mubr.bf16.gmra.mxu0 %v207
    %v3624 = vpop.f32.mrf.mxu0
    %v3625 = vadd.f32 %v3584, %v3624
    %v3626 = vpop.f32.mrf.mxu0
    %v3627 = vadd.f32 %v3586, %v3626
    %v3628 = vpop.f32.mrf.mxu0
    %v3629 = vpop.f32.mrf.mxu0
    %3630 = vdwg.mxu0
    %3631 = vmatprep.subr.bf16.mxu0 %v2310
    %3632 = vmatpush1.bf16.msra.mxu0 %v2309
    %3633 = vmatprep.subr.bf16.mxu0 %v2306
    %3634 = vmatpush1.bf16.msra.mxu0 %v2305
    %3635 = vmatprep.subr.bf16.mxu0 %v2302
    %3636 = vmatpush1.bf16.msra.mxu0 %v2301
    %3637 = vmatprep.subr.bf16.mxu0 %v2298
    %3638 = vmatpush1.bf16.msra.mxu0 %v2297
    %3639 = vmatprep.subr.bf16.mxu0 %v2294
    %3640 = vmatpush1.bf16.msra.mxu0 %v2293
    %3641 = vmatprep.subr.bf16.mxu0 %v2290
    %3642 = vmatpush1.bf16.msra.mxu0 %v2289
    %3643 = vmatprep.subr.bf16.mxu0 %v2286
    %3644 = vmatpush1.bf16.msra.mxu0 %v2285
    %3645 = vmatprep.subr.bf16.mxu0 %v2282
    %3646 = vmatpush1.bf16.msra.mxu0 %v2281
    %3647 = vmatprep.subr.bf16.mxu0 %v2342
    %3648 = vmatpush2.bf16.msra.mxu0 %v2341
    %3649 = vmatprep.subr.bf16.mxu0 %v2338
    %3650 = vmatpush2.bf16.msra.mxu0 %v2337
    %3651 = vmatprep.subr.bf16.mxu0 %v2334
    %3652 = vmatpush2.bf16.msra.mxu0 %v2333
    %3653 = vmatprep.subr.bf16.mxu0 %v2330
    %3654 = vmatpush2.bf16.msra.mxu0 %v2329
    %3655 = vmatprep.subr.bf16.mxu0 %v2326
    %3656 = vmatpush2.bf16.msra.mxu0 %v2325
    %3657 = vmatprep.subr.bf16.mxu0 %v2322
    %3658 = vmatpush2.bf16.msra.mxu0 %v2321
    %3659 = vmatprep.subr.bf16.mxu0 %v2318
    %3660 = vmatpush2.bf16.msra.mxu0 %v2317
    %3661 = vmatprep.subr.bf16.mxu0 %v2314
    %3662 = vmatpush2.bf16.msra.mxu0 %v2313
    %3663 = vmatprep.mubr.bf16.mxu0 %v194
    %3664 = vmatmul.mubr.bf16.gmra.mxu0 %v193
    %v3665 = vpop.f32.mrf.mxu0
    %v3666 = vadd.f32 %v734, %v3665
    %v3667 = vpop.f32.mrf.mxu0
    %v3668 = vadd.f32 %v738, %v3667
    %v3669 = vpop.f32.mrf.mxu0
    %v3670 = vpop.f32.mrf.mxu0
    %3671 = vdwg.mxu0
    %3672 = vmatprep.subr.bf16.mxu0 %v2374
    %3673 = vmatpush1.bf16.msra.mxu0 %v2373
    %3674 = vmatprep.subr.bf16.mxu0 %v2370
    %3675 = vmatpush1.bf16.msra.mxu0 %v2369
    %3676 = vmatprep.subr.bf16.mxu0 %v2366
    %3677 = vmatpush1.bf16.msra.mxu0 %v2365
    %3678 = vmatprep.subr.bf16.mxu0 %v2362
    %3679 = vmatpush1.bf16.msra.mxu0 %v2361
    %3680 = vmatprep.subr.bf16.mxu0 %v2358
    %3681 = vmatpush1.bf16.msra.mxu0 %v2357
    %3682 = vmatprep.subr.bf16.mxu0 %v2354
    %3683 = vmatpush1.bf16.msra.mxu0 %v2353
    %3684 = vmatprep.subr.bf16.mxu0 %v2350
    %3685 = vmatpush1.bf16.msra.mxu0 %v2349
    %3686 = vmatprep.subr.bf16.mxu0 %v2346
    %3687 = vmatpush1.bf16.msra.mxu0 %v2345
    %3688 = vmatprep.subr.bf16.mxu0 %v2406
    %3689 = vmatpush2.bf16.msra.mxu0 %v2405
    %3690 = vmatprep.subr.bf16.mxu0 %v2402
    %3691 = vmatpush2.bf16.msra.mxu0 %v2401
    %3692 = vmatprep.subr.bf16.mxu0 %v2398
    %3693 = vmatpush2.bf16.msra.mxu0 %v2397
    %3694 = vmatprep.subr.bf16.mxu0 %v2394
    %3695 = vmatpush2.bf16.msra.mxu0 %v2393
    %3696 = vmatprep.subr.bf16.mxu0 %v2390
    %3697 = vmatpush2.bf16.msra.mxu0 %v2389
    %3698 = vmatprep.subr.bf16.mxu0 %v2386
    %3699 = vmatpush2.bf16.msra.mxu0 %v2385
    %3700 = vmatprep.subr.bf16.mxu0 %v2382
    %3701 = vmatpush2.bf16.msra.mxu0 %v2381
    %3702 = vmatprep.subr.bf16.mxu0 %v2378
    %3703 = vmatpush2.bf16.msra.mxu0 %v2377
    %3704 = vmatprep.mubr.bf16.mxu0 %v196
    %3705 = vmatmul.mubr.bf16.gmra.mxu0 %v195
    %v3706 = vpop.f32.mrf.mxu0
    %v3707 = vadd.f32 %v3666, %v3706
    %v3708 = vpop.f32.mrf.mxu0
    %v3709 = vadd.f32 %v3668, %v3708
    %v3710 = vpop.f32.mrf.mxu0
    %v3711 = vpop.f32.mrf.mxu0
    %3712 = vdwg.mxu0
    %3713 = vmatprep.subr.bf16.mxu0 %v2438
    %3714 = vmatpush1.bf16.msra.mxu0 %v2437
    %3715 = vmatprep.subr.bf16.mxu0 %v2434
    %3716 = vmatpush1.bf16.msra.mxu0 %v2433
    %3717 = vmatprep.subr.bf16.mxu0 %v2430
    %3718 = vmatpush1.bf16.msra.mxu0 %v2429
    %3719 = vmatprep.subr.bf16.mxu0 %v2426
    %3720 = vmatpush1.bf16.msra.mxu0 %v2425
    %3721 = vmatprep.subr.bf16.mxu0 %v2422
    %3722 = vmatpush1.bf16.msra.mxu0 %v2421
    %3723 = vmatprep.subr.bf16.mxu0 %v2418
    %3724 = vmatpush1.bf16.msra.mxu0 %v2417
    %3725 = vmatprep.subr.bf16.mxu0 %v2414
    %3726 = vmatpush1.bf16.msra.mxu0 %v2413
    %3727 = vmatprep.subr.bf16.mxu0 %v2410
    %3728 = vmatpush1.bf16.msra.mxu0 %v2409
    %3729 = vmatprep.subr.bf16.mxu0 %v2470
    %3730 = vmatpush2.bf16.msra.mxu0 %v2469
    %3731 = vmatprep.subr.bf16.mxu0 %v2466
    %3732 = vmatpush2.bf16.msra.mxu0 %v2465
    %3733 = vmatprep.subr.bf16.mxu0 %v2462
    %3734 = vmatpush2.bf16.msra.mxu0 %v2461
    %3735 = vmatprep.subr.bf16.mxu0 %v2458
    %3736 = vmatpush2.bf16.msra.mxu0 %v2457
    %3737 = vmatprep.subr.bf16.mxu0 %v2454
    %3738 = vmatpush2.bf16.msra.mxu0 %v2453
    %3739 = vmatprep.subr.bf16.mxu0 %v2450
    %3740 = vmatpush2.bf16.msra.mxu0 %v2449
    %3741 = vmatprep.subr.bf16.mxu0 %v2446
    %3742 = vmatpush2.bf16.msra.mxu0 %v2445
    %3743 = vmatprep.subr.bf16.mxu0 %v2442
    %3744 = vmatpush2.bf16.msra.mxu0 %v2441
    %3745 = vmatprep.mubr.bf16.mxu0 %v198
    %3746 = vmatmul.mubr.bf16.gmra.mxu0 %v197
    %v3747 = vpop.f32.mrf.mxu0
    %v3748 = vadd.f32 %v3707, %v3747
    %v3749 = vpop.f32.mrf.mxu0
    %v3750 = vadd.f32 %v3709, %v3749
    %v3751 = vpop.f32.mrf.mxu0
    %v3752 = vpop.f32.mrf.mxu0
    %3753 = vdwg.mxu0
    %3754 = vmatprep.subr.bf16.mxu0 %v2502
    %3755 = vmatpush1.bf16.msra.mxu0 %v2501
    %3756 = vmatprep.subr.bf16.mxu0 %v2498
    %3757 = vmatpush1.bf16.msra.mxu0 %v2497
    %3758 = vmatprep.subr.bf16.mxu0 %v2494
    %3759 = vmatpush1.bf16.msra.mxu0 %v2493
    %3760 = vmatprep.subr.bf16.mxu0 %v2490
    %3761 = vmatpush1.bf16.msra.mxu0 %v2489
    %3762 = vmatprep.subr.bf16.mxu0 %v2486
    %3763 = vmatpush1.bf16.msra.mxu0 %v2485
    %3764 = vmatprep.subr.bf16.mxu0 %v2482
    %3765 = vmatpush1.bf16.msra.mxu0 %v2481
    %3766 = vmatprep.subr.bf16.mxu0 %v2478
    %3767 = vmatpush1.bf16.msra.mxu0 %v2477
    %3768 = vmatprep.subr.bf16.mxu0 %v2474
    %3769 = vmatpush1.bf16.msra.mxu0 %v2473
    %3770 = vmatprep.subr.bf16.mxu0 %v2534
    %3771 = vmatpush2.bf16.msra.mxu0 %v2533
    %3772 = vmatprep.subr.bf16.mxu0 %v2530
    %3773 = vmatpush2.bf16.msra.mxu0 %v2529
    %3774 = vmatprep.subr.bf16.mxu0 %v2526
    %3775 = vmatpush2.bf16.msra.mxu0 %v2525
    %3776 = vmatprep.subr.bf16.mxu0 %v2522
    %3777 = vmatpush2.bf16.msra.mxu0 %v2521
    %3778 = vmatprep.subr.bf16.mxu0 %v2518
    %3779 = vmatpush2.bf16.msra.mxu0 %v2517
    %3780 = vmatprep.subr.bf16.mxu0 %v2514
    %3781 = vmatpush2.bf16.msra.mxu0 %v2513
    %3782 = vmatprep.subr.bf16.mxu0 %v2510
    %3783 = vmatpush2.bf16.msra.mxu0 %v2509
    %3784 = vmatprep.subr.bf16.mxu0 %v2506
    %3785 = vmatpush2.bf16.msra.mxu0 %v2505
    %3786 = vmatprep.mubr.bf16.mxu0 %v200
    %3787 = vmatmul.mubr.bf16.gmra.mxu0 %v199
    %v3788 = vpop.f32.mrf.mxu0
    %v3789 = vadd.f32 %v3748, %v3788
    %v3790 = vpop.f32.mrf.mxu0
    %v3791 = vadd.f32 %v3750, %v3790
    %v3792 = vpop.f32.mrf.mxu0
    %v3793 = vpop.f32.mrf.mxu0
    %3794 = vdwg.mxu0
    %3795 = vmatprep.subr.bf16.mxu0 %v2566
    %3796 = vmatpush1.bf16.msra.mxu0 %v2565
    %3797 = vmatprep.subr.bf16.mxu0 %v2562
    %3798 = vmatpush1.bf16.msra.mxu0 %v2561
    %3799 = vmatprep.subr.bf16.mxu0 %v2558
    %3800 = vmatpush1.bf16.msra.mxu0 %v2557
    %3801 = vmatprep.subr.bf16.mxu0 %v2554
    %3802 = vmatpush1.bf16.msra.mxu0 %v2553
    %3803 = vmatprep.subr.bf16.mxu0 %v2550
    %3804 = vmatpush1.bf16.msra.mxu0 %v2549
    %3805 = vmatprep.subr.bf16.mxu0 %v2546
    %3806 = vmatpush1.bf16.msra.mxu0 %v2545
    %3807 = vmatprep.subr.bf16.mxu0 %v2542
    %3808 = vmatpush1.bf16.msra.mxu0 %v2541
    %3809 = vmatprep.subr.bf16.mxu0 %v2538
    %3810 = vmatpush1.bf16.msra.mxu0 %v2537
    %3811 = vmatprep.subr.bf16.mxu0 %v2598
    %3812 = vmatpush2.bf16.msra.mxu0 %v2597
    %3813 = vmatprep.subr.bf16.mxu0 %v2594
    %3814 = vmatpush2.bf16.msra.mxu0 %v2593
    %3815 = vmatprep.subr.bf16.mxu0 %v2590
    %3816 = vmatpush2.bf16.msra.mxu0 %v2589
    %3817 = vmatprep.subr.bf16.mxu0 %v2586
    %3818 = vmatpush2.bf16.msra.mxu0 %v2585
    %3819 = vmatprep.subr.bf16.mxu0 %v2582
    %3820 = vmatpush2.bf16.msra.mxu0 %v2581
    %3821 = vmatprep.subr.bf16.mxu0 %v2578
    %3822 = vmatpush2.bf16.msra.mxu0 %v2577
    %3823 = vmatprep.subr.bf16.mxu0 %v2574
    %3824 = vmatpush2.bf16.msra.mxu0 %v2573
    %3825 = vmatprep.subr.bf16.mxu0 %v2570
    %3826 = vmatpush2.bf16.msra.mxu0 %v2569
    %3827 = vmatprep.mubr.bf16.mxu0 %v202
    %3828 = vmatmul.mubr.bf16.gmra.mxu0 %v201
    %v3829 = vpop.f32.mrf.mxu0
    %v3830 = vadd.f32 %v3789, %v3829
    %v3831 = vpop.f32.mrf.mxu0
    %v3832 = vadd.f32 %v3791, %v3831
    %v3833 = vpop.f32.mrf.mxu0
    %v3834 = vpop.f32.mrf.mxu0
    %3835 = vdwg.mxu0
    %3836 = vmatprep.subr.bf16.mxu0 %v2630
    %3837 = vmatpush1.bf16.msra.mxu0 %v2629
    %3838 = vmatprep.subr.bf16.mxu0 %v2626
    %3839 = vmatpush1.bf16.msra.mxu0 %v2625
    %3840 = vmatprep.subr.bf16.mxu0 %v2622
    %3841 = vmatpush1.bf16.msra.mxu0 %v2621
    %3842 = vmatprep.subr.bf16.mxu0 %v2618
    %3843 = vmatpush1.bf16.msra.mxu0 %v2617
    %3844 = vmatprep.subr.bf16.mxu0 %v2614
    %3845 = vmatpush1.bf16.msra.mxu0 %v2613
    %3846 = vmatprep.subr.bf16.mxu0 %v2610
    %3847 = vmatpush1.bf16.msra.mxu0 %v2609
    %3848 = vmatprep.subr.bf16.mxu0 %v2606
    %3849 = vmatpush1.bf16.msra.mxu0 %v2605
    %3850 = vmatprep.subr.bf16.mxu0 %v2602
    %3851 = vmatpush1.bf16.msra.mxu0 %v2601
    %3852 = vmatprep.subr.bf16.mxu0 %v2662
    %3853 = vmatpush2.bf16.msra.mxu0 %v2661
    %3854 = vmatprep.subr.bf16.mxu0 %v2658
    %3855 = vmatpush2.bf16.msra.mxu0 %v2657
    %3856 = vmatprep.subr.bf16.mxu0 %v2654
    %3857 = vmatpush2.bf16.msra.mxu0 %v2653
    %3858 = vmatprep.subr.bf16.mxu0 %v2650
    %3859 = vmatpush2.bf16.msra.mxu0 %v2649
    %3860 = vmatprep.subr.bf16.mxu0 %v2646
    %3861 = vmatpush2.bf16.msra.mxu0 %v2645
    %3862 = vmatprep.subr.bf16.mxu0 %v2642
    %3863 = vmatpush2.bf16.msra.mxu0 %v2641
    %3864 = vmatprep.subr.bf16.mxu0 %v2638
    %3865 = vmatpush2.bf16.msra.mxu0 %v2637
    %3866 = vmatprep.subr.bf16.mxu0 %v2634
    %3867 = vmatpush2.bf16.msra.mxu0 %v2633
    %3868 = vmatprep.mubr.bf16.mxu0 %v204
    %3869 = vmatmul.mubr.bf16.gmra.mxu0 %v203
    %v3870 = vpop.f32.mrf.mxu0
    %v3871 = vadd.f32 %v3830, %v3870
    %v3872 = vpop.f32.mrf.mxu0
    %v3873 = vadd.f32 %v3832, %v3872
    %v3874 = vpop.f32.mrf.mxu0
    %v3875 = vpop.f32.mrf.mxu0
    %3876 = vdwg.mxu0
    %3877 = vmatprep.subr.bf16.mxu0 %v2694
    %3878 = vmatpush1.bf16.msra.mxu0 %v2693
    %3879 = vmatprep.subr.bf16.mxu0 %v2690
    %3880 = vmatpush1.bf16.msra.mxu0 %v2689
    %3881 = vmatprep.subr.bf16.mxu0 %v2686
    %3882 = vmatpush1.bf16.msra.mxu0 %v2685
    %3883 = vmatprep.subr.bf16.mxu0 %v2682
    %3884 = vmatpush1.bf16.msra.mxu0 %v2681
    %3885 = vmatprep.subr.bf16.mxu0 %v2678
    %3886 = vmatpush1.bf16.msra.mxu0 %v2677
    %3887 = vmatprep.subr.bf16.mxu0 %v2674
    %3888 = vmatpush1.bf16.msra.mxu0 %v2673
    %3889 = vmatprep.subr.bf16.mxu0 %v2670
    %3890 = vmatpush1.bf16.msra.mxu0 %v2669
    %3891 = vmatprep.subr.bf16.mxu0 %v2666
    %3892 = vmatpush1.bf16.msra.mxu0 %v2665
    %3893 = vmatprep.subr.bf16.mxu0 %v2726
    %3894 = vmatpush2.bf16.msra.mxu0 %v2725
    %3895 = vmatprep.subr.bf16.mxu0 %v2722
    %3896 = vmatpush2.bf16.msra.mxu0 %v2721
    %3897 = vmatprep.subr.bf16.mxu0 %v2718
    %3898 = vmatpush2.bf16.msra.mxu0 %v2717
    %3899 = vmatprep.subr.bf16.mxu0 %v2714
    %3900 = vmatpush2.bf16.msra.mxu0 %v2713
    %3901 = vmatprep.subr.bf16.mxu0 %v2710
    %3902 = vmatpush2.bf16.msra.mxu0 %v2709
    %3903 = vmatprep.subr.bf16.mxu0 %v2706
    %3904 = vmatpush2.bf16.msra.mxu0 %v2705
    %3905 = vmatprep.subr.bf16.mxu0 %v2702
    %3906 = vmatpush2.bf16.msra.mxu0 %v2701
    %3907 = vmatprep.subr.bf16.mxu0 %v2698
    %3908 = vmatpush2.bf16.msra.mxu0 %v2697
    %3909 = vmatprep.mubr.bf16.mxu0 %v206
    %3910 = vmatmul.mubr.bf16.gmra.mxu0 %v205
    %v3911 = vpop.f32.mrf.mxu0
    %v3912 = vadd.f32 %v3871, %v3911
    %v3913 = vpop.f32.mrf.mxu0
    %v3914 = vadd.f32 %v3873, %v3913
    %v3915 = vpop.f32.mrf.mxu0
    %v3916 = vpop.f32.mrf.mxu0
    %3917 = vdwg.mxu0
    %3918 = vmatprep.subr.bf16.mxu0 %v2758
    %3919 = vmatpush1.bf16.msra.mxu0 %v2757
    %3920 = vmatprep.subr.bf16.mxu0 %v2754
    %3921 = vmatpush1.bf16.msra.mxu0 %v2753
    %3922 = vmatprep.subr.bf16.mxu0 %v2750
    %3923 = vmatpush1.bf16.msra.mxu0 %v2749
    %3924 = vmatprep.subr.bf16.mxu0 %v2746
    %3925 = vmatpush1.bf16.msra.mxu0 %v2745
    %3926 = vmatprep.subr.bf16.mxu0 %v2742
    %3927 = vmatpush1.bf16.msra.mxu0 %v2741
    %3928 = vmatprep.subr.bf16.mxu0 %v2738
    %3929 = vmatpush1.bf16.msra.mxu0 %v2737
    %3930 = vmatprep.subr.bf16.mxu0 %v2734
    %3931 = vmatpush1.bf16.msra.mxu0 %v2733
    %3932 = vmatprep.subr.bf16.mxu0 %v2730
    %3933 = vmatpush1.bf16.msra.mxu0 %v2729
    %3934 = vmatprep.subr.bf16.mxu0 %v2790
    %3935 = vmatpush2.bf16.msra.mxu0 %v2789
    %3936 = vmatprep.subr.bf16.mxu0 %v2786
    %3937 = vmatpush2.bf16.msra.mxu0 %v2785
    %3938 = vmatprep.subr.bf16.mxu0 %v2782
    %3939 = vmatpush2.bf16.msra.mxu0 %v2781
    %3940 = vmatprep.subr.bf16.mxu0 %v2778
    %3941 = vmatpush2.bf16.msra.mxu0 %v2777
    %3942 = vmatprep.subr.bf16.mxu0 %v2774
    %3943 = vmatpush2.bf16.msra.mxu0 %v2773
    %3944 = vmatprep.subr.bf16.mxu0 %v2770
    %3945 = vmatpush2.bf16.msra.mxu0 %v2769
    %3946 = vmatprep.subr.bf16.mxu0 %v2766
    %3947 = vmatpush2.bf16.msra.mxu0 %v2765
    %3948 = vmatprep.subr.bf16.mxu0 %v2762
    %3949 = vmatpush2.bf16.msra.mxu0 %v2761
    %3950 = vmatprep.mubr.bf16.mxu0 %v208
    %3951 = vmatmul.mubr.bf16.gmra.mxu0 %v207
    %v3952 = vpop.f32.mrf.mxu0
    %v3953 = vadd.f32 %v3912, %v3952
    %v3954 = vpop.f32.mrf.mxu0
    %v3955 = vadd.f32 %v3914, %v3954
    %v3956 = vpop.f32.mrf.mxu0
    %v3957 = vpop.f32.mrf.mxu0
    %3958 = vdwg.mxu0
    %v3959 = vmax.f32 %v3625, 0.0
    %v3960 = vmax.f32 %v3627, 0.0
    %v3961 = vmax.f32 %v3953, 0.0
    %v3962 = vmax.f32 %v3955, 0.0
    %v3963 = vld [vmem:[#allocation5] sm:$0xff]
    %v3964 = vld [vmem:[#allocation5 + $0x8] sm:$0xff]
    %v3965 = vld [vmem:[#allocation5 + $0x10] sm:$0xff]
    %v3966 = vpack.c.bf16 %v3963, %v3963
    %v3967 = vpack.c.bf16 %v3964, %v3964
    %v3968 = vpack.c.bf16 %v3965, %v3965
    %v3969 = vld [vmem:[#allocation10] sm:$0xff]
    %v3970 = vld [vmem:[#allocation10 + $0x8] sm:$0xf]
    %v3971 = vld [vmem:[#allocation10 + $0xc] sm:$0xff]
    %v3972 = vld [vmem:[#allocation10 + $0x14] sm:$0xf]
    %v3973 = vld [vmem:[#allocation10 + $0x18] sm:$0xff]
    %v3974 = vld [vmem:[#allocation10 + $0x20] sm:$0xf]
    %v3975 = vld [vmem:[#allocation10 + $0x24] sm:$0xff]
    %v3976 = vld [vmem:[#allocation10 + $0x2c] sm:$0xf]
    %v3977 = vld [vmem:[#allocation10 + $0x30] sm:$0xff]
    %v3978 = vld [vmem:[#allocation10 + $0x38] sm:$0xf]
    %v3979 = vld [vmem:[#allocation10 + $0x3c] sm:$0xff]
    %v3980 = vld [vmem:[#allocation10 + $0x44] sm:$0xf]
    %v3981 = vld [vmem:[#allocation10 + $0x48] sm:$0xff]
    %v3982 = vld [vmem:[#allocation10 + $0x50] sm:$0xf]
    %v3983 = vld [vmem:[#allocation10 + $0x54] sm:$0xff]
    %v3984 = vld [vmem:[#allocation10 + $0x5c] sm:$0xf]
    %v3985 = vld [vmem:[#allocation10 + $0x60] sm:$0xff]
    %v3986 = vld [vmem:[#allocation10 + $0x68] sm:$0xf]
    %v3987 = vld [vmem:[#allocation10 + $0x6c] sm:$0xff]
    %v3988 = vld [vmem:[#allocation10 + $0x74] sm:$0xf]
    %v3989 = vld [vmem:[#allocation10 + $0x78] sm:$0xff]
    %v3990 = vld [vmem:[#allocation10 + $0x80] sm:$0xf]
    %v3991 = vld [vmem:[#allocation10 + $0x84] sm:$0xff]
    %v3992 = vld [vmem:[#allocation10 + $0x8c] sm:$0xf]
    %v3993 = vld [vmem:[#allocation10 + $0x90] sm:$0xff]
    %v3994 = vld [vmem:[#allocation10 + $0x98] sm:$0xf]
    %v3995 = vld [vmem:[#allocation10 + $0x9c] sm:$0xff]
    %v3996 = vld [vmem:[#allocation10 + $0xa4] sm:$0xf]
    %v3997 = vld [vmem:[#allocation10 + $0xa8] sm:$0xff]
    %v3998 = vld [vmem:[#allocation10 + $0xb0] sm:$0xf]
    %v3999 = vld [vmem:[#allocation10 + $0xb4] sm:$0xff]
    %v4000 = vld [vmem:[#allocation10 + $0xbc] sm:$0xf]
    %v4001 = vld [vmem:[#allocation10 + $0xc0] sm:$0xff]
    %v4002 = vld [vmem:[#allocation10 + $0xc8] sm:$0xf]
    %v4003 = vld [vmem:[#allocation10 + $0xcc] sm:$0xff]
    %v4004 = vld [vmem:[#allocation10 + $0xd4] sm:$0xf]
    %v4005 = vld [vmem:[#allocation10 + $0xd8] sm:$0xff]
    %v4006 = vld [vmem:[#allocation10 + $0xe0] sm:$0xf]
    %v4007 = vld [vmem:[#allocation10 + $0xe4] sm:$0xff]
    %v4008 = vld [vmem:[#allocation10 + $0xec] sm:$0xf]
    %v4009 = vld [vmem:[#allocation10 + $0xf0] sm:$0xff]
    %v4010 = vld [vmem:[#allocation10 + $0xf8] sm:$0xf]
    %v4011 = vld [vmem:[#allocation10 + $0xfc] sm:$0xff]
    %v4012 = vld [vmem:[#allocation10 + $0x104] sm:$0xf]
    %v4013 = vld [vmem:[#allocation10 + $0x108] sm:$0xff]
    %v4014 = vld [vmem:[#allocation10 + $0x110] sm:$0xf]
    %v4015 = vld [vmem:[#allocation10 + $0x114] sm:$0xff]
    %v4016 = vld [vmem:[#allocation10 + $0x11c] sm:$0xf]
    %v4017 = vld [vmem:[#allocation10 + $0x120] sm:$0xff]
    %v4018 = vld [vmem:[#allocation10 + $0x128] sm:$0xf]
    %v4019 = vld [vmem:[#allocation10 + $0x12c] sm:$0xff]
    %v4020 = vld [vmem:[#allocation10 + $0x134] sm:$0xf]
    %v4021 = vld [vmem:[#allocation10 + $0x138] sm:$0xff]
    %v4022 = vld [vmem:[#allocation10 + $0x140] sm:$0xf]
    %v4023 = vld [vmem:[#allocation10 + $0x144] sm:$0xff]
    %v4024 = vld [vmem:[#allocation10 + $0x14c] sm:$0xf]
    %v4025 = vld [vmem:[#allocation10 + $0x150] sm:$0xff]
    %v4026 = vld [vmem:[#allocation10 + $0x158] sm:$0xf]
    %v4027 = vld [vmem:[#allocation10 + $0x15c] sm:$0xff]
    %v4028 = vld [vmem:[#allocation10 + $0x164] sm:$0xf]
    %v4029 = vld [vmem:[#allocation10 + $0x168] sm:$0xff]
    %v4030 = vld [vmem:[#allocation10 + $0x170] sm:$0xf]
    %v4031 = vld [vmem:[#allocation10 + $0x174] sm:$0xff]
    %v4032 = vld [vmem:[#allocation10 + $0x17c] sm:$0xf]
    %v4033 = vld [vmem:[#allocation10 + $0x180] sm:$0xff]
    %v4034 = vld [vmem:[#allocation10 + $0x188] sm:$0xf]
    %v4035 = vld [vmem:[#allocation10 + $0x18c] sm:$0xff]
    %v4036 = vld [vmem:[#allocation10 + $0x194] sm:$0xf]
    %v4037 = vld [vmem:[#allocation10 + $0x198] sm:$0xff]
    %v4038 = vld [vmem:[#allocation10 + $0x1a0] sm:$0xf]
    %v4039 = vld [vmem:[#allocation10 + $0x1a4] sm:$0xff]
    %v4040 = vld [vmem:[#allocation10 + $0x1ac] sm:$0xf]
    %v4041 = vld [vmem:[#allocation10 + $0x1b0] sm:$0xff]
    %v4042 = vld [vmem:[#allocation10 + $0x1b8] sm:$0xf]
    %v4043 = vld [vmem:[#allocation10 + $0x1bc] sm:$0xff]
    %v4044 = vld [vmem:[#allocation10 + $0x1c4] sm:$0xf]
    %v4045 = vld [vmem:[#allocation10 + $0x1c8] sm:$0xff]
    %v4046 = vld [vmem:[#allocation10 + $0x1d0] sm:$0xf]
    %v4047 = vld [vmem:[#allocation10 + $0x1d4] sm:$0xff]
    %v4048 = vld [vmem:[#allocation10 + $0x1dc] sm:$0xf]
    %v4049 = vld [vmem:[#allocation10 + $0x1e0] sm:$0xff]
    %v4050 = vld [vmem:[#allocation10 + $0x1e8] sm:$0xf]
    %v4051 = vld [vmem:[#allocation10 + $0x1ec] sm:$0xff]
    %v4052 = vld [vmem:[#allocation10 + $0x1f4] sm:$0xf]
    %v4053 = vld [vmem:[#allocation10 + $0x1f8] sm:$0xff]
    %v4054 = vld [vmem:[#allocation10 + $0x200] sm:$0xf]
    %v4055 = vld [vmem:[#allocation10 + $0x204] sm:$0xff]
    %v4056 = vld [vmem:[#allocation10 + $0x20c] sm:$0xf]
    %v4057 = vld [vmem:[#allocation10 + $0x210] sm:$0xff]
    %v4058 = vld [vmem:[#allocation10 + $0x218] sm:$0xf]
    %v4059 = vld [vmem:[#allocation10 + $0x21c] sm:$0xff]
    %v4060 = vld [vmem:[#allocation10 + $0x224] sm:$0xf]
    %v4061 = vld [vmem:[#allocation10 + $0x228] sm:$0xff]
    %v4062 = vld [vmem:[#allocation10 + $0x230] sm:$0xf]
    %v4063 = vld [vmem:[#allocation10 + $0x234] sm:$0xff]
    %v4064 = vld [vmem:[#allocation10 + $0x23c] sm:$0xf]
    %v4065 = vld [vmem:[#allocation11] sm:$0x7]
    %v4067 = vlaneseq
    %v4068 = vshrl.u32 %v4067, 7
    %v4069 = vsub.s32 0, %v4068
    %v4070 = vrot.slane %v4065, %v4069
    %v4071 = vlaneseq
    %v4072 = vshrl.u32 %v4071, 7
    %v4073 = vsub.s32 1, %v4072
    %v4074 = vrot.slane %v4065, %v4073
    %v4075 = vlaneseq
    %v4076 = vshrl.u32 %v4075, 7
    %v4077 = vsub.s32 2, %v4076
    %v4078 = vrot.slane %v4065, %v4077
    %v4178 = vunpack.c.l.b16 %v3969
    %v4179 = vunpack.c.h.b16 %v3969
    %v4180 = vunpack.c.l.b16 %v3970
    %v4181 = vunpack.c.l.b16 %v3971
    %v4182 = vunpack.c.h.b16 %v3971
    %v4183 = vunpack.c.l.b16 %v3972
    %v4184 = vunpack.c.l.b16 %v3973
    %v4185 = vunpack.c.h.b16 %v3973
    %v4186 = vunpack.c.l.b16 %v3974
    %v4187 = vunpack.c.l.b16 %v3975
    %v4188 = vunpack.c.h.b16 %v3975
    %v4189 = vunpack.c.l.b16 %v3976
    %v4190 = vunpack.c.l.b16 %v3977
    %v4191 = vunpack.c.h.b16 %v3977
    %v4192 = vunpack.c.l.b16 %v3978
    %v4193 = vunpack.c.l.b16 %v3979
    %v4194 = vunpack.c.h.b16 %v3979
    %v4195 = vunpack.c.l.b16 %v3980
    %v4196 = vunpack.c.l.b16 %v3981
    %v4197 = vunpack.c.h.b16 %v3981
    %v4198 = vunpack.c.l.b16 %v3982
    %v4199 = vunpack.c.l.b16 %v3983
    %v4200 = vunpack.c.h.b16 %v3983
    %v4201 = vunpack.c.l.b16 %v3984
    %v4202 = vunpack.c.l.b16 %v3985
    %v4203 = vunpack.c.h.b16 %v3985
    %v4204 = vunpack.c.l.b16 %v3986
    %v4205 = vunpack.c.l.b16 %v3987
    %v4206 = vunpack.c.h.b16 %v3987
    %v4207 = vunpack.c.l.b16 %v3988
    %v4208 = vunpack.c.l.b16 %v3989
    %v4209 = vunpack.c.h.b16 %v3989
    %v4210 = vunpack.c.l.b16 %v3990
    %v4211 = vunpack.c.l.b16 %v3991
    %v4212 = vunpack.c.h.b16 %v3991
    %v4213 = vunpack.c.l.b16 %v3992
    %v4214 = vunpack.c.l.b16 %v3993
    %v4215 = vunpack.c.h.b16 %v3993
    %v4216 = vunpack.c.l.b16 %v3994
    %v4217 = vunpack.c.l.b16 %v3995
    %v4218 = vunpack.c.h.b16 %v3995
    %v4219 = vunpack.c.l.b16 %v3996
    %v4220 = vunpack.c.l.b16 %v3997
    %v4221 = vunpack.c.h.b16 %v3997
    %v4222 = vunpack.c.l.b16 %v3998
    %v4223 = vunpack.c.l.b16 %v3999
    %v4224 = vunpack.c.h.b16 %v3999
    %v4225 = vunpack.c.l.b16 %v4000
    %v4226 = vunpack.c.l.b16 %v4001
    %v4227 = vunpack.c.h.b16 %v4001
    %v4228 = vunpack.c.l.b16 %v4002
    %v4229 = vunpack.c.l.b16 %v4003
    %v4230 = vunpack.c.h.b16 %v4003
    %v4231 = vunpack.c.l.b16 %v4004
    %v4232 = vunpack.c.l.b16 %v4005
    %v4233 = vunpack.c.h.b16 %v4005
    %v4234 = vunpack.c.l.b16 %v4006
    %v4235 = vunpack.c.l.b16 %v4007
    %v4236 = vunpack.c.h.b16 %v4007
    %v4237 = vunpack.c.l.b16 %v4008
    %v4238 = vunpack.c.l.b16 %v4009
    %v4239 = vunpack.c.h.b16 %v4009
    %v4240 = vunpack.c.l.b16 %v4010
    %v4241 = vunpack.c.l.b16 %v4011
    %v4242 = vunpack.c.h.b16 %v4011
    %v4243 = vunpack.c.l.b16 %v4012
    %v4244 = vunpack.c.l.b16 %v4013
    %v4245 = vunpack.c.h.b16 %v4013
    %v4246 = vunpack.c.l.b16 %v4014
    %v4247 = vunpack.c.l.b16 %v4015
    %v4248 = vunpack.c.h.b16 %v4015
    %v4249 = vunpack.c.l.b16 %v4016
    %v4250 = vunpack.c.l.b16 %v4017
    %v4251 = vunpack.c.h.b16 %v4017
    %v4252 = vunpack.c.l.b16 %v4018
    %v4253 = vunpack.c.l.b16 %v4019
    %v4254 = vunpack.c.h.b16 %v4019
    %v4255 = vunpack.c.l.b16 %v4020
    %v4256 = vunpack.c.l.b16 %v4021
    %v4257 = vunpack.c.h.b16 %v4021
    %v4258 = vunpack.c.l.b16 %v4022
    %v4259 = vunpack.c.l.b16 %v4023
    %v4260 = vunpack.c.h.b16 %v4023
    %v4261 = vunpack.c.l.b16 %v4024
    %v4262 = vunpack.c.l.b16 %v4025
    %v4263 = vunpack.c.h.b16 %v4025
    %v4264 = vunpack.c.l.b16 %v4026
    %v4265 = vunpack.c.l.b16 %v4027
    %v4266 = vunpack.c.h.b16 %v4027
    %v4267 = vunpack.c.l.b16 %v4028
    %v4268 = vunpack.c.l.b16 %v4029
    %v4269 = vunpack.c.h.b16 %v4029
    %v4270 = vunpack.c.l.b16 %v4030
    %v4271 = vunpack.c.l.b16 %v4031
    %v4272 = vunpack.c.h.b16 %v4031
    %v4273 = vunpack.c.l.b16 %v4032
    %v4274 = vunpack.c.l.b16 %v4033
    %v4275 = vunpack.c.h.b16 %v4033
    %v4276 = vunpack.c.l.b16 %v4034
    %v4277 = vunpack.c.l.b16 %v4035
    %v4278 = vunpack.c.h.b16 %v4035
    %v4279 = vunpack.c.l.b16 %v4036
    %v4280 = vunpack.c.l.b16 %v4037
    %v4281 = vunpack.c.h.b16 %v4037
    %v4282 = vunpack.c.l.b16 %v4038
    %v4283 = vunpack.c.l.b16 %v4039
    %v4284 = vunpack.c.h.b16 %v4039
    %v4285 = vunpack.c.l.b16 %v4040
    %v4286 = vunpack.c.l.b16 %v4041
    %v4287 = vunpack.c.h.b16 %v4041
    %v4288 = vunpack.c.l.b16 %v4042
    %v4289 = vunpack.c.l.b16 %v4043
    %v4290 = vunpack.c.h.b16 %v4043
    %v4291 = vunpack.c.l.b16 %v4044
    %v4292 = vunpack.c.l.b16 %v4045
    %v4293 = vunpack.c.h.b16 %v4045
    %v4294 = vunpack.c.l.b16 %v4046
    %v4295 = vunpack.c.l.b16 %v4047
    %v4296 = vunpack.c.h.b16 %v4047
    %v4297 = vunpack.c.l.b16 %v4048
    %v4298 = vunpack.c.l.b16 %v4049
    %v4299 = vunpack.c.h.b16 %v4049
    %v4300 = vunpack.c.l.b16 %v4050
    %v4301 = vunpack.c.l.b16 %v4051
    %v4302 = vunpack.c.h.b16 %v4051
    %v4303 = vunpack.c.l.b16 %v4052
    %v4304 = vunpack.c.l.b16 %v4053
    %v4305 = vunpack.c.h.b16 %v4053
    %v4306 = vunpack.c.l.b16 %v4054
    %v4307 = vunpack.c.l.b16 %v4055
    %v4308 = vunpack.c.h.b16 %v4055
    %v4309 = vunpack.c.l.b16 %v4056
    %v4310 = vunpack.c.l.b16 %v4057
    %v4311 = vunpack.c.h.b16 %v4057
    %v4312 = vunpack.c.l.b16 %v4058
    %v4313 = vunpack.c.l.b16 %v4059
    %v4314 = vunpack.c.h.b16 %v4059
    %v4315 = vunpack.c.l.b16 %v4060
    %v4316 = vunpack.c.l.b16 %v4061
    %v4317 = vunpack.c.h.b16 %v4061
    %v4318 = vunpack.c.l.b16 %v4062
    %v4319 = vunpack.c.l.b16 %v4063
    %v4320 = vunpack.c.h.b16 %v4063
    %v4321 = vunpack.c.l.b16 %v4064
    %v4322 = vpack.c.b16 %v4181, %v4178
    %v4323 = vpack.c.b16 %v4182, %v4179
    %v4324 = vpack.c.b16 %v4183, %v4180
    %v4325 = vpack.c.b16 %v4187, %v4184
    %v4326 = vpack.c.b16 %v4188, %v4185
    %v4327 = vpack.c.b16 %v4189, %v4186
    %v4328 = vpack.c.b16 %v4193, %v4190
    %v4329 = vpack.c.b16 %v4194, %v4191
    %v4330 = vpack.c.b16 %v4195, %v4192
    %v4331 = vpack.c.b16 %v4199, %v4196
    %v4332 = vpack.c.b16 %v4200, %v4197
    %v4333 = vpack.c.b16 %v4201, %v4198
    %v4334 = vpack.c.b16 %v4205, %v4202
    %v4335 = vpack.c.b16 %v4206, %v4203
    %v4336 = vpack.c.b16 %v4207, %v4204
    %v4337 = vpack.c.b16 %v4211, %v4208
    %v4338 = vpack.c.b16 %v4212, %v4209
    %v4339 = vpack.c.b16 %v4213, %v4210
    %v4340 = vpack.c.b16 %v4217, %v4214
    %v4341 = vpack.c.b16 %v4218, %v4215
    %v4342 = vpack.c.b16 %v4219, %v4216
    %v4343 = vpack.c.b16 %v4223, %v4220
    %v4344 = vpack.c.b16 %v4224, %v4221
    %v4345 = vpack.c.b16 %v4225, %v4222
    %v4346 = vpack.c.b16 %v4229, %v4226
    %v4347 = vpack.c.b16 %v4230, %v4227
    %v4348 = vpack.c.b16 %v4231, %v4228
    %v4349 = vpack.c.b16 %v4235, %v4232
    %v4350 = vpack.c.b16 %v4236, %v4233
    %v4351 = vpack.c.b16 %v4237, %v4234
    %v4352 = vpack.c.b16 %v4241, %v4238
    %v4353 = vpack.c.b16 %v4242, %v4239
    %v4354 = vpack.c.b16 %v4243, %v4240
    %v4355 = vpack.c.b16 %v4247, %v4244
    %v4356 = vpack.c.b16 %v4248, %v4245
    %v4357 = vpack.c.b16 %v4249, %v4246
    %v4358 = vpack.c.b16 %v4253, %v4250
    %v4359 = vpack.c.b16 %v4254, %v4251
    %v4360 = vpack.c.b16 %v4255, %v4252
    %v4361 = vpack.c.b16 %v4259, %v4256
    %v4362 = vpack.c.b16 %v4260, %v4257
    %v4363 = vpack.c.b16 %v4261, %v4258
    %v4364 = vpack.c.b16 %v4265, %v4262
    %v4365 = vpack.c.b16 %v4266, %v4263
    %v4366 = vpack.c.b16 %v4267, %v4264
    %v4367 = vpack.c.b16 %v4271, %v4268
    %v4368 = vpack.c.b16 %v4272, %v4269
    %v4369 = vpack.c.b16 %v4273, %v4270
    %v4370 = vpack.c.b16 %v4277, %v4274
    %v4371 = vpack.c.b16 %v4278, %v4275
    %v4372 = vpack.c.b16 %v4279, %v4276
    %v4373 = vpack.c.b16 %v4283, %v4280
    %v4374 = vpack.c.b16 %v4284, %v4281
    %v4375 = vpack.c.b16 %v4285, %v4282
    %v4376 = vpack.c.b16 %v4289, %v4286
    %v4377 = vpack.c.b16 %v4290, %v4287
    %v4378 = vpack.c.b16 %v4291, %v4288
    %v4379 = vpack.c.b16 %v4295, %v4292
    %v4380 = vpack.c.b16 %v4296, %v4293
    %v4381 = vpack.c.b16 %v4297, %v4294
    %v4382 = vpack.c.b16 %v4301, %v4298
    %v4383 = vpack.c.b16 %v4302, %v4299
    %v4384 = vpack.c.b16 %v4303, %v4300
    %v4385 = vpack.c.b16 %v4307, %v4304
    %v4386 = vpack.c.b16 %v4308, %v4305
    %v4387 = vpack.c.b16 %v4309, %v4306
    %v4388 = vpack.c.b16 %v4313, %v4310
    %v4389 = vpack.c.b16 %v4314, %v4311
    %v4390 = vpack.c.b16 %v4315, %v4312
    %v4391 = vpack.c.b16 %v4319, %v4316
    %v4392 = vpack.c.b16 %v4320, %v4317
    %v4393 = vpack.c.b16 %v4321, %v4318
    %4466 = vmatprep.subr.bf16.mxu0 %v4344
    %4467 = vmatpush1.bf16.msra.mxu0 %v4343
    %4468 = vmatprep.subr.bf16.mxu0 %v4341
    %4469 = vmatpush1.bf16.msra.mxu0 %v4340
    %4470 = vmatprep.subr.bf16.mxu0 %v4338
    %4471 = vmatpush1.bf16.msra.mxu0 %v4337
    %4472 = vmatprep.subr.bf16.mxu0 %v4335
    %4473 = vmatpush1.bf16.msra.mxu0 %v4334
    %4474 = vmatprep.subr.bf16.mxu0 %v4332
    %4475 = vmatpush1.bf16.msra.mxu0 %v4331
    %4476 = vmatprep.subr.bf16.mxu0 %v4329
    %4477 = vmatpush1.bf16.msra.mxu0 %v4328
    %4478 = vmatprep.subr.bf16.mxu0 %v4326
    %4479 = vmatpush1.bf16.msra.mxu0 %v4325
    %4480 = vmatprep.subr.bf16.mxu0 %v4323
    %4481 = vmatpush1.bf16.msra.mxu0 %v4322
    %4482 = vmatprep.subr.bf16.mxu0 %v4368
    %4483 = vmatpush2.bf16.msra.mxu0 %v4367
    %4484 = vmatprep.subr.bf16.mxu0 %v4365
    %4485 = vmatpush2.bf16.msra.mxu0 %v4364
    %4486 = vmatprep.subr.bf16.mxu0 %v4362
    %4487 = vmatpush2.bf16.msra.mxu0 %v4361
    %4488 = vmatprep.subr.bf16.mxu0 %v4359
    %4489 = vmatpush2.bf16.msra.mxu0 %v4358
    %4490 = vmatprep.subr.bf16.mxu0 %v4356
    %4491 = vmatpush2.bf16.msra.mxu0 %v4355
    %4492 = vmatprep.subr.bf16.mxu0 %v4353
    %4493 = vmatpush2.bf16.msra.mxu0 %v4352
    %4494 = vmatprep.subr.bf16.mxu0 %v4350
    %4495 = vmatpush2.bf16.msra.mxu0 %v4349
    %4496 = vmatprep.subr.bf16.mxu0 %v4347
    %4497 = vmatpush2.bf16.msra.mxu0 %v4346
    %4498 = vmatprep.mubr.bf16.mxu0 %v3967
    %4499 = vmatmul.mubr.bf16.gmra.mxu0 %v3966
    %v4500 = vpop.f32.mrf.mxu0
    %v4501 = vadd.f32 %v4070, %v4500
    %v4502 = vpop.f32.mrf.mxu0
    %v4503 = vadd.f32 %v4074, %v4502
    %v4504 = vpop.f32.mrf.mxu0
    %v4505 = vpop.f32.mrf.mxu0
    %4506 = vdwg.mxu0
    %4507 = vmatprep.subr.bf16.mxu0 %v4392
    %4508 = vmatpush1.bf16.msra.mxu0 %v4391
    %4509 = vmatprep.subr.bf16.mxu0 %v4389
    %4510 = vmatpush1.bf16.msra.mxu0 %v4388
    %4511 = vmatprep.subr.bf16.mxu0 %v4386
    %4512 = vmatpush1.bf16.msra.mxu0 %v4385
    %4513 = vmatprep.subr.bf16.mxu0 %v4383
    %4514 = vmatpush1.bf16.msra.mxu0 %v4382
    %4515 = vmatprep.subr.bf16.mxu0 %v4380
    %4516 = vmatpush1.bf16.msra.mxu0 %v4379
    %4517 = vmatprep.subr.bf16.mxu0 %v4377
    %4518 = vmatpush1.bf16.msra.mxu0 %v4376
    %4519 = vmatprep.subr.bf16.mxu0 %v4374
    %4520 = vmatpush1.bf16.msra.mxu0 %v4373
    %4521 = vmatprep.subr.bf16.mxu0 %v4371
    %4522 = vmatpush1.bf16.msra.mxu0 %v4370
    %4523 = vmatprep.subr.bf16.mxu0 0
    %4524 = vmatpush2.bf16.msra.mxu0 0
    %4525 = vmatprep.subr.bf16.mxu0 0
    %4526 = vmatpush2.bf16.msra.mxu0 0
    %4527 = vmatprep.subr.bf16.mxu0 0
    %4528 = vmatpush2.bf16.msra.mxu0 0
    %4529 = vmatprep.subr.bf16.mxu0 0
    %4530 = vmatpush2.bf16.msra.mxu0 0
    %4531 = vmatprep.subr.bf16.mxu0 0
    %4532 = vmatpush2.bf16.msra.mxu0 0
    %4533 = vmatprep.subr.bf16.mxu0 0
    %4534 = vmatpush2.bf16.msra.mxu0 0
    %4535 = vmatprep.subr.bf16.mxu0 0
    %4536 = vmatpush2.bf16.msra.mxu0 0
    %4537 = vmatprep.subr.bf16.mxu0 0
    %4538 = vmatpush2.bf16.msra.mxu0 0
    %4539 = vmatprep.mubr.bf16.mxu0 0
    %4540 = vmatmul.mubr.bf16.gmra.mxu0 %v3968
    %v4541 = vpop.f32.mrf.mxu0
    %v4542 = vadd.f32 %v4501, %v4541
    %v4543 = vpop.f32.mrf.mxu0
    %v4544 = vadd.f32 %v4503, %v4543
    %v4545 = vpop.f32.mrf.mxu0
    %v4546 = vpop.f32.mrf.mxu0
    %4547 = vdwg.mxu0
    %4548 = vmatprep.subr.bf16.mxu0 0
    %4549 = vmatpush1.bf16.msra.mxu0 %v4345
    %4550 = vmatprep.subr.bf16.mxu0 0
    %4551 = vmatpush1.bf16.msra.mxu0 %v4342
    %4552 = vmatprep.subr.bf16.mxu0 0
    %4553 = vmatpush1.bf16.msra.mxu0 %v4339
    %4554 = vmatprep.subr.bf16.mxu0 0
    %4555 = vmatpush1.bf16.msra.mxu0 %v4336
    %4556 = vmatprep.subr.bf16.mxu0 0
    %4557 = vmatpush1.bf16.msra.mxu0 %v4333
    %4558 = vmatprep.subr.bf16.mxu0 0
    %4559 = vmatpush1.bf16.msra.mxu0 %v4330
    %4560 = vmatprep.subr.bf16.mxu0 0
    %4561 = vmatpush1.bf16.msra.mxu0 %v4327
    %4562 = vmatprep.subr.bf16.mxu0 0
    %4563 = vmatpush1.bf16.msra.mxu0 %v4324
    %4564 = vmatprep.subr.bf16.mxu0 0
    %4565 = vmatpush2.bf16.msra.mxu0 %v4369
    %4566 = vmatprep.subr.bf16.mxu0 0
    %4567 = vmatpush2.bf16.msra.mxu0 %v4366
    %4568 = vmatprep.subr.bf16.mxu0 0
    %4569 = vmatpush2.bf16.msra.mxu0 %v4363
    %4570 = vmatprep.subr.bf16.mxu0 0
    %4571 = vmatpush2.bf16.msra.mxu0 %v4360
    %4572 = vmatprep.subr.bf16.mxu0 0
    %4573 = vmatpush2.bf16.msra.mxu0 %v4357
    %4574 = vmatprep.subr.bf16.mxu0 0
    %4575 = vmatpush2.bf16.msra.mxu0 %v4354
    %4576 = vmatprep.subr.bf16.mxu0 0
    %4577 = vmatpush2.bf16.msra.mxu0 %v4351
    %4578 = vmatprep.subr.bf16.mxu0 0
    %4579 = vmatpush2.bf16.msra.mxu0 %v4348
    %4580 = vmatprep.mubr.bf16.mxu0 %v3967
    %4581 = vmatmul.mubr.bf16.gmra.mxu0 %v3966
    %v4582 = vpop.f32.mrf.mxu0
    %v4583 = vadd.f32 %v4078, %v4582
    %v4584 = vpop.f32.mrf.mxu0
    %v4585 = vpop.f32.mrf.mxu0
    %v4586 = vpop.f32.mrf.mxu0
    %4587 = vdwg.mxu0
    %4588 = vmatprep.subr.bf16.mxu0 0
    %4589 = vmatpush1.bf16.msra.mxu0 %v4393
    %4590 = vmatprep.subr.bf16.mxu0 0
    %4591 = vmatpush1.bf16.msra.mxu0 %v4390
    %4592 = vmatprep.subr.bf16.mxu0 0
    %4593 = vmatpush1.bf16.msra.mxu0 %v4387
    %4594 = vmatprep.subr.bf16.mxu0 0
    %4595 = vmatpush1.bf16.msra.mxu0 %v4384
    %4596 = vmatprep.subr.bf16.mxu0 0
    %4597 = vmatpush1.bf16.msra.mxu0 %v4381
    %4598 = vmatprep.subr.bf16.mxu0 0
    %4599 = vmatpush1.bf16.msra.mxu0 %v4378
    %4600 = vmatprep.subr.bf16.mxu0 0
    %4601 = vmatpush1.bf16.msra.mxu0 %v4375
    %4602 = vmatprep.subr.bf16.mxu0 0
    %4603 = vmatpush1.bf16.msra.mxu0 %v4372
    %4604 = vmatprep.subr.bf16.mxu0 0
    %4605 = vmatpush2.bf16.msra.mxu0 0
    %4606 = vmatprep.subr.bf16.mxu0 0
    %4607 = vmatpush2.bf16.msra.mxu0 0
    %4608 = vmatprep.subr.bf16.mxu0 0
    %4609 = vmatpush2.bf16.msra.mxu0 0
    %4610 = vmatprep.subr.bf16.mxu0 0
    %4611 = vmatpush2.bf16.msra.mxu0 0
    %4612 = vmatprep.subr.bf16.mxu0 0
    %4613 = vmatpush2.bf16.msra.mxu0 0
    %4614 = vmatprep.subr.bf16.mxu0 0
    %4615 = vmatpush2.bf16.msra.mxu0 0
    %4616 = vmatprep.subr.bf16.mxu0 0
    %4617 = vmatpush2.bf16.msra.mxu0 0
    %4618 = vmatprep.subr.bf16.mxu0 0
    %4619 = vmatpush2.bf16.msra.mxu0 0
    %4620 = vmatprep.mubr.bf16.mxu0 0
    %4621 = vmatmul.mubr.bf16.gmra.mxu0 %v3968
    %v4622 = vpop.f32.mrf.mxu0
    %v4623 = vadd.f32 %v4583, %v4622
    %v4624 = vpop.f32.mrf.mxu0
    %v4625 = vpop.f32.mrf.mxu0
    %v4626 = vpop.f32.mrf.mxu0
    %4627 = vdwg.mxu0
    %v4628 = vtanh.pop %v4542
    %v4629 = vtanh.pop %v4544
    %v4630 = vtanh.pop %v4623
    %v4631 = vpack.c.bf16 %v4628, %v4628
    %v4632 = vpack.c.bf16 %v4629, %v4629
    %v4633 = vpack.c.bf16 %v4630, %v4630
    %v4634 = vld [vmem:[#allocation13] sm:$0xff]
    %v4635 = vld [vmem:[#allocation13 + $0x8] sm:$0xff]
    %v4636 = vld [vmem:[#allocation13 + $0x10] sm:$0xff]
    %v4637 = vld [vmem:[#allocation13 + $0x18] sm:$0xff]
    %v4638 = vld [vmem:[#allocation13 + $0x20] sm:$0xff]
    %v4639 = vld [vmem:[#allocation13 + $0x28] sm:$0xff]
    %v4640 = vld [vmem:[#allocation13 + $0x30] sm:$0xff]
    %v4641 = vld [vmem:[#allocation13 + $0x38] sm:$0xff]
    %v4642 = vld [vmem:[#allocation13 + $0x40] sm:$0xff]
    %v4643 = vld [vmem:[#allocation13 + $0x48] sm:$0xff]
    %v4644 = vld [vmem:[#allocation13 + $0x50] sm:$0xff]
    %v4645 = vld [vmem:[#allocation13 + $0x58] sm:$0xff]
    %v4646 = vld [vmem:[#allocation13 + $0x60] sm:$0xff]
    %v4647 = vld [vmem:[#allocation13 + $0x68] sm:$0xff]
    %v4648 = vld [vmem:[#allocation13 + $0x70] sm:$0xff]
    %v4649 = vld [vmem:[#allocation13 + $0x78] sm:$0xff]
    %v4650 = vld [vmem:[#allocation13 + $0x80] sm:$0xff]
    %v4651 = vld [vmem:[#allocation13 + $0x88] sm:$0xff]
    %v4652 = vld [vmem:[#allocation13 + $0x90] sm:$0xff]
    %v4653 = vld [vmem:[#allocation13 + $0x98] sm:$0xff]
    %v4654 = vld [vmem:[#allocation13 + $0xa0] sm:$0xff]
    %v4655 = vld [vmem:[#allocation13 + $0xa8] sm:$0xff]
    %v4656 = vld [vmem:[#allocation13 + $0xb0] sm:$0xff]
    %v4657 = vld [vmem:[#allocation13 + $0xb8] sm:$0xff]
    %v4658 = vld [vmem:[#allocation13 + $0xc0] sm:$0xff]
    %v4659 = vld [vmem:[#allocation13 + $0xc8] sm:$0xff]
    %v4660 = vld [vmem:[#allocation13 + $0xd0] sm:$0xff]
    %v4661 = vld [vmem:[#allocation13 + $0xd8] sm:$0xff]
    %v4662 = vld [vmem:[#allocation13 + $0xe0] sm:$0xff]
    %v4663 = vld [vmem:[#allocation13 + $0xe8] sm:$0xff]
    %v4664 = vld [vmem:[#allocation13 + $0xf0] sm:$0xff]
    %v4665 = vld [vmem:[#allocation13 + $0xf8] sm:$0xff]
    %v4666 = vld [vmem:[#allocation13 + $0x100] sm:$0xff]
    %v4667 = vld [vmem:[#allocation13 + $0x108] sm:$0xff]
    %v4668 = vld [vmem:[#allocation13 + $0x110] sm:$0xff]
    %v4669 = vld [vmem:[#allocation13 + $0x118] sm:$0xff]
    %v4670 = vld [vmem:[#allocation13 + $0x120] sm:$0xff]
    %v4671 = vld [vmem:[#allocation13 + $0x128] sm:$0xff]
    %v4672 = vld [vmem:[#allocation13 + $0x130] sm:$0xff]
    %v4673 = vld [vmem:[#allocation13 + $0x138] sm:$0xff]
    %v4674 = vld [vmem:[#allocation13 + $0x140] sm:$0xff]
    %v4675 = vld [vmem:[#allocation13 + $0x148] sm:$0xff]
    %v4676 = vld [vmem:[#allocation13 + $0x150] sm:$0xff]
    %v4677 = vld [vmem:[#allocation13 + $0x158] sm:$0xff]
    %v4678 = vld [vmem:[#allocation13 + $0x160] sm:$0xff]
    %v4679 = vld [vmem:[#allocation13 + $0x168] sm:$0xff]
    %v4680 = vld [vmem:[#allocation13 + $0x170] sm:$0xff]
    %v4681 = vld [vmem:[#allocation13 + $0x178] sm:$0xff]
    %v4682 = vpack.c.bf16 %v3959, %v3959
    %v4683 = vpack.c.bf16 %v3960, %v3960
    %v4684 = vpack.c.bf16 %v3961, %v3961
    %v4685 = vpack.c.bf16 %v3962, %v3962
    %v4686 = vld [vmem:[#allocation14] sm:$0xff]
    %v4687 = vld [vmem:[#allocation14 + $0x8] sm:$0xff]
    %v4688 = vld [vmem:[#allocation14 + $0x10] sm:$0xff]
    %v4689 = vld [vmem:[#allocation14 + $0x18] sm:$0xff]
    %v4690 = vld [vmem:[#allocation14 + $0x20] sm:$0xff]
    %v4691 = vld [vmem:[#allocation14 + $0x28] sm:$0xff]
    %v4692 = vld [vmem:[#allocation14 + $0x30] sm:$0xff]
    %v4693 = vld [vmem:[#allocation14 + $0x38] sm:$0xff]
    %v4694 = vld [vmem:[#allocation14 + $0x40] sm:$0xff]
    %v4695 = vld [vmem:[#allocation14 + $0x48] sm:$0xff]
    %v4696 = vld [vmem:[#allocation14 + $0x50] sm:$0xff]
    %v4697 = vld [vmem:[#allocation14 + $0x58] sm:$0xff]
    %v4698 = vld [vmem:[#allocation14 + $0x60] sm:$0xff]
    %v4699 = vld [vmem:[#allocation14 + $0x68] sm:$0xff]
    %v4700 = vld [vmem:[#allocation14 + $0x70] sm:$0xff]
    %v4701 = vld [vmem:[#allocation14 + $0x78] sm:$0xff]
    %v4702 = vld [vmem:[#allocation14 + $0x80] sm:$0xff]
    %v4703 = vld [vmem:[#allocation14 + $0x88] sm:$0xff]
    %v4704 = vld [vmem:[#allocation14 + $0x90] sm:$0xff]
    %v4705 = vld [vmem:[#allocation14 + $0x98] sm:$0xff]
    %v4706 = vld [vmem:[#allocation14 + $0xa0] sm:$0xff]
    %v4707 = vld [vmem:[#allocation14 + $0xa8] sm:$0xff]
    %v4708 = vld [vmem:[#allocation14 + $0xb0] sm:$0xff]
    %v4709 = vld [vmem:[#allocation14 + $0xb8] sm:$0xff]
    %v4710 = vld [vmem:[#allocation14 + $0xc0] sm:$0xff]
    %v4711 = vld [vmem:[#allocation14 + $0xc8] sm:$0xff]
    %v4712 = vld [vmem:[#allocation14 + $0xd0] sm:$0xff]
    %v4713 = vld [vmem:[#allocation14 + $0xd8] sm:$0xff]
    %v4714 = vld [vmem:[#allocation14 + $0xe0] sm:$0xff]
    %v4715 = vld [vmem:[#allocation14 + $0xe8] sm:$0xff]
    %v4716 = vld [vmem:[#allocation14 + $0xf0] sm:$0xff]
    %v4717 = vld [vmem:[#allocation14 + $0xf8] sm:$0xff]
    %v4718 = vld [vmem:[#allocation14 + $0x100] sm:$0xff]
    %v4719 = vld [vmem:[#allocation14 + $0x108] sm:$0xff]
    %v4720 = vld [vmem:[#allocation14 + $0x110] sm:$0xff]
    %v4721 = vld [vmem:[#allocation14 + $0x118] sm:$0xff]
    %v4722 = vld [vmem:[#allocation14 + $0x120] sm:$0xff]
    %v4723 = vld [vmem:[#allocation14 + $0x128] sm:$0xff]
    %v4724 = vld [vmem:[#allocation14 + $0x130] sm:$0xff]
    %v4725 = vld [vmem:[#allocation14 + $0x138] sm:$0xff]
    %v4726 = vld [vmem:[#allocation14 + $0x140] sm:$0xff]
    %v4727 = vld [vmem:[#allocation14 + $0x148] sm:$0xff]
    %v4728 = vld [vmem:[#allocation14 + $0x150] sm:$0xff]
    %v4729 = vld [vmem:[#allocation14 + $0x158] sm:$0xff]
    %v4730 = vld [vmem:[#allocation14 + $0x160] sm:$0xff]
    %v4731 = vld [vmem:[#allocation14 + $0x168] sm:$0xff]
    %v4732 = vld [vmem:[#allocation14 + $0x170] sm:$0xff]
    %v4733 = vld [vmem:[#allocation14 + $0x178] sm:$0xff]
    %v4734 = vld [vmem:[#allocation14 + $0x180] sm:$0xff]
    %v4735 = vld [vmem:[#allocation14 + $0x188] sm:$0xff]
    %v4736 = vld [vmem:[#allocation14 + $0x190] sm:$0xff]
    %v4737 = vld [vmem:[#allocation14 + $0x198] sm:$0xff]
    %v4738 = vld [vmem:[#allocation14 + $0x1a0] sm:$0xff]
    %v4739 = vld [vmem:[#allocation14 + $0x1a8] sm:$0xff]
    %v4740 = vld [vmem:[#allocation14 + $0x1b0] sm:$0xff]
    %v4741 = vld [vmem:[#allocation14 + $0x1b8] sm:$0xff]
    %v4742 = vld [vmem:[#allocation14 + $0x1c0] sm:$0xff]
    %v4743 = vld [vmem:[#allocation14 + $0x1c8] sm:$0xff]
    %v4744 = vld [vmem:[#allocation14 + $0x1d0] sm:$0xff]
    %v4745 = vld [vmem:[#allocation14 + $0x1d8] sm:$0xff]
    %v4746 = vld [vmem:[#allocation14 + $0x1e0] sm:$0xff]
    %v4747 = vld [vmem:[#allocation14 + $0x1e8] sm:$0xff]
    %v4748 = vld [vmem:[#allocation14 + $0x1f0] sm:$0xff]
    %v4749 = vld [vmem:[#allocation14 + $0x1f8] sm:$0xff]
    %v4814 = vunpack.c.l.b16 %v4686
    %v4815 = vunpack.c.h.b16 %v4686
    %v4816 = vunpack.c.l.b16 %v4687
    %v4817 = vunpack.c.h.b16 %v4687
    %v4818 = vunpack.c.l.b16 %v4688
    %v4819 = vunpack.c.h.b16 %v4688
    %v4820 = vunpack.c.l.b16 %v4689
    %v4821 = vunpack.c.h.b16 %v4689
    %v4822 = vunpack.c.l.b16 %v4690
    %v4823 = vunpack.c.h.b16 %v4690
    %v4824 = vunpack.c.l.b16 %v4691
    %v4825 = vunpack.c.h.b16 %v4691
    %v4826 = vunpack.c.l.b16 %v4692
    %v4827 = vunpack.c.h.b16 %v4692
    %v4828 = vunpack.c.l.b16 %v4693
    %v4829 = vunpack.c.h.b16 %v4693
    %v4830 = vunpack.c.l.b16 %v4694
    %v4831 = vunpack.c.h.b16 %v4694
    %v4832 = vunpack.c.l.b16 %v4695
    %v4833 = vunpack.c.h.b16 %v4695
    %v4834 = vunpack.c.l.b16 %v4696
    %v4835 = vunpack.c.h.b16 %v4696
    %v4836 = vunpack.c.l.b16 %v4697
    %v4837 = vunpack.c.h.b16 %v4697
    %v4838 = vunpack.c.l.b16 %v4698
    %v4839 = vunpack.c.h.b16 %v4698
    %v4840 = vunpack.c.l.b16 %v4699
    %v4841 = vunpack.c.h.b16 %v4699
    %v4842 = vunpack.c.l.b16 %v4700
    %v4843 = vunpack.c.h.b16 %v4700
    %v4844 = vunpack.c.l.b16 %v4701
    %v4845 = vunpack.c.h.b16 %v4701
    %v4846 = vunpack.c.l.b16 %v4702
    %v4847 = vunpack.c.h.b16 %v4702
    %v4848 = vunpack.c.l.b16 %v4703
    %v4849 = vunpack.c.h.b16 %v4703
    %v4850 = vunpack.c.l.b16 %v4704
    %v4851 = vunpack.c.h.b16 %v4704
    %v4852 = vunpack.c.l.b16 %v4705
    %v4853 = vunpack.c.h.b16 %v4705
    %v4854 = vunpack.c.l.b16 %v4706
    %v4855 = vunpack.c.h.b16 %v4706
    %v4856 = vunpack.c.l.b16 %v4707
    %v4857 = vunpack.c.h.b16 %v4707
    %v4858 = vunpack.c.l.b16 %v4708
    %v4859 = vunpack.c.h.b16 %v4708
    %v4860 = vunpack.c.l.b16 %v4709
    %v4861 = vunpack.c.h.b16 %v4709
    %v4862 = vunpack.c.l.b16 %v4710
    %v4863 = vunpack.c.h.b16 %v4710
    %v4864 = vunpack.c.l.b16 %v4711
    %v4865 = vunpack.c.h.b16 %v4711
    %v4866 = vunpack.c.l.b16 %v4712
    %v4867 = vunpack.c.h.b16 %v4712
    %v4868 = vunpack.c.l.b16 %v4713
    %v4869 = vunpack.c.h.b16 %v4713
    %v4870 = vunpack.c.l.b16 %v4714
    %v4871 = vunpack.c.h.b16 %v4714
    %v4872 = vunpack.c.l.b16 %v4715
    %v4873 = vunpack.c.h.b16 %v4715
    %v4874 = vunpack.c.l.b16 %v4716
    %v4875 = vunpack.c.h.b16 %v4716
    %v4876 = vunpack.c.l.b16 %v4717
    %v4877 = vunpack.c.h.b16 %v4717
    %v4878 = vunpack.c.l.b16 %v4718
    %v4879 = vunpack.c.h.b16 %v4718
    %v4880 = vunpack.c.l.b16 %v4719
    %v4881 = vunpack.c.h.b16 %v4719
    %v4882 = vunpack.c.l.b16 %v4720
    %v4883 = vunpack.c.h.b16 %v4720
    %v4884 = vunpack.c.l.b16 %v4721
    %v4885 = vunpack.c.h.b16 %v4721
    %v4886 = vunpack.c.l.b16 %v4722
    %v4887 = vunpack.c.h.b16 %v4722
    %v4888 = vunpack.c.l.b16 %v4723
    %v4889 = vunpack.c.h.b16 %v4723
    %v4890 = vunpack.c.l.b16 %v4724
    %v4891 = vunpack.c.h.b16 %v4724
    %v4892 = vunpack.c.l.b16 %v4725
    %v4893 = vunpack.c.h.b16 %v4725
    %v4894 = vunpack.c.l.b16 %v4726
    %v4895 = vunpack.c.h.b16 %v4726
    %v4896 = vunpack.c.l.b16 %v4727
    %v4897 = vunpack.c.h.b16 %v4727
    %v4898 = vunpack.c.l.b16 %v4728
    %v4899 = vunpack.c.h.b16 %v4728
    %v4900 = vunpack.c.l.b16 %v4729
    %v4901 = vunpack.c.h.b16 %v4729
    %v4902 = vunpack.c.l.b16 %v4730
    %v4903 = vunpack.c.h.b16 %v4730
    %v4904 = vunpack.c.l.b16 %v4731
    %v4905 = vunpack.c.h.b16 %v4731
    %v4906 = vunpack.c.l.b16 %v4732
    %v4907 = vunpack.c.h.b16 %v4732
    %v4908 = vunpack.c.l.b16 %v4733
    %v4909 = vunpack.c.h.b16 %v4733
    %v4910 = vunpack.c.l.b16 %v4734
    %v4911 = vunpack.c.h.b16 %v4734
    %v4912 = vunpack.c.l.b16 %v4735
    %v4913 = vunpack.c.h.b16 %v4735
    %v4914 = vunpack.c.l.b16 %v4736
    %v4915 = vunpack.c.h.b16 %v4736
    %v4916 = vunpack.c.l.b16 %v4737
    %v4917 = vunpack.c.h.b16 %v4737
    %v4918 = vunpack.c.l.b16 %v4738
    %v4919 = vunpack.c.h.b16 %v4738
    %v4920 = vunpack.c.l.b16 %v4739
    %v4921 = vunpack.c.h.b16 %v4739
    %v4922 = vunpack.c.l.b16 %v4740
    %v4923 = vunpack.c.h.b16 %v4740
    %v4924 = vunpack.c.l.b16 %v4741
    %v4925 = vunpack.c.h.b16 %v4741
    %v4926 = vunpack.c.l.b16 %v4742
    %v4927 = vunpack.c.h.b16 %v4742
    %v4928 = vunpack.c.l.b16 %v4743
    %v4929 = vunpack.c.h.b16 %v4743
    %v4930 = vunpack.c.l.b16 %v4744
    %v4931 = vunpack.c.h.b16 %v4744
    %v4932 = vunpack.c.l.b16 %v4745
    %v4933 = vunpack.c.h.b16 %v4745
    %v4934 = vunpack.c.l.b16 %v4746
    %v4935 = vunpack.c.h.b16 %v4746
    %v4936 = vunpack.c.l.b16 %v4747
    %v4937 = vunpack.c.h.b16 %v4747
    %v4938 = vunpack.c.l.b16 %v4748
    %v4939 = vunpack.c.h.b16 %v4748
    %v4940 = vunpack.c.l.b16 %v4749
    %v4941 = vunpack.c.h.b16 %v4749
    %v4942 = vpack.c.b16 %v4816, %v4814
    %v4943 = vpack.c.b16 %v4817, %v4815
    %v4944 = vpack.c.b16 %v4820, %v4818
    %v4945 = vpack.c.b16 %v4821, %v4819
    %v4946 = vpack.c.b16 %v4824, %v4822
    %v4947 = vpack.c.b16 %v4825, %v4823
    %v4948 = vpack.c.b16 %v4828, %v4826
    %v4949 = vpack.c.b16 %v4829, %v4827
    %v4950 = vpack.c.b16 %v4832, %v4830
    %v4951 = vpack.c.b16 %v4833, %v4831
    %v4952 = vpack.c.b16 %v4836, %v4834
    %v4953 = vpack.c.b16 %v4837, %v4835
    %v4954 = vpack.c.b16 %v4840, %v4838
    %v4955 = vpack.c.b16 %v4841, %v4839
    %v4956 = vpack.c.b16 %v4844, %v4842
    %v4957 = vpack.c.b16 %v4845, %v4843
    %v4958 = vpack.c.b16 %v4848, %v4846
    %v4959 = vpack.c.b16 %v4849, %v4847
    %v4960 = vpack.c.b16 %v4852, %v4850
    %v4961 = vpack.c.b16 %v4853, %v4851
    %v4962 = vpack.c.b16 %v4856, %v4854
    %v4963 = vpack.c.b16 %v4857, %v4855
    %v4964 = vpack.c.b16 %v4860, %v4858
    %v4965 = vpack.c.b16 %v4861, %v4859
    %v4966 = vpack.c.b16 %v4864, %v4862
    %v4967 = vpack.c.b16 %v4865, %v4863
    %v4968 = vpack.c.b16 %v4868, %v4866
    %v4969 = vpack.c.b16 %v4869, %v4867
    %v4970 = vpack.c.b16 %v4872, %v4870
    %v4971 = vpack.c.b16 %v4873, %v4871
    %v4972 = vpack.c.b16 %v4876, %v4874
    %v4973 = vpack.c.b16 %v4877, %v4875
    %v4974 = vpack.c.b16 %v4880, %v4878
    %v4975 = vpack.c.b16 %v4881, %v4879
    %v4976 = vpack.c.b16 %v4884, %v4882
    %v4977 = vpack.c.b16 %v4885, %v4883
    %v4978 = vpack.c.b16 %v4888, %v4886
    %v4979 = vpack.c.b16 %v4889, %v4887
    %v4980 = vpack.c.b16 %v4892, %v4890
    %v4981 = vpack.c.b16 %v4893, %v4891
    %v4982 = vpack.c.b16 %v4896, %v4894
    %v4983 = vpack.c.b16 %v4897, %v4895
    %v4984 = vpack.c.b16 %v4900, %v4898
    %v4985 = vpack.c.b16 %v4901, %v4899
    %v4986 = vpack.c.b16 %v4904, %v4902
    %v4987 = vpack.c.b16 %v4905, %v4903
    %v4988 = vpack.c.b16 %v4908, %v4906
    %v4989 = vpack.c.b16 %v4909, %v4907
    %v4990 = vpack.c.b16 %v4912, %v4910
    %v4991 = vpack.c.b16 %v4913, %v4911
    %v4992 = vpack.c.b16 %v4916, %v4914
    %v4993 = vpack.c.b16 %v4917, %v4915
    %v4994 = vpack.c.b16 %v4920, %v4918
    %v4995 = vpack.c.b16 %v4921, %v4919
    %v4996 = vpack.c.b16 %v4924, %v4922
    %v4997 = vpack.c.b16 %v4925, %v4923
    %v4998 = vpack.c.b16 %v4928, %v4926
    %v4999 = vpack.c.b16 %v4929, %v4927
    %v5000 = vpack.c.b16 %v4932, %v4930
    %v5001 = vpack.c.b16 %v4933, %v4931
    %v5002 = vpack.c.b16 %v4936, %v4934
    %v5003 = vpack.c.b16 %v4937, %v4935
    %v5004 = vpack.c.b16 %v4940, %v4938
    %v5005 = vpack.c.b16 %v4941, %v4939
    %5070 = vmatprep.subr.bf16.mxu0 %v4957
    %5071 = vmatpush1.bf16.msra.mxu0 %v4956
    %5072 = vmatprep.subr.bf16.mxu0 %v4955
    %5073 = vmatpush1.bf16.msra.mxu0 %v4954
    %5074 = vmatprep.subr.bf16.mxu0 %v4953
    %5075 = vmatpush1.bf16.msra.mxu0 %v4952
    %5076 = vmatprep.subr.bf16.mxu0 %v4951
    %5077 = vmatpush1.bf16.msra.mxu0 %v4950
    %5078 = vmatprep.subr.bf16.mxu0 %v4949
    %5079 = vmatpush1.bf16.msra.mxu0 %v4948
    %5080 = vmatprep.subr.bf16.mxu0 %v4947
    %5081 = vmatpush1.bf16.msra.mxu0 %v4946
    %5082 = vmatprep.subr.bf16.mxu0 %v4945
    %5083 = vmatpush1.bf16.msra.mxu0 %v4944
    %5084 = vmatprep.subr.bf16.mxu0 %v4943
    %5085 = vmatpush1.bf16.msra.mxu0 %v4942
    %5086 = vmatprep.subr.bf16.mxu0 %v4973
    %5087 = vmatpush2.bf16.msra.mxu0 %v4972
    %5088 = vmatprep.subr.bf16.mxu0 %v4971
    %5089 = vmatpush2.bf16.msra.mxu0 %v4970
    %5090 = vmatprep.subr.bf16.mxu0 %v4969
    %5091 = vmatpush2.bf16.msra.mxu0 %v4968
    %5092 = vmatprep.subr.bf16.mxu0 %v4967
    %5093 = vmatpush2.bf16.msra.mxu0 %v4966
    %5094 = vmatprep.subr.bf16.mxu0 %v4965
    %5095 = vmatpush2.bf16.msra.mxu0 %v4964
    %5096 = vmatprep.subr.bf16.mxu0 %v4963
    %5097 = vmatpush2.bf16.msra.mxu0 %v4962
    %5098 = vmatprep.subr.bf16.mxu0 %v4961
    %5099 = vmatpush2.bf16.msra.mxu0 %v4960
    %5100 = vmatprep.subr.bf16.mxu0 %v4959
    %5101 = vmatpush2.bf16.msra.mxu0 %v4958
    %5102 = vmatprep.mubr.bf16.mxu0 %v4683
    %5103 = vmatmul.mubr.bf16.gmra.mxu0 %v4682
    %v5104 = vpop.f32.mrf.mxu0
    %v5105 = vadd.f32 0.0, %v5104
    %v5106 = vpop.f32.mrf.mxu0
    %v5107 = vadd.f32 0.0, %v5106
    %v5108 = vpop.f32.mrf.mxu0
    %v5109 = vpop.f32.mrf.mxu0
    %5110 = vdwg.mxu0
    %5111 = vmatprep.subr.bf16.mxu0 %v4989
    %5112 = vmatpush1.bf16.msra.mxu0 %v4988
    %5113 = vmatprep.subr.bf16.mxu0 %v4987
    %5114 = vmatpush1.bf16.msra.mxu0 %v4986
    %5115 = vmatprep.subr.bf16.mxu0 %v4985
    %5116 = vmatpush1.bf16.msra.mxu0 %v4984
    %5117 = vmatprep.subr.bf16.mxu0 %v4983
    %5118 = vmatpush1.bf16.msra.mxu0 %v4982
    %5119 = vmatprep.subr.bf16.mxu0 %v4981
    %5120 = vmatpush1.bf16.msra.mxu0 %v4980
    %5121 = vmatprep.subr.bf16.mxu0 %v4979
    %5122 = vmatpush1.bf16.msra.mxu0 %v4978
    %5123 = vmatprep.subr.bf16.mxu0 %v4977
    %5124 = vmatpush1.bf16.msra.mxu0 %v4976
    %5125 = vmatprep.subr.bf16.mxu0 %v4975
    %5126 = vmatpush1.bf16.msra.mxu0 %v4974
    %5127 = vmatprep.subr.bf16.mxu0 %v5005
    %5128 = vmatpush2.bf16.msra.mxu0 %v5004
    %5129 = vmatprep.subr.bf16.mxu0 %v5003
    %5130 = vmatpush2.bf16.msra.mxu0 %v5002
    %5131 = vmatprep.subr.bf16.mxu0 %v5001
    %5132 = vmatpush2.bf16.msra.mxu0 %v5000
    %5133 = vmatprep.subr.bf16.mxu0 %v4999
    %5134 = vmatpush2.bf16.msra.mxu0 %v4998
    %5135 = vmatprep.subr.bf16.mxu0 %v4997
    %5136 = vmatpush2.bf16.msra.mxu0 %v4996
    %5137 = vmatprep.subr.bf16.mxu0 %v4995
    %5138 = vmatpush2.bf16.msra.mxu0 %v4994
    %5139 = vmatprep.subr.bf16.mxu0 %v4993
    %5140 = vmatpush2.bf16.msra.mxu0 %v4992
    %5141 = vmatprep.subr.bf16.mxu0 %v4991
    %5142 = vmatpush2.bf16.msra.mxu0 %v4990
    %5143 = vmatprep.mubr.bf16.mxu0 %v4685
    %5144 = vmatmul.mubr.bf16.gmra.mxu0 %v4684
    %v5145 = vpop.f32.mrf.mxu0
    %v5146 = vadd.f32 %v5105, %v5145
    %v5147 = vpop.f32.mrf.mxu0
    %v5148 = vadd.f32 %v5107, %v5147
    %v5149 = vpop.f32.mrf.mxu0
    %v5150 = vpop.f32.mrf.mxu0
    %5151 = vdwg.mxu0
    %v5200 = vunpack.c.l.b16 %v4634
    %v5201 = vunpack.c.h.b16 %v4634
    %v5202 = vunpack.c.l.b16 %v4635
    %v5203 = vunpack.c.h.b16 %v4635
    %v5204 = vunpack.c.l.b16 %v4636
    %v5205 = vunpack.c.h.b16 %v4636
    %v5206 = vunpack.c.l.b16 %v4637
    %v5207 = vunpack.c.h.b16 %v4637
    %v5208 = vunpack.c.l.b16 %v4638
    %v5209 = vunpack.c.h.b16 %v4638
    %v5210 = vunpack.c.l.b16 %v4639
    %v5211 = vunpack.c.h.b16 %v4639
    %v5212 = vunpack.c.l.b16 %v4640
    %v5213 = vunpack.c.h.b16 %v4640
    %v5214 = vunpack.c.l.b16 %v4641
    %v5215 = vunpack.c.h.b16 %v4641
    %v5216 = vunpack.c.l.b16 %v4642
    %v5217 = vunpack.c.h.b16 %v4642
    %v5218 = vunpack.c.l.b16 %v4643
    %v5219 = vunpack.c.h.b16 %v4643
    %v5220 = vunpack.c.l.b16 %v4644
    %v5221 = vunpack.c.h.b16 %v4644
    %v5222 = vunpack.c.l.b16 %v4645
    %v5223 = vunpack.c.h.b16 %v4645
    %v5224 = vunpack.c.l.b16 %v4646
    %v5225 = vunpack.c.h.b16 %v4646
    %v5226 = vunpack.c.l.b16 %v4647
    %v5227 = vunpack.c.h.b16 %v4647
    %v5228 = vunpack.c.l.b16 %v4648
    %v5229 = vunpack.c.h.b16 %v4648
    %v5230 = vunpack.c.l.b16 %v4649
    %v5231 = vunpack.c.h.b16 %v4649
    %v5232 = vunpack.c.l.b16 %v4650
    %v5233 = vunpack.c.h.b16 %v4650
    %v5234 = vunpack.c.l.b16 %v4651
    %v5235 = vunpack.c.h.b16 %v4651
    %v5236 = vunpack.c.l.b16 %v4652
    %v5237 = vunpack.c.h.b16 %v4652
    %v5238 = vunpack.c.l.b16 %v4653
    %v5239 = vunpack.c.h.b16 %v4653
    %v5240 = vunpack.c.l.b16 %v4654
    %v5241 = vunpack.c.h.b16 %v4654
    %v5242 = vunpack.c.l.b16 %v4655
    %v5243 = vunpack.c.h.b16 %v4655
    %v5244 = vunpack.c.l.b16 %v4656
    %v5245 = vunpack.c.h.b16 %v4656
    %v5246 = vunpack.c.l.b16 %v4657
    %v5247 = vunpack.c.h.b16 %v4657
    %v5248 = vunpack.c.l.b16 %v4658
    %v5249 = vunpack.c.h.b16 %v4658
    %v5250 = vunpack.c.l.b16 %v4659
    %v5251 = vunpack.c.h.b16 %v4659
    %v5252 = vunpack.c.l.b16 %v4660
    %v5253 = vunpack.c.h.b16 %v4660
    %v5254 = vunpack.c.l.b16 %v4661
    %v5255 = vunpack.c.h.b16 %v4661
    %v5256 = vunpack.c.l.b16 %v4662
    %v5257 = vunpack.c.h.b16 %v4662
    %v5258 = vunpack.c.l.b16 %v4663
    %v5259 = vunpack.c.h.b16 %v4663
    %v5260 = vunpack.c.l.b16 %v4664
    %v5261 = vunpack.c.h.b16 %v4664
    %v5262 = vunpack.c.l.b16 %v4665
    %v5263 = vunpack.c.h.b16 %v4665
    %v5264 = vunpack.c.l.b16 %v4666
    %v5265 = vunpack.c.h.b16 %v4666
    %v5266 = vunpack.c.l.b16 %v4667
    %v5267 = vunpack.c.h.b16 %v4667
    %v5268 = vunpack.c.l.b16 %v4668
    %v5269 = vunpack.c.h.b16 %v4668
    %v5270 = vunpack.c.l.b16 %v4669
    %v5271 = vunpack.c.h.b16 %v4669
    %v5272 = vunpack.c.l.b16 %v4670
    %v5273 = vunpack.c.h.b16 %v4670
    %v5274 = vunpack.c.l.b16 %v4671
    %v5275 = vunpack.c.h.b16 %v4671
    %v5276 = vunpack.c.l.b16 %v4672
    %v5277 = vunpack.c.h.b16 %v4672
    %v5278 = vunpack.c.l.b16 %v4673
    %v5279 = vunpack.c.h.b16 %v4673
    %v5280 = vunpack.c.l.b16 %v4674
    %v5281 = vunpack.c.h.b16 %v4674
    %v5282 = vunpack.c.l.b16 %v4675
    %v5283 = vunpack.c.h.b16 %v4675
    %v5284 = vunpack.c.l.b16 %v4676
    %v5285 = vunpack.c.h.b16 %v4676
    %v5286 = vunpack.c.l.b16 %v4677
    %v5287 = vunpack.c.h.b16 %v4677
    %v5288 = vunpack.c.l.b16 %v4678
    %v5289 = vunpack.c.h.b16 %v4678
    %v5290 = vunpack.c.l.b16 %v4679
    %v5291 = vunpack.c.h.b16 %v4679
    %v5292 = vunpack.c.l.b16 %v4680
    %v5293 = vunpack.c.h.b16 %v4680
    %v5294 = vunpack.c.l.b16 %v4681
    %v5295 = vunpack.c.h.b16 %v4681
    %v5296 = vpack.c.b16 %v5202, %v5200
    %v5297 = vpack.c.b16 %v5203, %v5201
    %v5298 = vpack.c.b16 %v5206, %v5204
    %v5299 = vpack.c.b16 %v5207, %v5205
    %v5300 = vpack.c.b16 %v5210, %v5208
    %v5301 = vpack.c.b16 %v5211, %v5209
    %v5302 = vpack.c.b16 %v5214, %v5212
    %v5303 = vpack.c.b16 %v5215, %v5213
    %v5304 = vpack.c.b16 %v5218, %v5216
    %v5305 = vpack.c.b16 %v5219, %v5217
    %v5306 = vpack.c.b16 %v5222, %v5220
    %v5307 = vpack.c.b16 %v5223, %v5221
    %v5308 = vpack.c.b16 %v5226, %v5224
    %v5309 = vpack.c.b16 %v5227, %v5225
    %v5310 = vpack.c.b16 %v5230, %v5228
    %v5311 = vpack.c.b16 %v5231, %v5229
    %v5312 = vpack.c.b16 %v5234, %v5232
    %v5313 = vpack.c.b16 %v5235, %v5233
    %v5314 = vpack.c.b16 %v5238, %v5236
    %v5315 = vpack.c.b16 %v5239, %v5237
    %v5316 = vpack.c.b16 %v5242, %v5240
    %v5317 = vpack.c.b16 %v5243, %v5241
    %v5318 = vpack.c.b16 %v5246, %v5244
    %v5319 = vpack.c.b16 %v5247, %v5245
    %v5320 = vpack.c.b16 %v5250, %v5248
    %v5321 = vpack.c.b16 %v5251, %v5249
    %v5322 = vpack.c.b16 %v5254, %v5252
    %v5323 = vpack.c.b16 %v5255, %v5253
    %v5324 = vpack.c.b16 %v5258, %v5256
    %v5325 = vpack.c.b16 %v5259, %v5257
    %v5326 = vpack.c.b16 %v5262, %v5260
    %v5327 = vpack.c.b16 %v5263, %v5261
    %v5328 = vpack.c.b16 %v5266, %v5264
    %v5329 = vpack.c.b16 %v5267, %v5265
    %v5330 = vpack.c.b16 %v5270, %v5268
    %v5331 = vpack.c.b16 %v5271, %v5269
    %v5332 = vpack.c.b16 %v5274, %v5272
    %v5333 = vpack.c.b16 %v5275, %v5273
    %v5334 = vpack.c.b16 %v5278, %v5276
    %v5335 = vpack.c.b16 %v5279, %v5277
    %v5336 = vpack.c.b16 %v5282, %v5280
    %v5337 = vpack.c.b16 %v5283, %v5281
    %v5338 = vpack.c.b16 %v5286, %v5284
    %v5339 = vpack.c.b16 %v5287, %v5285
    %v5340 = vpack.c.b16 %v5290, %v5288
    %v5341 = vpack.c.b16 %v5291, %v5289
    %v5342 = vpack.c.b16 %v5294, %v5292
    %v5343 = vpack.c.b16 %v5295, %v5293
    %5392 = vmatprep.subr.bf16.mxu0 %v5311
    %5393 = vmatpush1.bf16.msra.mxu0 %v5310
    %5394 = vmatprep.subr.bf16.mxu0 %v5309
    %5395 = vmatpush1.bf16.msra.mxu0 %v5308
    %5396 = vmatprep.subr.bf16.mxu0 %v5307
    %5397 = vmatpush1.bf16.msra.mxu0 %v5306
    %5398 = vmatprep.subr.bf16.mxu0 %v5305
    %5399 = vmatpush1.bf16.msra.mxu0 %v5304
    %5400 = vmatprep.subr.bf16.mxu0 %v5303
    %5401 = vmatpush1.bf16.msra.mxu0 %v5302
    %5402 = vmatprep.subr.bf16.mxu0 %v5301
    %5403 = vmatpush1.bf16.msra.mxu0 %v5300
    %5404 = vmatprep.subr.bf16.mxu0 %v5299
    %5405 = vmatpush1.bf16.msra.mxu0 %v5298
    %5406 = vmatprep.subr.bf16.mxu0 %v5297
    %5407 = vmatpush1.bf16.msra.mxu0 %v5296
    %5408 = vmatprep.subr.bf16.mxu0 %v5327
    %5409 = vmatpush2.bf16.msra.mxu0 %v5326
    %5410 = vmatprep.subr.bf16.mxu0 %v5325
    %5411 = vmatpush2.bf16.msra.mxu0 %v5324
    %5412 = vmatprep.subr.bf16.mxu0 %v5323
    %5413 = vmatpush2.bf16.msra.mxu0 %v5322
    %5414 = vmatprep.subr.bf16.mxu0 %v5321
    %5415 = vmatpush2.bf16.msra.mxu0 %v5320
    %5416 = vmatprep.subr.bf16.mxu0 %v5319
    %5417 = vmatpush2.bf16.msra.mxu0 %v5318
    %5418 = vmatprep.subr.bf16.mxu0 %v5317
    %5419 = vmatpush2.bf16.msra.mxu0 %v5316
    %5420 = vmatprep.subr.bf16.mxu0 %v5315
    %5421 = vmatpush2.bf16.msra.mxu0 %v5314
    %5422 = vmatprep.subr.bf16.mxu0 %v5313
    %5423 = vmatpush2.bf16.msra.mxu0 %v5312
    %5424 = vmatprep.mubr.bf16.mxu0 %v4632
    %5425 = vmatmul.mubr.bf16.gmra.mxu0 %v4631
    %v5426 = vpop.f32.mrf.mxu0
    %v5427 = vadd.f32 %v5146, %v5426
    %v5428 = vpop.f32.mrf.mxu0
    %v5429 = vadd.f32 %v5148, %v5428
    %v5430 = vpop.f32.mrf.mxu0
    %v5431 = vpop.f32.mrf.mxu0
    %5432 = vdwg.mxu0
    %5433 = vmatprep.subr.bf16.mxu0 %v5343
    %5434 = vmatpush1.bf16.msra.mxu0 %v5342
    %5435 = vmatprep.subr.bf16.mxu0 %v5341
    %5436 = vmatpush1.bf16.msra.mxu0 %v5340
    %5437 = vmatprep.subr.bf16.mxu0 %v5339
    %5438 = vmatpush1.bf16.msra.mxu0 %v5338
    %5439 = vmatprep.subr.bf16.mxu0 %v5337
    %5440 = vmatpush1.bf16.msra.mxu0 %v5336
    %5441 = vmatprep.subr.bf16.mxu0 %v5335
    %5442 = vmatpush1.bf16.msra.mxu0 %v5334
    %5443 = vmatprep.subr.bf16.mxu0 %v5333
    %5444 = vmatpush1.bf16.msra.mxu0 %v5332
    %5445 = vmatprep.subr.bf16.mxu0 %v5331
    %5446 = vmatpush1.bf16.msra.mxu0 %v5330
    %5447 = vmatprep.subr.bf16.mxu0 %v5329
    %5448 = vmatpush1.bf16.msra.mxu0 %v5328
    %5449 = vmatprep.subr.bf16.mxu0 0
    %5450 = vmatpush2.bf16.msra.mxu0 0
    %5451 = vmatprep.subr.bf16.mxu0 0
    %5452 = vmatpush2.bf16.msra.mxu0 0
    %5453 = vmatprep.subr.bf16.mxu0 0
    %5454 = vmatpush2.bf16.msra.mxu0 0
    %5455 = vmatprep.subr.bf16.mxu0 0
    %5456 = vmatpush2.bf16.msra.mxu0 0
    %5457 = vmatprep.subr.bf16.mxu0 0
    %5458 = vmatpush2.bf16.msra.mxu0 0
    %5459 = vmatprep.subr.bf16.mxu0 0
    %5460 = vmatpush2.bf16.msra.mxu0 0
    %5461 = vmatprep.subr.bf16.mxu0 0
    %5462 = vmatpush2.bf16.msra.mxu0 0
    %5463 = vmatprep.subr.bf16.mxu0 0
    %5464 = vmatpush2.bf16.msra.mxu0 0
    %5465 = vmatprep.mubr.bf16.mxu0 0
    %5466 = vmatmul.mubr.bf16.gmra.mxu0 %v4633
    %v5467 = vpop.f32.mrf.mxu0
    %v5468 = vadd.f32 %v5427, %v5467
    %v5469 = vpop.f32.mrf.mxu0
    %v5470 = vadd.f32 %v5429, %v5469
    %v5471 = vpop.f32.mrf.mxu0
    %v5472 = vpop.f32.mrf.mxu0
    %5473 = vdwg.mxu0
    %v5474 = vld [vmem:[#allocation16] sm:$0x3]
    %v5476 = vlaneseq
    %v5477 = vshrl.u32 %v5476, 7
    %v5478 = vsub.s32 0, %v5477
    %v5479 = vrot.slane %v5474, %v5478
    %v5480 = vlaneseq
    %v5481 = vshrl.u32 %v5480, 7
    %v5482 = vsub.s32 1, %v5481
    %v5483 = vrot.slane %v5474, %v5482
    %v5486 = vadd.f32 %v5468, %v5479
    %v5487 = vadd.f32 %v5470, %v5483
    %v5488 = vmax.f32 %v5486, 0.0
    %v5489 = vmax.f32 %v5487, 0.0
    %v5490 = vpack.c.bf16 %v5488, %v5488
    %v5491 = vpack.c.bf16 %v5489, %v5489
    %v5492 = vld [vmem:[#allocation17] sm:$0xf]
    %v5493 = vld [vmem:[#allocation17 + $0x4] sm:$0xf]
    %v5494 = vld [vmem:[#allocation17 + $0x8] sm:$0xf]
    %v5495 = vld [vmem:[#allocation17 + $0xc] sm:$0xf]
    %v5496 = vld [vmem:[#allocation17 + $0x10] sm:$0xf]
    %v5497 = vld [vmem:[#allocation17 + $0x14] sm:$0xf]
    %v5498 = vld [vmem:[#allocation17 + $0x18] sm:$0xf]
    %v5499 = vld [vmem:[#allocation17 + $0x1c] sm:$0xf]
    %v5500 = vld [vmem:[#allocation17 + $0x20] sm:$0xf]
    %v5501 = vld [vmem:[#allocation17 + $0x24] sm:$0xf]
    %v5502 = vld [vmem:[#allocation17 + $0x28] sm:$0xf]
    %v5503 = vld [vmem:[#allocation17 + $0x2c] sm:$0xf]
    %v5504 = vld [vmem:[#allocation17 + $0x30] sm:$0xf]
    %v5505 = vld [vmem:[#allocation17 + $0x34] sm:$0xf]
    %v5506 = vld [vmem:[#allocation17 + $0x38] sm:$0xf]
    %v5507 = vld [vmem:[#allocation17 + $0x3c] sm:$0xf]
    %v5508 = vld [vmem:[#allocation17 + $0x40] sm:$0xf]
    %v5509 = vld [vmem:[#allocation17 + $0x44] sm:$0xf]
    %v5510 = vld [vmem:[#allocation17 + $0x48] sm:$0xf]
    %v5511 = vld [vmem:[#allocation17 + $0x4c] sm:$0xf]
    %v5512 = vld [vmem:[#allocation17 + $0x50] sm:$0xf]
    %v5513 = vld [vmem:[#allocation17 + $0x54] sm:$0xf]
    %v5514 = vld [vmem:[#allocation17 + $0x58] sm:$0xf]
    %v5515 = vld [vmem:[#allocation17 + $0x5c] sm:$0xf]
    %v5516 = vld [vmem:[#allocation17 + $0x60] sm:$0xf]
    %v5517 = vld [vmem:[#allocation17 + $0x64] sm:$0xf]
    %v5518 = vld [vmem:[#allocation17 + $0x68] sm:$0xf]
    %v5519 = vld [vmem:[#allocation17 + $0x6c] sm:$0xf]
    %v5520 = vld [vmem:[#allocation17 + $0x70] sm:$0xf]
    %v5521 = vld [vmem:[#allocation17 + $0x74] sm:$0xf]
    %v5522 = vld [vmem:[#allocation17 + $0x78] sm:$0xf]
    %v5523 = vld [vmem:[#allocation17 + $0x7c] sm:$0xf]
    %v5524 = vld [vmem:[#allocation19] sm:$0x1]
    %v5526 = vlaneseq
    %v5527 = vshrl.u32 %v5526, 7
    %v5528 = vsub.s32 0, %v5527
    %v5529 = vrot.slane %v5524, %v5528
    %v5563 = vunpack.c.l.b16 %v5492
    %v5564 = vunpack.c.l.b16 %v5493
    %v5565 = vunpack.c.l.b16 %v5494
    %v5566 = vunpack.c.l.b16 %v5495
    %v5567 = vunpack.c.l.b16 %v5496
    %v5568 = vunpack.c.l.b16 %v5497
    %v5569 = vunpack.c.l.b16 %v5498
    %v5570 = vunpack.c.l.b16 %v5499
    %v5571 = vunpack.c.l.b16 %v5500
    %v5572 = vunpack.c.l.b16 %v5501
    %v5573 = vunpack.c.l.b16 %v5502
    %v5574 = vunpack.c.l.b16 %v5503
    %v5575 = vunpack.c.l.b16 %v5504
    %v5576 = vunpack.c.l.b16 %v5505
    %v5577 = vunpack.c.l.b16 %v5506
    %v5578 = vunpack.c.l.b16 %v5507
    %v5579 = vunpack.c.l.b16 %v5508
    %v5580 = vunpack.c.l.b16 %v5509
    %v5581 = vunpack.c.l.b16 %v5510
    %v5582 = vunpack.c.l.b16 %v5511
    %v5583 = vunpack.c.l.b16 %v5512
    %v5584 = vunpack.c.l.b16 %v5513
    %v5585 = vunpack.c.l.b16 %v5514
    %v5586 = vunpack.c.l.b16 %v5515
    %v5587 = vunpack.c.l.b16 %v5516
    %v5588 = vunpack.c.l.b16 %v5517
    %v5589 = vunpack.c.l.b16 %v5518
    %v5590 = vunpack.c.l.b16 %v5519
    %v5591 = vunpack.c.l.b16 %v5520
    %v5592 = vunpack.c.l.b16 %v5521
    %v5593 = vunpack.c.l.b16 %v5522
    %v5594 = vunpack.c.l.b16 %v5523
    %v5595 = vpack.c.b16 %v5564, %v5563
    %v5596 = vpack.c.b16 %v5566, %v5565
    %v5597 = vpack.c.b16 %v5568, %v5567
    %v5598 = vpack.c.b16 %v5570, %v5569
    %v5599 = vpack.c.b16 %v5572, %v5571
    %v5600 = vpack.c.b16 %v5574, %v5573
    %v5601 = vpack.c.b16 %v5576, %v5575
    %v5602 = vpack.c.b16 %v5578, %v5577
    %v5603 = vpack.c.b16 %v5580, %v5579
    %v5604 = vpack.c.b16 %v5582, %v5581
    %v5605 = vpack.c.b16 %v5584, %v5583
    %v5606 = vpack.c.b16 %v5586, %v5585
    %v5607 = vpack.c.b16 %v5588, %v5587
    %v5608 = vpack.c.b16 %v5590, %v5589
    %v5609 = vpack.c.b16 %v5592, %v5591
    %v5610 = vpack.c.b16 %v5594, %v5593
    %5627 = vmatprep.subr.bf16.mxu0 0
    %5628 = vmatpush1.bf16.msra.mxu0 %v5602
    %5629 = vmatprep.subr.bf16.mxu0 0
    %5630 = vmatpush1.bf16.msra.mxu0 %v5601
    %5631 = vmatprep.subr.bf16.mxu0 0
    %5632 = vmatpush1.bf16.msra.mxu0 %v5600
    %5633 = vmatprep.subr.bf16.mxu0 0
    %5634 = vmatpush1.bf16.msra.mxu0 %v5599
    %5635 = vmatprep.subr.bf16.mxu0 0
    %5636 = vmatpush1.bf16.msra.mxu0 %v5598
    %5637 = vmatprep.subr.bf16.mxu0 0
    %5638 = vmatpush1.bf16.msra.mxu0 %v5597
    %5639 = vmatprep.subr.bf16.mxu0 0
    %5640 = vmatpush1.bf16.msra.mxu0 %v5596
    %5641 = vmatprep.subr.bf16.mxu0 0
    %5642 = vmatpush1.bf16.msra.mxu0 %v5595
    %5643 = vmatprep.subr.bf16.mxu0 0
    %5644 = vmatpush2.bf16.msra.mxu0 %v5610
    %5645 = vmatprep.subr.bf16.mxu0 0
    %5646 = vmatpush2.bf16.msra.mxu0 %v5609
    %5647 = vmatprep.subr.bf16.mxu0 0
    %5648 = vmatpush2.bf16.msra.mxu0 %v5608
    %5649 = vmatprep.subr.bf16.mxu0 0
    %5650 = vmatpush2.bf16.msra.mxu0 %v5607
    %5651 = vmatprep.subr.bf16.mxu0 0
    %5652 = vmatpush2.bf16.msra.mxu0 %v5606
    %5653 = vmatprep.subr.bf16.mxu0 0
    %5654 = vmatpush2.bf16.msra.mxu0 %v5605
    %5655 = vmatprep.subr.bf16.mxu0 0
    %5656 = vmatpush2.bf16.msra.mxu0 %v5604
    %5657 = vmatprep.subr.bf16.mxu0 0
    %5658 = vmatpush2.bf16.msra.mxu0 %v5603
    %5659 = vmatprep.mubr.bf16.mxu0 %v5491
    %5660 = vmatmul.mubr.bf16.gmra.mxu0 %v5490
    %v5661 = vpop.f32.mrf.mxu0
    %v5662 = vadd.f32 %v5529, %v5661
    %v5663 = vpop.f32.mrf.mxu0
    %v5664 = vpop.f32.mrf.mxu0
    %v5665 = vpop.f32.mrf.mxu0
    %5666 = vdwg.mxu0
    %5667 = vst [vmem:[#allocation20] sm:$0xff] %v5662
    // Predicated region
    $region90: #{tpu_custom_call.1} parent=1 // pred_check
      _
    $region91: #{tpu_custom_call.1} parent=1 // pred_check_branch
      %5669 = sbr.rel (0) target = $region93
    $region92: #{tpu_custom_call.1} parent=1 // pred_region
      %s5671 = ssub.s32 128, 128
      %5672 = vsyncadd [#allocation4], %s5671
      %s5674 = sshll.u32 [#allocation20], 4
      %s5675 = int_to_ptr.vmem [resolvable:$true] %s5674
      %5677 = dma.vmem_to_hbm [thread:$0]  %s5675, 128, %s11, [#allocation4]
    $region93: #{tpu_custom_call.1} parent=1 // pred_fallthru
      _
    // Predicated region
    $region94: #{tpu_custom_call.1} parent=1 // pred_check
      _
    $region95: #{tpu_custom_call.1} parent=1 // pred_check_branch
      %5679 = sbr.rel (0) target = $region97
    $region96: #{tpu_custom_call.1} parent=1 // pred_region
      %5680 = dma.done [#allocation4], 128
    $region97: #{tpu_custom_call.1} parent=1 // pred_fallthru
      _
    %5681 = vsyncpa [#allocation3], 1
    %5682 = vsyncpa [#allocation6], 1
    %5683 = vsyncpa [#allocation9], 1
    %5684 = vsyncpa [#allocation12], 1
    %5685 = vsyncpa [#allocation15], 1
    %5686 = vsyncpa [#allocation18], 1
    %5687 = vsyncpa [#allocation4], 1

</llo_original>
